<compile_context>
chip_gen: v6e
topology: v6e:2x2x1
jax: 0.10.0
libtpu: 0.0.40
codegen_flags: <defaults>
</compile_context>

<pallas_src>
import jax
import jax.numpy as jnp
from jax.experimental import pallas as pl
from jax.experimental.pallas import tpu as pltpu

_BN_EPS = 1e-5


# ---------------------------------------------------------------------------
# Pallas kernels
# ---------------------------------------------------------------------------
def conv_relu_bn_kernel(p_ref, w_ref, b_ref, scale_ref, shift_ref, o_ref):
    """im2col-patch matmul (bf16 MXU operands, f32 acc) + bias + ReLU + eval BN."""
    y = jnp.dot(p_ref[...].astype(jnp.bfloat16), w_ref[...],
                preferred_element_type=jnp.float32)
    y = jnp.maximum(y + b_ref[...], 0.0)
    o_ref[...] = y * scale_ref[...] + shift_ref[...]


def fused_mlp_kernel(*refs):
    """Entire dense chain in one kernel: all weights VMEM-resident, intermediates
    never leave vregs/VMEM, residual add and final sigmoid fused in."""
    data_ref, act_ref = refs[0], refs[1]
    wb = refs[2:-1]                               # 11 (weight, bias) ref pairs
    o_ref = refs[-1]

    def dense(x, idx, act="relu"):
        w = wb[2 * idx][...]                      # bf16 [K, N]
        b = wb[2 * idx + 1][...]                  # f32  [1, N]
        y = jnp.dot(x.astype(jnp.bfloat16), w,
                    preferred_element_type=jnp.float32) + b
        return jnp.maximum(y, 0.0) if act == "relu" else jax.nn.sigmoid(y)

    d = data_ref[...]                             # [B, 1024] f32
    for i in (0, 1, 2):                           # fc_model_0..2
        d = dense(d, i)
    a = act_ref[...]                              # [B, 3] f32
    for i in (3, 4, 5):                           # fc0_1..fc0_3
        a = dense(a, i)
    n = a + d                                     # residual add (fused)
    for i in (6, 7, 8, 9):                        # fc1..fc4
        n = dense(n, i)
    o_ref[...] = dense(n, 10, act="sigmoid")      # fc5 + sigmoid


# ---------------------------------------------------------------------------
# pallas_call wrappers
# ---------------------------------------------------------------------------
def pallas_conv_relu_bn(patches, w_flat, b, scale, shift):
    M, K = patches.shape
    O = w_flat.shape[1]
    tile_m = 256 if M % 256 == 0 else M           # M-grid -> v7x dual-TC sharding
    grid = (M // tile_m,)
    return pl.pallas_call(
        conv_relu_bn_kernel,
        out_shape=jax.ShapeDtypeStruct((M, O), jnp.float32),
        grid=grid,
        in_specs=[
            pl.BlockSpec((tile_m, K), lambda i: (i, 0)),
            pl.BlockSpec((K, O), lambda i: (0, 0)),
            pl.BlockSpec((1, O), lambda i: (0, 0)),
            pl.BlockSpec((1, O), lambda i: (0, 0)),
            pl.BlockSpec((1, O), lambda i: (0, 0)),
        ],
        out_specs=pl.BlockSpec((tile_m, O), lambda i: (i, 0)),
        compiler_params=pltpu.CompilerParams(dimension_semantics=("parallel",)),
    )(patches, w_flat, b, scale, shift)


def fused_mlp(data_flat, action_vec, dense_params):
    B = data_flat.shape[0]
    # Single invocation, whole-array VMEM blocks (total footprint < 3 MiB).
    return pl.pallas_call(
        fused_mlp_kernel,
        out_shape=jax.ShapeDtypeStruct((B, 1), jnp.float32),
    )(data_flat, action_vec, *dense_params)


# ---------------------------------------------------------------------------
# Conv tower plumbing (NHWC end-to-end, host-side im2col)
# ---------------------------------------------------------------------------
def _im2col_nhwc(x, k=3, stride=2, pad=1):
    B, H, W, C = x.shape
    Ho = (H + 2 * pad - k) // stride + 1
    Wo = (W + 2 * pad - k) // stride + 1
    xp = jnp.pad(x, ((0, 0), (pad, pad), (pad, pad), (0, 0)))
    cols = []
    for di in range(k):
        for dj in range(k):
            cols.append(xp[:, di:di + stride * Ho:stride,
                           dj:dj + stride * Wo:stride, :])
    patches = jnp.concatenate(cols, axis=-1)      # [B, Ho, Wo, k*k*C], (di,dj,c)-major
    return patches.reshape(B * Ho * Wo, k * k * C), Ho, Wo


def conv_block(x_nhwc, cp):
    B = x_nhwc.shape[0]
    O = cp["b"].shape[1]
    patches, Ho, Wo = _im2col_nhwc(x_nhwc)
    y = pallas_conv_relu_bn(patches, cp["w"], cp["b"], cp["scale"], cp["shift"])
    return y.reshape(B, Ho, Wo, O)                # stay NHWC (no transpose back)


# ---------------------------------------------------------------------------
# Parameters (deterministic synthetic init, shapes from QNetwork.__init__).
# All re-layouts hoisted here so the per-step graph sees ready-to-use arrays.
# ---------------------------------------------------------------------------
def init_params(key):
    keys = iter(jax.random.split(key, 32))

    def conv_layer(o, c, k=3):
        w_oihw = jax.random.normal(next(keys), (o, c, k, k), jnp.float32) \
            * (1.0 / (c * k * k)) ** 0.5
        b = jax.random.normal(next(keys), (o,), jnp.float32) * 0.01
        # PyTorch BatchNorm2d defaults (eval mode): gamma=1, beta=0, mean=0, var=1.
        gamma = jnp.ones((o,), jnp.float32)
        beta = jnp.zeros((o,), jnp.float32)
        mean = jnp.zeros((o,), jnp.float32)
        var = jnp.ones((o,), jnp.float32)
        scale = gamma / jnp.sqrt(var + _BN_EPS)
        shift = beta - mean * scale
        return dict(
            # OIHW -> [(di,dj,c), o]: matches the NHWC im2col patch layout.
            w=w_oihw.transpose(2, 3, 1, 0).reshape(k * k * c, o).astype(jnp.bfloat16),
            b=b.reshape(1, o),
            scale=scale.reshape(1, o),
            shift=shift.reshape(1, o),
        )

    def lin_layer(i, o):
        w = jax.random.normal(next(keys), (i, o), jnp.float32) * (1.0 / i) ** 0.5
        b = jax.random.normal(next(keys), (o,), jnp.float32) * 0.01
        return w, b

    p = {}
    p["conv0"] = conv_layer(32, 3)
    p["conv1"] = conv_layer(64, 32)
    p["conv2"] = conv_layer(64, 64)

    w_m0, b_m0 = lin_layer(4 * 4 * 64, 256)       # torch row order: (c, h, w) flatten
    # Permute rows once so the kernel consumes the NHWC (h, w, c) flatten directly.
    w_m0 = w_m0.reshape(64, 4, 4, 256).transpose(1, 2, 0, 3).reshape(4 * 4 * 64, 256)
    w_m1, b_m1 = lin_layer(256, 256)
    w_m2, b_m2 = lin_layer(256, 64)
    w_a1, b_a1 = lin_layer(3, 16)
    w_a2, b_a2 = lin_layer(16, 32)
    w_a3, b_a3 = lin_layer(32, 64)
    w1, b1 = lin_layer(64, 128)
    w2, b2 = lin_layer(128, 256)
    w3, b3 = lin_layer(256, 256)
    w4, b4 = lin_layer(256, 16)
    w5, b5 = lin_layer(16, 1)

    dense = []
    for w, b in ((w_m0, b_m0), (w_m1, b_m1), (w_m2, b_m2),
                 (w_a1, b_a1), (w_a2, b_a2), (w_a3, b_a3),
                 (w1, b1), (w2, b2), (w3, b3), (w4, b4), (w5, b5)):
        dense.append(w.astype(jnp.bfloat16))      # MXU operand (bf16)
        dense.append(b.reshape(1, -1))            # f32 [1, N]
    p["dense"] = tuple(dense)
    return p


# ---------------------------------------------------------------------------
# Forward pass (mirrors QNetwork.forward)
# ---------------------------------------------------------------------------
def qnetwork_forward(p, data, action_vector):
    # data: [B, 3, 32, 32] NCHW (torch layout) -> NHWC once, then NHWC throughout.
    x = jnp.transpose(data, (0, 2, 3, 1))
    x = conv_block(x, p["conv0"])                 # [B, 16, 16, 32]
    x = conv_block(x, p["conv1"])                 # [B, 8, 8, 64]
    x = conv_block(x, p["conv2"])                 # [B, 4, 4, 64]
    data_flat = x.reshape(x.shape[0], -1)         # NHWC flatten; fc_model_0 rows pre-permuted
    return fused_mlp(data_flat, action_vector, p["dense"])   # [B, 1]


if __name__ == "__main__":
    key = jax.random.PRNGKey(0)
    k_data, k_act, k_params = jax.random.split(key, 3)

    B = 2
    data = jax.random.normal(k_data, (B, 3, 32, 32), jnp.float32)   # NCHW
    action_vector = jax.random.normal(k_act, (B, 3), jnp.float32)
    params = init_params(k_params)

    fwd = jax.jit(qnetwork_forward)
    out = jax.block_until_ready(fwd(params, data, action_vector))

    assert out.shape == (B, 1), out.shape
    assert bool(jnp.all(jnp.isfinite(out)))
    assert bool(jnp.all((out >= 0.0) & (out <= 1.0)))
    print("KERNEL_OK")
</pallas_src>

<mosaic_0001>
module attributes {stable_mosaic.version = 11 : i64} {
  func.func @conv_relu_bn_kernel(%arg0: i32, %arg1: memref<256x27xf32, #tpu.memory_space<vmem>>, %arg2: memref<27x32xbf16, #tpu.memory_space<vmem>>, %arg3: memref<1x32xf32, #tpu.memory_space<vmem>>, %arg4: memref<1x32xf32, #tpu.memory_space<vmem>>, %arg5: memref<1x32xf32, #tpu.memory_space<vmem>>, %arg6: memref<256x32xf32, #tpu.memory_space<vmem>>) attributes {dimension_semantics = [#tpu.dimension_semantics<parallel>], iteration_bounds = array<i64: 2>, scalar_prefetch = 0 : i64, scratch_operands = 0 : i64, tpu.core_type = #tpu.core_type<tc>, window_params = [{transform_indices = @transform_0, window_bounds = array<i64: 256, 27>}, {pipeline_mode = #tpu.pipeline_mode<synchronous>, transform_indices = @transform_1, window_bounds = array<i64: 27, 32>}, {pipeline_mode = #tpu.pipeline_mode<synchronous>, transform_indices = @transform_2, window_bounds = array<i64: 1, 32>}, {pipeline_mode = #tpu.pipeline_mode<synchronous>, transform_indices = @transform_3, window_bounds = array<i64: 1, 32>}, {pipeline_mode = #tpu.pipeline_mode<synchronous>, transform_indices = @transform_4, window_bounds = array<i64: 1, 32>}, {transform_indices = @transform_5, window_bounds = array<i64: 256, 32>}]} {
    %c0 = arith.constant 0 : index
    %c0_0 = arith.constant 0 : index
    %0 = vector.load %arg1[%c0, %c0_0] : memref<256x27xf32, #tpu.memory_space<vmem>>, vector<256x27xf32>
    %1 = arith.truncf %0 : vector<256x27xf32> to vector<256x27xbf16>
    %c0_1 = arith.constant 0 : index
    %c0_2 = arith.constant 0 : index
    %2 = vector.load %arg2[%c0_1, %c0_2] : memref<27x32xbf16, #tpu.memory_space<vmem>>, vector<27x32xbf16>
    %cst = arith.constant dense<0.000000e+00> : vector<256x32xf32>
    %3 = tpu.matmul %1, %2, %cst {dimension_numbers = #tpu.dot_dimension_numbers<[1], [0], [0], [1], [0, 0, 1, 1], [], []>} : vector<256x27xbf16>, vector<27x32xbf16>, vector<256x32xf32> -> vector<256x32xf32>
    %c0_3 = arith.constant 0 : index
    %c0_4 = arith.constant 0 : index
    %4 = vector.load %arg3[%c0_3, %c0_4] : memref<1x32xf32, #tpu.memory_space<vmem>>, vector<1x32xf32>
    %5 = vector.broadcast %4 : vector<1x32xf32> to vector<256x32xf32>
    %6 = arith.addf %3, %5 : vector<256x32xf32>
    %cst_5 = arith.constant 0.000000e+00 : f32
    %7 = vector.broadcast %cst_5 : f32 to vector<256x32xf32>
    %8 = arith.maximumf %6, %7 : vector<256x32xf32>
    %c0_6 = arith.constant 0 : index
    %c0_7 = arith.constant 0 : index
    %9 = vector.load %arg4[%c0_6, %c0_7] : memref<1x32xf32, #tpu.memory_space<vmem>>, vector<1x32xf32>
    %10 = vector.broadcast %9 : vector<1x32xf32> to vector<256x32xf32>
    %11 = arith.mulf %8, %10 : vector<256x32xf32>
    %c0_8 = arith.constant 0 : index
    %c0_9 = arith.constant 0 : index
    %12 = vector.load %arg5[%c0_8, %c0_9] : memref<1x32xf32, #tpu.memory_space<vmem>>, vector<1x32xf32>
    %13 = vector.broadcast %12 : vector<1x32xf32> to vector<256x32xf32>
    %14 = arith.addf %11, %13 : vector<256x32xf32>
    %c0_10 = arith.constant 0 : index
    %c0_11 = arith.constant 0 : index
    %15 = vector.load %arg6[%c0_10, %c0_11] : memref<256x32xf32, #tpu.memory_space<vmem>>, vector<256x32xf32>
    tpu.vector_store %arg6[%c0_10, %c0_11], %14 {strides = array<i32>} : memref<256x32xf32, #tpu.memory_space<vmem>>, vector<256x32xf32>,
    return
  }
  func.func @transform_0(%arg0: i32) -> (i32, i32) {
    %c0_i32 = arith.constant 0 : i32
    %c0_i32_0 = arith.constant 0 : i32
    return %arg0, %c0_i32 : i32, i32
  }
  func.func @transform_1(%arg0: i32) -> (i32, i32) {
    %c0_i32 = arith.constant 0 : i32
    %c0_i32_0 = arith.constant 0 : i32
    %c0_i32_1 = arith.constant 0 : i32
    return %c0_i32, %c0_i32_0 : i32, i32
  }
  func.func @transform_2(%arg0: i32) -> (i32, i32) {
    %c0_i32 = arith.constant 0 : i32
    %c0_i32_0 = arith.constant 0 : i32
    %c0_i32_1 = arith.constant 0 : i32
    return %c0_i32, %c0_i32_0 : i32, i32
  }
  func.func @transform_3(%arg0: i32) -> (i32, i32) {
    %c0_i32 = arith.constant 0 : i32
    %c0_i32_0 = arith.constant 0 : i32
    %c0_i32_1 = arith.constant 0 : i32
    return %c0_i32, %c0_i32_0 : i32, i32
  }
  func.func @transform_4(%arg0: i32) -> (i32, i32) {
    %c0_i32 = arith.constant 0 : i32
    %c0_i32_0 = arith.constant 0 : i32
    %c0_i32_1 = arith.constant 0 : i32
    return %c0_i32, %c0_i32_0 : i32, i32
  }
  func.func @transform_5(%arg0: i32) -> (i32, i32) {
    %c0_i32 = arith.constant 0 : i32
    %c0_i32_0 = arith.constant 0 : i32
    return %arg0, %c0_i32 : i32, i32
  }
}

module attributes {stable_mosaic.version = 11 : i64} {
  func.func @conv_relu_bn_kernel(%arg0: i32, %arg1: memref<128x288xf32, #tpu.memory_space<vmem>>, %arg2: memref<288x64xbf16, #tpu.memory_space<vmem>>, %arg3: memref<1x64xf32, #tpu.memory_space<vmem>>, %arg4: memref<1x64xf32, #tpu.memory_space<vmem>>, %arg5: memref<1x64xf32, #tpu.memory_space<vmem>>, %arg6: memref<128x64xf32, #tpu.memory_space<vmem>>) attributes {dimension_semantics = [#tpu.dimension_semantics<parallel>], iteration_bounds = array<i64: 1>, scalar_prefetch = 0 : i64, scratch_operands = 0 : i64, tpu.core_type = #tpu.core_type<tc>, window_params = [{transform_indices = @transform_0, window_bounds = array<i64: 128, 288>}, {pipeline_mode = #tpu.pipeline_mode<synchronous>, transform_indices = @transform_1, window_bounds = array<i64: 288, 64>}, {pipeline_mode = #tpu.pipeline_mode<synchronous>, transform_indices = @transform_2, window_bounds = array<i64: 1, 64>}, {pipeline_mode = #tpu.pipeline_mode<synchronous>, transform_indices = @transform_3, window_bounds = array<i64: 1, 64>}, {pipeline_mode = #tpu.pipeline_mode<synchronous>, transform_indices = @transform_4, window_bounds = array<i64: 1, 64>}, {transform_indices = @transform_5, window_bounds = array<i64: 128, 64>}]} {
    %c0 = arith.constant 0 : index
    %c0_0 = arith.constant 0 : index
    %0 = vector.load %arg1[%c0, %c0_0] : memref<128x288xf32, #tpu.memory_space<vmem>>, vector<128x288xf32>
    %1 = arith.truncf %0 : vector<128x288xf32> to vector<128x288xbf16>
    %c0_1 = arith.constant 0 : index
    %c0_2 = arith.constant 0 : index
    %2 = vector.load %arg2[%c0_1, %c0_2] : memref<288x64xbf16, #tpu.memory_space<vmem>>, vector<288x64xbf16>
    %cst = arith.constant dense<0.000000e+00> : vector<128x64xf32>
    %3 = tpu.matmul %1, %2, %cst {dimension_numbers = #tpu.dot_dimension_numbers<[1], [0], [0], [1], [0, 0, 1, 1], [], []>} : vector<128x288xbf16>, vector<288x64xbf16>, vector<128x64xf32> -> vector<128x64xf32>
    %c0_3 = arith.constant 0 : index
    %c0_4 = arith.constant 0 : index
    %4 = vector.load %arg3[%c0_3, %c0_4] : memref<1x64xf32, #tpu.memory_space<vmem>>, vector<1x64xf32>
    %5 = vector.broadcast %4 : vector<1x64xf32> to vector<128x64xf32>
    %6 = arith.addf %3, %5 : vector<128x64xf32>
    %cst_5 = arith.constant 0.000000e+00 : f32
    %7 = vector.broadcast %cst_5 : f32 to vector<128x64xf32>
    %8 = arith.maximumf %6, %7 : vector<128x64xf32>
    %c0_6 = arith.constant 0 : index
    %c0_7 = arith.constant 0 : index
    %9 = vector.load %arg4[%c0_6, %c0_7] : memref<1x64xf32, #tpu.memory_space<vmem>>, vector<1x64xf32>
    %10 = vector.broadcast %9 : vector<1x64xf32> to vector<128x64xf32>
    %11 = arith.mulf %8, %10 : vector<128x64xf32>
    %c0_8 = arith.constant 0 : index
    %c0_9 = arith.constant 0 : index
    %12 = vector.load %arg5[%c0_8, %c0_9] : memref<1x64xf32, #tpu.memory_space<vmem>>, vector<1x64xf32>
    %13 = vector.broadcast %12 : vector<1x64xf32> to vector<128x64xf32>
    %14 = arith.addf %11, %13 : vector<128x64xf32>
    %c0_10 = arith.constant 0 : index
    %c0_11 = arith.constant 0 : index
    %15 = vector.load %arg6[%c0_10, %c0_11] : memref<128x64xf32, #tpu.memory_space<vmem>>, vector<128x64xf32>
    tpu.vector_store %arg6[%c0_10, %c0_11], %14 {strides = array<i32>} : memref<128x64xf32, #tpu.memory_space<vmem>>, vector<128x64xf32>,
    return
  }
  func.func @transform_0(%arg0: i32) -> (i32, i32) {
    %c0_i32 = arith.constant 0 : i32
    %c0_i32_0 = arith.constant 0 : i32
    return %arg0, %c0_i32 : i32, i32
  }
  func.func @transform_1(%arg0: i32) -> (i32, i32) {
    %c0_i32 = arith.constant 0 : i32
    %c0_i32_0 = arith.constant 0 : i32
    %c0_i32_1 = arith.constant 0 : i32
    return %c0_i32, %c0_i32_0 : i32, i32
  }
  func.func @transform_2(%arg0: i32) -> (i32, i32) {
    %c0_i32 = arith.constant 0 : i32
    %c0_i32_0 = arith.constant 0 : i32
    %c0_i32_1 = arith.constant 0 : i32
    return %c0_i32, %c0_i32_0 : i32, i32
  }
  func.func @transform_3(%arg0: i32) -> (i32, i32) {
    %c0_i32 = arith.constant 0 : i32
    %c0_i32_0 = arith.constant 0 : i32
    %c0_i32_1 = arith.constant 0 : i32
    return %c0_i32, %c0_i32_0 : i32, i32
  }
  func.func @transform_4(%arg0: i32) -> (i32, i32) {
    %c0_i32 = arith.constant 0 : i32
    %c0_i32_0 = arith.constant 0 : i32
    %c0_i32_1 = arith.constant 0 : i32
    return %c0_i32, %c0_i32_0 : i32, i32
  }
  func.func @transform_5(%arg0: i32) -> (i32, i32) {
    %c0_i32 = arith.constant 0 : i32
    %c0_i32_0 = arith.constant 0 : i32
    return %arg0, %c0_i32 : i32, i32
  }
}

module attributes {stable_mosaic.version = 11 : i64} {
  func.func @conv_relu_bn_kernel(%arg0: i32, %arg1: memref<32x576xf32, #tpu.memory_space<vmem>>, %arg2: memref<576x64xbf16, #tpu.memory_space<vmem>>, %arg3: memref<1x64xf32, #tpu.memory_space<vmem>>, %arg4: memref<1x64xf32, #tpu.memory_space<vmem>>, %arg5: memref<1x64xf32, #tpu.memory_space<vmem>>, %arg6: memref<32x64xf32, #tpu.memory_space<vmem>>) attributes {dimension_semantics = [#tpu.dimension_semantics<parallel>], iteration_bounds = array<i64: 1>, scalar_prefetch = 0 : i64, scratch_operands = 0 : i64, tpu.core_type = #tpu.core_type<tc>, window_params = [{transform_indices = @transform_0, window_bounds = array<i64: 32, 576>}, {pipeline_mode = #tpu.pipeline_mode<synchronous>, transform_indices = @transform_1, window_bounds = array<i64: 576, 64>}, {pipeline_mode = #tpu.pipeline_mode<synchronous>, transform_indices = @transform_2, window_bounds = array<i64: 1, 64>}, {pipeline_mode = #tpu.pipeline_mode<synchronous>, transform_indices = @transform_3, window_bounds = array<i64: 1, 64>}, {pipeline_mode = #tpu.pipeline_mode<synchronous>, transform_indices = @transform_4, window_bounds = array<i64: 1, 64>}, {transform_indices = @transform_5, window_bounds = array<i64: 32, 64>}]} {
    %c0 = arith.constant 0 : index
    %c0_0 = arith.constant 0 : index
    %0 = vector.load %arg1[%c0, %c0_0] : memref<32x576xf32, #tpu.memory_space<vmem>>, vector<32x576xf32>
    %1 = arith.truncf %0 : vector<32x576xf32> to vector<32x576xbf16>
    %c0_1 = arith.constant 0 : index
    %c0_2 = arith.constant 0 : index
    %2 = vector.load %arg2[%c0_1, %c0_2] : memref<576x64xbf16, #tpu.memory_space<vmem>>, vector<576x64xbf16>
    %cst = arith.constant dense<0.000000e+00> : vector<32x64xf32>
    %3 = tpu.matmul %1, %2, %cst {dimension_numbers = #tpu.dot_dimension_numbers<[1], [0], [0], [1], [0, 0, 1, 1], [], []>} : vector<32x576xbf16>, vector<576x64xbf16>, vector<32x64xf32> -> vector<32x64xf32>
    %c0_3 = arith.constant 0 : index
    %c0_4 = arith.constant 0 : index
    %4 = vector.load %arg3[%c0_3, %c0_4] : memref<1x64xf32, #tpu.memory_space<vmem>>, vector<1x64xf32>
    %5 = vector.broadcast %4 : vector<1x64xf32> to vector<32x64xf32>
    %6 = arith.addf %3, %5 : vector<32x64xf32>
    %cst_5 = arith.constant 0.000000e+00 : f32
    %7 = vector.broadcast %cst_5 : f32 to vector<32x64xf32>
    %8 = arith.maximumf %6, %7 : vector<32x64xf32>
    %c0_6 = arith.constant 0 : index
    %c0_7 = arith.constant 0 : index
    %9 = vector.load %arg4[%c0_6, %c0_7] : memref<1x64xf32, #tpu.memory_space<vmem>>, vector<1x64xf32>
    %10 = vector.broadcast %9 : vector<1x64xf32> to vector<32x64xf32>
    %11 = arith.mulf %8, %10 : vector<32x64xf32>
    %c0_8 = arith.constant 0 : index
    %c0_9 = arith.constant 0 : index
    %12 = vector.load %arg5[%c0_8, %c0_9] : memref<1x64xf32, #tpu.memory_space<vmem>>, vector<1x64xf32>
    %13 = vector.broadcast %12 : vector<1x64xf32> to vector<32x64xf32>
    %14 = arith.addf %11, %13 : vector<32x64xf32>
    %c0_10 = arith.constant 0 : index
    %c0_11 = arith.constant 0 : index
    %15 = vector.load %arg6[%c0_10, %c0_11] : memref<32x64xf32, #tpu.memory_space<vmem>>, vector<32x64xf32>
    tpu.vector_store %arg6[%c0_10, %c0_11], %14 {strides = array<i32>} : memref<32x64xf32, #tpu.memory_space<vmem>>, vector<32x64xf32>,
    return
  }
  func.func @transform_0(%arg0: i32) -> (i32, i32) {
    %c0_i32 = arith.constant 0 : i32
    %c0_i32_0 = arith.constant 0 : i32
    return %arg0, %c0_i32 : i32, i32
  }
  func.func @transform_1(%arg0: i32) -> (i32, i32) {
    %c0_i32 = arith.constant 0 : i32
    %c0_i32_0 = arith.constant 0 : i32
    %c0_i32_1 = arith.constant 0 : i32
    return %c0_i32, %c0_i32_0 : i32, i32
  }
  func.func @transform_2(%arg0: i32) -> (i32, i32) {
    %c0_i32 = arith.constant 0 : i32
    %c0_i32_0 = arith.constant 0 : i32
    %c0_i32_1 = arith.constant 0 : i32
    return %c0_i32, %c0_i32_0 : i32, i32
  }
  func.func @transform_3(%arg0: i32) -> (i32, i32) {
    %c0_i32 = arith.constant 0 : i32
    %c0_i32_0 = arith.constant 0 : i32
    %c0_i32_1 = arith.constant 0 : i32
    return %c0_i32, %c0_i32_0 : i32, i32
  }
  func.func @transform_4(%arg0: i32) -> (i32, i32) {
    %c0_i32 = arith.constant 0 : i32
    %c0_i32_0 = arith.constant 0 : i32
    %c0_i32_1 = arith.constant 0 : i32
    return %c0_i32, %c0_i32_0 : i32, i32
  }
  func.func @transform_5(%arg0: i32) -> (i32, i32) {
    %c0_i32 = arith.constant 0 : i32
    %c0_i32_0 = arith.constant 0 : i32
    return %arg0, %c0_i32 : i32, i32
  }
}

module attributes {stable_mosaic.version = 11 : i64} {
  func.func @fused_mlp_kernel(%arg0: memref<2x1024xf32, #tpu.memory_space<vmem>>, %arg1: memref<2x3xf32, #tpu.memory_space<vmem>>, %arg2: memref<1024x256xbf16, #tpu.memory_space<vmem>>, %arg3: memref<1x256xf32, #tpu.memory_space<vmem>>, %arg4: memref<256x256xbf16, #tpu.memory_space<vmem>>, %arg5: memref<1x256xf32, #tpu.memory_space<vmem>>, %arg6: memref<256x64xbf16, #tpu.memory_space<vmem>>, %arg7: memref<1x64xf32, #tpu.memory_space<vmem>>, %arg8: memref<3x16xbf16, #tpu.memory_space<vmem>>, %arg9: memref<1x16xf32, #tpu.memory_space<vmem>>, %arg10: memref<16x32xbf16, #tpu.memory_space<vmem>>, %arg11: memref<1x32xf32, #tpu.memory_space<vmem>>, %arg12: memref<32x64xbf16, #tpu.memory_space<vmem>>, %arg13: memref<1x64xf32, #tpu.memory_space<vmem>>, %arg14: memref<64x128xbf16, #tpu.memory_space<vmem>>, %arg15: memref<1x128xf32, #tpu.memory_space<vmem>>, %arg16: memref<128x256xbf16, #tpu.memory_space<vmem>>, %arg17: memref<1x256xf32, #tpu.memory_space<vmem>>, %arg18: memref<256x256xbf16, #tpu.memory_space<vmem>>, %arg19: memref<1x256xf32, #tpu.memory_space<vmem>>, %arg20: memref<256x16xbf16, #tpu.memory_space<vmem>>, %arg21: memref<1x16xf32, #tpu.memory_space<vmem>>, %arg22: memref<16x1xbf16, #tpu.memory_space<vmem>>, %arg23: memref<1x1xf32, #tpu.memory_space<vmem>>, %arg24: memref<2x1xf32, #tpu.memory_space<vmem>>) attributes {dimension_semantics = [], scalar_prefetch = 0 : i64, scratch_operands = 0 : i64, tpu.core_type = #tpu.core_type<tc>} {
    %c0 = arith.constant 0 : index
    %c0_0 = arith.constant 0 : index
    %0 = vector.load %arg0[%c0, %c0_0] : memref<2x1024xf32, #tpu.memory_space<vmem>>, vector<2x1024xf32>
    %c0_1 = arith.constant 0 : index
    %c0_2 = arith.constant 0 : index
    %1 = vector.load %arg2[%c0_1, %c0_2] : memref<1024x256xbf16, #tpu.memory_space<vmem>>, vector<1024x256xbf16>
    %c0_3 = arith.constant 0 : index
    %c0_4 = arith.constant 0 : index
    %2 = vector.load %arg3[%c0_3, %c0_4] : memref<1x256xf32, #tpu.memory_space<vmem>>, vector<1x256xf32>
    %3 = arith.truncf %0 : vector<2x1024xf32> to vector<2x1024xbf16>
    %cst = arith.constant dense<0.000000e+00> : vector<2x256xf32>
    %4 = tpu.matmul %3, %1, %cst {dimension_numbers = #tpu.dot_dimension_numbers<[1], [0], [0], [1], [0, 0, 1, 1], [], []>} : vector<2x1024xbf16>, vector<1024x256xbf16>, vector<2x256xf32> -> vector<2x256xf32>
    %5 = vector.broadcast %2 : vector<1x256xf32> to vector<2x256xf32>
    %6 = arith.addf %4, %5 : vector<2x256xf32>
    %cst_5 = arith.constant 0.000000e+00 : f32
    %7 = vector.broadcast %cst_5 : f32 to vector<2x256xf32>
    %8 = arith.maximumf %6, %7 : vector<2x256xf32>
    %c0_6 = arith.constant 0 : index
    %c0_7 = arith.constant 0 : index
    %9 = vector.load %arg4[%c0_6, %c0_7] : memref<256x256xbf16, #tpu.memory_space<vmem>>, vector<256x256xbf16>
    %c0_8 = arith.constant 0 : index
    %c0_9 = arith.constant 0 : index
    %10 = vector.load %arg5[%c0_8, %c0_9] : memref<1x256xf32, #tpu.memory_space<vmem>>, vector<1x256xf32>
    %11 = arith.truncf %8 : vector<2x256xf32> to vector<2x256xbf16>
    %cst_10 = arith.constant dense<0.000000e+00> : vector<2x256xf32>
    %12 = tpu.matmul %11, %9, %cst_10 {dimension_numbers = #tpu.dot_dimension_numbers<[1], [0], [0], [1], [0, 0, 1, 1], [], []>} : vector<2x256xbf16>, vector<256x256xbf16>, vector<2x256xf32> -> vector<2x256xf32>
    %13 = vector.broadcast %10 : vector<1x256xf32> to vector<2x256xf32>
    %14 = arith.addf %12, %13 : vector<2x256xf32>
    %cst_11 = arith.constant 0.000000e+00 : f32
    %15 = vector.broadcast %cst_11 : f32 to vector<2x256xf32>
    %16 = arith.maximumf %14, %15 : vector<2x256xf32>
    %c0_12 = arith.constant 0 : index
    %c0_13 = arith.constant 0 : index
    %17 = vector.load %arg6[%c0_12, %c0_13] : memref<256x64xbf16, #tpu.memory_space<vmem>>, vector<256x64xbf16>
    %c0_14 = arith.constant 0 : index
    %c0_15 = arith.constant 0 : index
    %18 = vector.load %arg7[%c0_14, %c0_15] : memref<1x64xf32, #tpu.memory_space<vmem>>, vector<1x64xf32>
    %19 = arith.truncf %16 : vector<2x256xf32> to vector<2x256xbf16>
    %cst_16 = arith.constant dense<0.000000e+00> : vector<2x64xf32>
    %20 = tpu.matmul %19, %17, %cst_16 {dimension_numbers = #tpu.dot_dimension_numbers<[1], [0], [0], [1], [0, 0, 1, 1], [], []>} : vector<2x256xbf16>, vector<256x64xbf16>, vector<2x64xf32> -> vector<2x64xf32>
    %21 = vector.broadcast %18 : vector<1x64xf32> to vector<2x64xf32>
    %22 = arith.addf %20, %21 : vector<2x64xf32>
    %cst_17 = arith.constant 0.000000e+00 : f32
    %23 = vector.broadcast %cst_17 : f32 to vector<2x64xf32>
    %24 = arith.maximumf %22, %23 : vector<2x64xf32>
    %c0_18 = arith.constant 0 : index
    %c0_19 = arith.constant 0 : index
    %25 = vector.load %arg1[%c0_18, %c0_19] : memref<2x3xf32, #tpu.memory_space<vmem>>, vector<2x3xf32>
    %c0_20 = arith.constant 0 : index
    %c0_21 = arith.constant 0 : index
    %26 = vector.load %arg8[%c0_20, %c0_21] : memref<3x16xbf16, #tpu.memory_space<vmem>>, vector<3x16xbf16>
    %c0_22 = arith.constant 0 : index
    %c0_23 = arith.constant 0 : index
    %27 = vector.load %arg9[%c0_22, %c0_23] : memref<1x16xf32, #tpu.memory_space<vmem>>, vector<1x16xf32>
    %28 = arith.truncf %25 : vector<2x3xf32> to vector<2x3xbf16>
    %cst_24 = arith.constant dense<0.000000e+00> : vector<2x16xf32>
    %29 = tpu.matmul %28, %26, %cst_24 {dimension_numbers = #tpu.dot_dimension_numbers<[1], [0], [0], [1], [0, 0, 1, 1], [], []>} : vector<2x3xbf16>, vector<3x16xbf16>, vector<2x16xf32> -> vector<2x16xf32>
    %30 = vector.broadcast %27 : vector<1x16xf32> to vector<2x16xf32>
    %31 = arith.addf %29, %30 : vector<2x16xf32>
    %cst_25 = arith.constant 0.000000e+00 : f32
    %32 = vector.broadcast %cst_25 : f32 to vector<2x16xf32>
    %33 = arith.maximumf %31, %32 : vector<2x16xf32>
    %c0_26 = arith.constant 0 : index
    %c0_27 = arith.constant 0 : index
    %34 = vector.load %arg10[%c0_26, %c0_27] : memref<16x32xbf16, #tpu.memory_space<vmem>>, vector<16x32xbf16>
    %c0_28 = arith.constant 0 : index
    %c0_29 = arith.constant 0 : index
    %35 = vector.load %arg11[%c0_28, %c0_29] : memref<1x32xf32, #tpu.memory_space<vmem>>, vector<1x32xf32>
    %36 = arith.truncf %33 : vector<2x16xf32> to vector<2x16xbf16>
    %cst_30 = arith.constant dense<0.000000e+00> : vector<2x32xf32>
    %37 = tpu.matmul %36, %34, %cst_30 {dimension_numbers = #tpu.dot_dimension_numbers<[1], [0], [0], [1], [0, 0, 1, 1], [], []>} : vector<2x16xbf16>, vector<16x32xbf16>, vector<2x32xf32> -> vector<2x32xf32>
    %38 = vector.broadcast %35 : vector<1x32xf32> to vector<2x32xf32>
    %39 = arith.addf %37, %38 : vector<2x32xf32>
    %cst_31 = arith.constant 0.000000e+00 : f32
    %40 = vector.broadcast %cst_31 : f32 to vector<2x32xf32>
    %41 = arith.maximumf %39, %40 : vector<2x32xf32>
    %c0_32 = arith.constant 0 : index
    %c0_33 = arith.constant 0 : index
    %42 = vector.load %arg12[%c0_32, %c0_33] : memref<32x64xbf16, #tpu.memory_space<vmem>>, vector<32x64xbf16>
    %c0_34 = arith.constant 0 : index
    %c0_35 = arith.constant 0 : index
    %43 = vector.load %arg13[%c0_34, %c0_35] : memref<1x64xf32, #tpu.memory_space<vmem>>, vector<1x64xf32>
    %44 = arith.truncf %41 : vector<2x32xf32> to vector<2x32xbf16>
    %cst_36 = arith.constant dense<0.000000e+00> : vector<2x64xf32>
    %45 = tpu.matmul %44, %42, %cst_36 {dimension_numbers = #tpu.dot_dimension_numbers<[1], [0], [0], [1], [0, 0, 1, 1], [], []>} : vector<2x32xbf16>, vector<32x64xbf16>, vector<2x64xf32> -> vector<2x64xf32>
    %46 = vector.broadcast %43 : vector<1x64xf32> to vector<2x64xf32>
    %47 = arith.addf %45, %46 : vector<2x64xf32>
    %cst_37 = arith.constant 0.000000e+00 : f32
    %48 = vector.broadcast %cst_37 : f32 to vector<2x64xf32>
    %49 = arith.maximumf %47, %48 : vector<2x64xf32>
    %50 = arith.addf %49, %24 : vector<2x64xf32>
    %c0_38 = arith.constant 0 : index
    %c0_39 = arith.constant 0 : index
    %51 = vector.load %arg14[%c0_38, %c0_39] : memref<64x128xbf16, #tpu.memory_space<vmem>>, vector<64x128xbf16>
    %c0_40 = arith.constant 0 : index
    %c0_41 = arith.constant 0 : index
    %52 = vector.load %arg15[%c0_40, %c0_41] : memref<1x128xf32, #tpu.memory_space<vmem>>, vector<1x128xf32>
    %53 = arith.truncf %50 : vector<2x64xf32> to vector<2x64xbf16>
    %cst_42 = arith.constant dense<0.000000e+00> : vector<2x128xf32>
    %54 = tpu.matmul %53, %51, %cst_42 {dimension_numbers = #tpu.dot_dimension_numbers<[1], [0], [0], [1], [0, 0, 1, 1], [], []>} : vector<2x64xbf16>, vector<64x128xbf16>, vector<2x128xf32> -> vector<2x128xf32>
    %55 = vector.broadcast %52 : vector<1x128xf32> to vector<2x128xf32>
    %56 = arith.addf %54, %55 : vector<2x128xf32>
    %cst_43 = arith.constant 0.000000e+00 : f32
    %57 = vector.broadcast %cst_43 : f32 to vector<2x128xf32>
    %58 = arith.maximumf %56, %57 : vector<2x128xf32>
    %c0_44 = arith.constant 0 : index
    %c0_45 = arith.constant 0 : index
    %59 = vector.load %arg16[%c0_44, %c0_45] : memref<128x256xbf16, #tpu.memory_space<vmem>>, vector<128x256xbf16>
    %c0_46 = arith.constant 0 : index
    %c0_47 = arith.constant 0 : index
    %60 = vector.load %arg17[%c0_46, %c0_47] : memref<1x256xf32, #tpu.memory_space<vmem>>, vector<1x256xf32>
    %61 = arith.truncf %58 : vector<2x128xf32> to vector<2x128xbf16>
    %cst_48 = arith.constant dense<0.000000e+00> : vector<2x256xf32>
    %62 = tpu.matmul %61, %59, %cst_48 {dimension_numbers = #tpu.dot_dimension_numbers<[1], [0], [0], [1], [0, 0, 1, 1], [], []>} : vector<2x128xbf16>, vector<128x256xbf16>, vector<2x256xf32> -> vector<2x256xf32>
    %63 = vector.broadcast %60 : vector<1x256xf32> to vector<2x256xf32>
    %64 = arith.addf %62, %63 : vector<2x256xf32>
    %cst_49 = arith.constant 0.000000e+00 : f32
    %65 = vector.broadcast %cst_49 : f32 to vector<2x256xf32>
    %66 = arith.maximumf %64, %65 : vector<2x256xf32>
    %c0_50 = arith.constant 0 : index
    %c0_51 = arith.constant 0 : index
    %67 = vector.load %arg18[%c0_50, %c0_51] : memref<256x256xbf16, #tpu.memory_space<vmem>>, vector<256x256xbf16>
    %c0_52 = arith.constant 0 : index
    %c0_53 = arith.constant 0 : index
    %68 = vector.load %arg19[%c0_52, %c0_53] : memref<1x256xf32, #tpu.memory_space<vmem>>, vector<1x256xf32>
    %69 = arith.truncf %66 : vector<2x256xf32> to vector<2x256xbf16>
    %cst_54 = arith.constant dense<0.000000e+00> : vector<2x256xf32>
    %70 = tpu.matmul %69, %67, %cst_54 {dimension_numbers = #tpu.dot_dimension_numbers<[1], [0], [0], [1], [0, 0, 1, 1], [], []>} : vector<2x256xbf16>, vector<256x256xbf16>, vector<2x256xf32> -> vector<2x256xf32>
    %71 = vector.broadcast %68 : vector<1x256xf32> to vector<2x256xf32>
    %72 = arith.addf %70, %71 : vector<2x256xf32>
    %cst_55 = arith.constant 0.000000e+00 : f32
    %73 = vector.broadcast %cst_55 : f32 to vector<2x256xf32>
    %74 = arith.maximumf %72, %73 : vector<2x256xf32>
    %c0_56 = arith.constant 0 : index
    %c0_57 = arith.constant 0 : index
    %75 = vector.load %arg20[%c0_56, %c0_57] : memref<256x16xbf16, #tpu.memory_space<vmem>>, vector<256x16xbf16>
    %c0_58 = arith.constant 0 : index
    %c0_59 = arith.constant 0 : index
    %76 = vector.load %arg21[%c0_58, %c0_59] : memref<1x16xf32, #tpu.memory_space<vmem>>, vector<1x16xf32>
    %77 = arith.truncf %74 : vector<2x256xf32> to vector<2x256xbf16>
    %cst_60 = arith.constant dense<0.000000e+00> : vector<2x16xf32>
    %78 = tpu.matmul %77, %75, %cst_60 {dimension_numbers = #tpu.dot_dimension_numbers<[1], [0], [0], [1], [0, 0, 1, 1], [], []>} : vector<2x256xbf16>, vector<256x16xbf16>, vector<2x16xf32> -> vector<2x16xf32>
    %79 = vector.broadcast %76 : vector<1x16xf32> to vector<2x16xf32>
    %80 = arith.addf %78, %79 : vector<2x16xf32>
    %cst_61 = arith.constant 0.000000e+00 : f32
    %81 = vector.broadcast %cst_61 : f32 to vector<2x16xf32>
    %82 = arith.maximumf %80, %81 : vector<2x16xf32>
    %c0_62 = arith.constant 0 : index
    %c0_63 = arith.constant 0 : index
    %83 = vector.load %arg22[%c0_62, %c0_63] : memref<16x1xbf16, #tpu.memory_space<vmem>>, vector<16x1xbf16>
    %c0_64 = arith.constant 0 : index
    %c0_65 = arith.constant 0 : index
    %84 = vector.load %arg23[%c0_64, %c0_65] : memref<1x1xf32, #tpu.memory_space<vmem>>, vector<1x1xf32>
    %85 = arith.truncf %82 : vector<2x16xf32> to vector<2x16xbf16>
    %cst_66 = arith.constant dense<0.000000e+00> : vector<2x1xf32>
    %86 = tpu.matmul %85, %83, %cst_66 {dimension_numbers = #tpu.dot_dimension_numbers<[1], [0], [0], [1], [0, 0, 1, 1], [], []>} : vector<2x16xbf16>, vector<16x1xbf16>, vector<2x1xf32> -> vector<2x1xf32>
    %87 = vector.broadcast %84 : vector<1x1xf32> to vector<2x1xf32>
    %88 = arith.addf %86, %87 : vector<2x1xf32>
    %89 = arith.negf %88 : vector<2x1xf32>
    %90 = math.exp %89 : vector<2x1xf32>
    %cst_67 = arith.constant 1.000000e+00 : f32
    %91 = vector.broadcast %cst_67 : f32 to vector<2x1xf32>
    %92 = arith.addf %91, %90 : vector<2x1xf32>
    %93 = arith.divf %91, %92 : vector<2x1xf32>
    %c0_68 = arith.constant 0 : index
    %c0_69 = arith.constant 0 : index
    %94 = vector.load %arg24[%c0_68, %c0_69] : memref<2x1xf32, #tpu.memory_space<vmem>>, vector<2x1xf32>
    tpu.vector_store %arg24[%c0_68, %c0_69], %93 {strides = array<i32>} : memref<2x1xf32, #tpu.memory_space<vmem>>, vector<2x1xf32>,
    return
  }
}

</mosaic_0001>

<llo_original>
// kernel: qnetwork_forward.4
$region0: #{qnetwork_forward.4}
  #allocation0 [shape = 'u32[]', space=smem, size = 0x4, offset = 0x4, fixed_abs, tag = 'smem constant byte address 0x4 - core index']
  #allocation1 [shape = 'u32[144,128]{1,0:T(1,128)}', space=vmem, size = 0x12000, scoped, tag = 'internal scratch']
  %s0 = inlined_call_operand.vmem [shape: f32[512,27], index: 0, kind: input, shape index: {}]
  %s1 = inlined_call_operand.vmem [shape: bf16[27,32], index: 1, kind: input, shape index: {}]
  %s2 = inlined_call_operand.vmem [shape: f32[1,32], index: 2, kind: input, shape index: {}]
  %s3 = inlined_call_operand.vmem [shape: f32[1,32], index: 3, kind: input, shape index: {}]
  %s4 = inlined_call_operand.vmem [shape: f32[1,32], index: 4, kind: input, shape index: {}]
  %s5 = inlined_call_operand.vmem [shape: f32[512,32], index: 5, kind: output, shape index: {}]
  %s6 = sld [smem:[#allocation0]]
  $region53: #{qnetwork_forward.4} parent=0
    _
  %s8 = ssub.s32 1, %s6
  %s9 = scalar_select 0, %s8, %s6
  loop: start=0, step=1, limit=4
  $region2: #{qnetwork_forward.4} parent=0 // loop_pre_header
    _
  $region3: #{qnetwork_forward.4} parent=0 // loop_header
    %s11 = sphi 0, %s15
    %p12 = scmp.ge.s32.totalorder %s11, 4
    %s21 = sphi 0, %s23
    %s24 = sphi 0, %s21
    %s25 = sphi 0, %s24
    %s41 = sphi 0, %s25
    %s45 = sphi 0, %s45
    %s47 = sphi 0, %s45
    %s48 = sphi 0, %s47
    %s62 = sphi 0, %s48
    %s66 = sphi 0, %s66
    %s68 = sphi 0, %s66
    %s69 = sphi 0, %s68
    %s83 = sphi 0, %s69
    %s87 = sphi 0, %s87
    %s89 = sphi 0, %s87
    %s90 = sphi 0, %s89
    %s104 = sphi 0, %s90
    %s108 = sphi 0, %s108
    %s110 = sphi 0, %s108
    %s111 = sphi 0, %s110
    %s125 = sphi 0, %s111
    %s131 = sphi 0, %s133
    %s134 = sphi 0, %s131
    %s135 = sphi 0, %s134
    %s151 = sphi 0, %s135
  $region4: #{qnetwork_forward.4} parent=0 // loop_header_branch
    %14 = sbr.rel (%p12) target = $region8
  $region5: #{qnetwork_forward.4} parent=0 // loop_body
    %s16 = ssub.s32 %s11, 1
    %s17 = ssub.s32 %s11, 2
    %s18 = sadd.s32 %s11, 1
    %s19 = ssub.s32 %s11, %s18
    %p20 = scmp.eq.s32.totalorder %s19, 0
    %s22 = sadd.s32 %s21, 1
    %s23 = scalar_select %p20, %s21, %s22
    %p26 = pneg %p20
    %p27 = scmp.eq.s32.totalorder %s11, 1
    %p28 = por %p26, %p27
    %p29 = scmp.ne.s32.totalorder %s21, %s24
    %p30 = scmp.eq.s32.totalorder %s11, 0
    %p31 = por %p29, %p30
    %p32 = scmp.ne.s32.totalorder %s21, %s24
    %p33 = scmp.eq.s32.totalorder %s16, 1
    %p34 = por %p32, %p33
    %p35 = scmp.ne.s32.totalorder %s24, %s25
    %p36 = scmp.eq.s32.totalorder %s16, 0
    %p37 = por %p35, %p36
    %p38 = scmp.ne.s32.totalorder %s24, %s25
    %p39 = scmp.eq.s32.totalorder %s17, 1
    %p40 = por %p38, %p39
    %p42 = scmp.ne.s32.totalorder %s25, %s41
    %p43 = scmp.eq.s32.totalorder %s17, 0
    %p44 = por %p42, %p43
    %s46 = sadd.s32 %s45, 1
    %p49 = scmp.eq.s32.totalorder %s11, 1
    %p50 = scmp.ne.s32.totalorder %s45, %s47
    %p51 = scmp.eq.s32.totalorder %s11, 0
    %p52 = por %p50, %p51
    %p53 = scmp.ne.s32.totalorder %s45, %s47
    %p54 = scmp.eq.s32.totalorder %s16, 1
    %p55 = por %p53, %p54
    %p56 = scmp.ne.s32.totalorder %s47, %s48
    %p57 = scmp.eq.s32.totalorder %s16, 0
    %p58 = por %p56, %p57
    %p59 = scmp.ne.s32.totalorder %s47, %s48
    %p60 = scmp.eq.s32.totalorder %s17, 1
    %p61 = por %p59, %p60
    %p63 = scmp.ne.s32.totalorder %s48, %s62
    %p64 = scmp.eq.s32.totalorder %s17, 0
    %p65 = por %p63, %p64
    %s67 = sadd.s32 %s66, 1
    %p70 = scmp.eq.s32.totalorder %s11, 1
    %p71 = scmp.ne.s32.totalorder %s66, %s68
    %p72 = scmp.eq.s32.totalorder %s11, 0
    %p73 = por %p71, %p72
    %p74 = scmp.ne.s32.totalorder %s66, %s68
    %p75 = scmp.eq.s32.totalorder %s16, 1
    %p76 = por %p74, %p75
    %p77 = scmp.ne.s32.totalorder %s68, %s69
    %p78 = scmp.eq.s32.totalorder %s16, 0
    %p79 = por %p77, %p78
    %p80 = scmp.ne.s32.totalorder %s68, %s69
    %p81 = scmp.eq.s32.totalorder %s17, 1
    %p82 = por %p80, %p81
    %p84 = scmp.ne.s32.totalorder %s69, %s83
    %p85 = scmp.eq.s32.totalorder %s17, 0
    %p86 = por %p84, %p85
    %s88 = sadd.s32 %s87, 1
    %p91 = scmp.eq.s32.totalorder %s11, 1
    %p92 = scmp.ne.s32.totalorder %s87, %s89
    %p93 = scmp.eq.s32.totalorder %s11, 0
    %p94 = por %p92, %p93
    %p95 = scmp.ne.s32.totalorder %s87, %s89
    %p96 = scmp.eq.s32.totalorder %s16, 1
    %p97 = por %p95, %p96
    %p98 = scmp.ne.s32.totalorder %s89, %s90
    %p99 = scmp.eq.s32.totalorder %s16, 0
    %p100 = por %p98, %p99
    %p101 = scmp.ne.s32.totalorder %s89, %s90
    %p102 = scmp.eq.s32.totalorder %s17, 1
    %p103 = por %p101, %p102
    %p105 = scmp.ne.s32.totalorder %s90, %s104
    %p106 = scmp.eq.s32.totalorder %s17, 0
    %p107 = por %p105, %p106
    %s109 = sadd.s32 %s108, 1
    %p112 = scmp.eq.s32.totalorder %s11, 1
    %p113 = scmp.ne.s32.totalorder %s108, %s110
    %p114 = scmp.eq.s32.totalorder %s11, 0
    %p115 = por %p113, %p114
    %p116 = scmp.ne.s32.totalorder %s108, %s110
    %p117 = scmp.eq.s32.totalorder %s16, 1
    %p118 = por %p116, %p117
    %p119 = scmp.ne.s32.totalorder %s110, %s111
    %p120 = scmp.eq.s32.totalorder %s16, 0
    %p121 = por %p119, %p120
    %p122 = scmp.ne.s32.totalorder %s110, %s111
    %p123 = scmp.eq.s32.totalorder %s17, 1
    %p124 = por %p122, %p123
    %p126 = scmp.ne.s32.totalorder %s111, %s125
    %p127 = scmp.eq.s32.totalorder %s17, 0
    %p128 = por %p126, %p127
    %s129 = ssub.s32 %s11, %s18
    %p130 = scmp.eq.s32.totalorder %s129, 0
    %s132 = sadd.s32 %s131, 1
    %s133 = scalar_select %p130, %s131, %s132
    %p136 = pneg %p130
    %p137 = scmp.eq.s32.totalorder %s11, 1
    %p138 = por %p136, %p137
    %p139 = scmp.ne.s32.totalorder %s131, %s134
    %p140 = scmp.eq.s32.totalorder %s11, 0
    %p141 = por %p139, %p140
    %p142 = scmp.ne.s32.totalorder %s131, %s134
    %p143 = scmp.eq.s32.totalorder %s16, 1
    %p144 = por %p142, %p143
    %p145 = scmp.ne.s32.totalorder %s134, %s135
    %p146 = scmp.eq.s32.totalorder %s16, 0
    %p147 = por %p145, %p146
    %p148 = scmp.ne.s32.totalorder %s134, %s135
    %p149 = scmp.eq.s32.totalorder %s17, 1
    %p150 = por %p148, %p149
    %p152 = scmp.ne.s32.totalorder %s135, %s151
    %p153 = scmp.eq.s32.totalorder %s17, 0
    %p154 = por %p152, %p153
    %p155 = scmp.le.s32.totalorder 1, %s11
    %p156 = scmp.lt.s32.totalorder %s11, 3
    %p157 = pnand %p155, %p156
    %p158 = pneg %p157
    // Predicated region
    $region9: #{qnetwork_forward.4} parent=5 // pred_check
      _
    $region10: #{qnetwork_forward.4} parent=5 // pred_check_branch
      %160 = sbr.rel (%p157) target = $region12
    $region11: #{qnetwork_forward.4} parent=5 // pred_region
      %s161 = ssub.s32 %s11, 1
      // Predicated region
      $region13: #{qnetwork_forward.4} parent=11 // pred_check
        %p162 = pneg %p58
      $region14: #{qnetwork_forward.4} parent=11 // pred_check_branch
        %164 = sbr.rel (%p162) target = $region16
      $region15: #{qnetwork_forward.4} parent=11 // pred_region
        _
      $region16: #{qnetwork_forward.4} parent=11 // pred_fallthru
        _
      // Predicated region
      $region17: #{qnetwork_forward.4} parent=11 // pred_check
        %p165 = pneg %p79
      $region18: #{qnetwork_forward.4} parent=11 // pred_check_branch
        %167 = sbr.rel (%p165) target = $region20
      $region19: #{qnetwork_forward.4} parent=11 // pred_region
        _
      $region20: #{qnetwork_forward.4} parent=11 // pred_fallthru
        _
      // Predicated region
      $region21: #{qnetwork_forward.4} parent=11 // pred_check
        %p168 = pneg %p100
      $region22: #{qnetwork_forward.4} parent=11 // pred_check_branch
        %170 = sbr.rel (%p168) target = $region24
      $region23: #{qnetwork_forward.4} parent=11 // pred_region
        _
      $region24: #{qnetwork_forward.4} parent=11 // pred_fallthru
        _
      // Predicated region
      $region25: #{qnetwork_forward.4} parent=11 // pred_check
        %p171 = pneg %p121
      $region26: #{qnetwork_forward.4} parent=11 // pred_check_branch
        %173 = sbr.rel (%p171) target = $region28
      $region27: #{qnetwork_forward.4} parent=11 // pred_region
        _
      $region28: #{qnetwork_forward.4} parent=11 // pred_fallthru
        _
    $region12: #{qnetwork_forward.4} parent=5 // pred_fallthru
      _
    %p174 = scmp.lt.s32.totalorder %s11, 2
    // Predicated region
    $region29: #{qnetwork_forward.4} parent=5 // pred_check
      %p175 = pneg %p174
    $region30: #{qnetwork_forward.4} parent=5 // pred_check_branch
      %177 = sbr.rel (%p175) target = $region32
    $region31: #{qnetwork_forward.4} parent=5 // pred_region
      // Predicated region
      $region33: #{qnetwork_forward.4} parent=31 // pred_check
        %p178 = pneg %p31
      $region34: #{qnetwork_forward.4} parent=31 // pred_check_branch
        %180 = sbr.rel (%p178) target = $region36
      $region35: #{qnetwork_forward.4} parent=31 // pred_region
        %s181 = smul.u32 32, %s11
        %p182 = scmp.lt.s32.totalorder %s181, 63
        %s183 = scalar_select %p182, %s181, 63
        %s184 = smul.addr %s183, 8
        %s185 = scalar_lea.vmem %s0, %s184
        %s186 = smul.u32 32, %s11
      $region36: #{qnetwork_forward.4} parent=31 // pred_fallthru
        _
    $region32: #{qnetwork_forward.4} parent=5 // pred_fallthru
      _
    %p187 = scmp.le.s32.totalorder 1, %s11
    %p188 = scmp.lt.s32.totalorder %s11, 3
    %p189 = pnand %p187, %p188
    %p190 = pneg %p189
    // Predicated region
    $region37: #{qnetwork_forward.4} parent=5 // pred_check
      _
    $region38: #{qnetwork_forward.4} parent=5 // pred_check_branch
      %192 = sbr.rel (%p189) target = $region40
    $region39: #{qnetwork_forward.4} parent=5 // pred_region
      %s193 = ssub.s32 %s11, 1
      %s194 = smul.u32 32, %s16
      %p195 = scmp.lt.s32.totalorder %s194, 63
      %s196 = scalar_select %p195, %s194, 63
      %s197 = smul.addr %s196, 8
      %s198 = scalar_lea.vmem %s0, %s197
      %p199 = pneg %p37
      %p200 = pneg %p34
      %p201 = pneg %p58
      %p202 = pneg %p55
      %p203 = pneg %p79
      %p204 = pneg %p76
      %p205 = pneg %p100
      %p206 = pneg %p97
      %p207 = pneg %p121
      %p208 = pneg %p118
      %p209 = pneg %p147
      %p210 = pneg %p144
      %s211 = smul.u32 32, %s16
      %p212 = scmp.lt.s32.totalorder %s211, 63
      %s213 = scalar_select %p212, %s211, 63
      %s214 = smul.addr %s213, 8
      %s215 = scalar_lea.vmem %s5, %s214
      %s216 = smul.u32 32, %s16
      %p217 = scmp.lt.s32.totalorder %s216, 63
      %s218 = scalar_select %p217, %s216, 63
      %s219 = smul.addr %s218, 8
      %s220 = scalar_lea.vmem %s0, %s219
      %s221 = smul.u32 32, %s16
      %s222 = smul.u32 32, %s16
      %p223 = scmp.lt.s32.totalorder %s222, 63
      %s224 = scalar_select %p223, %s222, 63
      %s225 = smul.addr %s224, 8
      %s226 = scalar_lea.vmem %s5, %s225
      %s227 = smul.u32 32, %s16
      %v229 = vld [vmem:[%s220] sm:$0xff]
      %v230 = vld [vmem:[%s220 + $0x8] sm:$0xff]
      %v231 = vld [vmem:[%s220 + $0x10] sm:$0xff]
      %v232 = vld [vmem:[%s220 + $0x18] sm:$0xff]
      %v233 = vld [vmem:[%s220 + $0x20] sm:$0xff]
      %v234 = vld [vmem:[%s220 + $0x28] sm:$0xff]
      %v235 = vld [vmem:[%s220 + $0x30] sm:$0xff]
      %v236 = vld [vmem:[%s220 + $0x38] sm:$0xff]
      %v237 = vld [vmem:[%s220 + $0x40] sm:$0xff]
      %v238 = vld [vmem:[%s220 + $0x48] sm:$0xff]
      %v239 = vld [vmem:[%s220 + $0x50] sm:$0xff]
      %v240 = vld [vmem:[%s220 + $0x58] sm:$0xff]
      %v241 = vld [vmem:[%s220 + $0x60] sm:$0xff]
      %v242 = vld [vmem:[%s220 + $0x68] sm:$0xff]
      %v243 = vld [vmem:[%s220 + $0x70] sm:$0xff]
      %v244 = vld [vmem:[%s220 + $0x78] sm:$0xff]
      %v245 = vld [vmem:[%s220 + $0x80] sm:$0xff]
      %v246 = vld [vmem:[%s220 + $0x88] sm:$0xff]
      %v247 = vld [vmem:[%s220 + $0x90] sm:$0xff]
      %v248 = vld [vmem:[%s220 + $0x98] sm:$0xff]
      %v249 = vld [vmem:[%s220 + $0xa0] sm:$0xff]
      %v250 = vld [vmem:[%s220 + $0xa8] sm:$0xff]
      %v251 = vld [vmem:[%s220 + $0xb0] sm:$0xff]
      %v252 = vld [vmem:[%s220 + $0xb8] sm:$0xff]
      %v253 = vld [vmem:[%s220 + $0xc0] sm:$0xff]
      %v254 = vld [vmem:[%s220 + $0xc8] sm:$0xff]
      %v255 = vld [vmem:[%s220 + $0xd0] sm:$0xff]
      %v256 = vld [vmem:[%s220 + $0xd8] sm:$0xff]
      %v257 = vld [vmem:[%s220 + $0xe0] sm:$0xff]
      %v258 = vld [vmem:[%s220 + $0xe8] sm:$0xff]
      %v259 = vld [vmem:[%s220 + $0xf0] sm:$0xff]
      %v260 = vld [vmem:[%s220 + $0xf8] sm:$0xff]
      %v261 = vpack.c.bf16 %v230, %v229
      %v262 = vpack.c.bf16 %v232, %v231
      %v263 = vpack.c.bf16 %v234, %v233
      %v264 = vpack.c.bf16 %v236, %v235
      %v265 = vpack.c.bf16 %v238, %v237
      %v266 = vpack.c.bf16 %v240, %v239
      %v267 = vpack.c.bf16 %v242, %v241
      %v268 = vpack.c.bf16 %v244, %v243
      %v269 = vpack.c.bf16 %v246, %v245
      %v270 = vpack.c.bf16 %v248, %v247
      %v271 = vpack.c.bf16 %v250, %v249
      %v272 = vpack.c.bf16 %v252, %v251
      %v273 = vpack.c.bf16 %v254, %v253
      %v274 = vpack.c.bf16 %v256, %v255
      %v275 = vpack.c.bf16 %v258, %v257
      %v276 = vpack.c.bf16 %v260, %v259
      %v277 = vld [vmem:[%s1] sm:$0xf]
      %v278 = vld [vmem:[%s1 + $0x4] sm:$0xf]
      %v279 = vld [vmem:[%s1 + $0x8] sm:$0xf]
      %v280 = vld [vmem:[%s1 + $0xc] sm:$0x3]
      %v281 = vld [vmem:[%s2] sm:$0x1]
      %v283 = vlaneseq
      %v284 = vshrl.u32 %v283, 7
      %v285 = vsub.s32 0, %v284
      %v286 = vrot.slane %v281, %v285
      %v292 = vunpack.c.l.b16 %v277
      %v293 = vunpack.c.l.b16 %v278
      %v294 = vunpack.c.l.b16 %v279
      %v295 = vunpack.c.l.b16 %v280
      %v296 = vpack.c.b16 %v293, %v292
      %v297 = vpack.c.b16 %v295, %v294
      %vm299 = vcmask 220160
      %v301 = vsel %vm299, %v261, 0
      %v304 = vsel %vm299, %v262, 0
      %v307 = vsel %vm299, %v263, 0
      %v310 = vsel %vm299, %v264, 0
      %v313 = vsel %vm299, %v265, 0
      %v316 = vsel %vm299, %v266, 0
      %v319 = vsel %vm299, %v267, 0
      %v322 = vsel %vm299, %v268, 0
      %v325 = vsel %vm299, %v269, 0
      %v328 = vsel %vm299, %v270, 0
      %v331 = vsel %vm299, %v271, 0
      %v334 = vsel %vm299, %v272, 0
      %v337 = vsel %vm299, %v273, 0
      %v340 = vsel %vm299, %v274, 0
      %v343 = vsel %vm299, %v275, 0
      %v346 = vsel %vm299, %v276, 0
      %vm348 = vcmask 1044480
      %vm349 = vcmask 1045504
      %v350 = vsel %vm348, 4294967295, 65535
      %v351 = vsel %vm349, %v350, 0
      %v353 = vand.u32 %v297, %v351
      %355 = vmatprep.subr.bf16.mxu0 0
      %356 = vmatpush1.bf16.msra.mxu0 0
      %357 = vmatprep.subr.bf16.mxu0 0
      %358 = vmatpush1.bf16.msra.mxu0 0
      %359 = vmatprep.subr.bf16.mxu0 0
      %360 = vmatpush1.bf16.msra.mxu0 0
      %361 = vmatprep.subr.bf16.mxu0 0
      %362 = vmatpush1.bf16.msra.mxu0 0
      %363 = vmatprep.subr.bf16.mxu0 0
      %364 = vmatpush1.bf16.msra.mxu0 0
      %365 = vmatprep.subr.bf16.mxu0 0
      %366 = vmatpush1.bf16.msra.mxu0 0
      %367 = vmatprep.subr.bf16.mxu0 0
      %368 = vmatpush1.bf16.msra.mxu0 %v353
      %369 = vmatprep.subr.bf16.mxu0 0
      %370 = vmatpush1.bf16.msra.mxu0 %v296
      %371 = vmatprep.subr.bf16.mxu0 0
      %372 = vmatpush2.bf16.msra.mxu0 0
      %373 = vmatprep.subr.bf16.mxu0 0
      %374 = vmatpush2.bf16.msra.mxu0 0
      %375 = vmatprep.subr.bf16.mxu0 0
      %376 = vmatpush2.bf16.msra.mxu0 0
      %377 = vmatprep.subr.bf16.mxu0 0
      %378 = vmatpush2.bf16.msra.mxu0 0
      %379 = vmatprep.subr.bf16.mxu0 0
      %380 = vmatpush2.bf16.msra.mxu0 0
      %381 = vmatprep.subr.bf16.mxu0 0
      %382 = vmatpush2.bf16.msra.mxu0 0
      %383 = vmatprep.subr.bf16.mxu0 0
      %384 = vmatpush2.bf16.msra.mxu0 0
      %385 = vmatprep.subr.bf16.mxu0 0
      %386 = vmatpush2.bf16.msra.mxu0 0
      %387 = vmatprep.mubr.bf16.mxu0 0
      %388 = vmatmul.mubr.bf16.gmra.mxu0 %v301
      %v389 = vpop.f32.mrf.mxu0
      %v390 = vadd.f32 %v286, %v389
      %v391 = vpop.f32.mrf.mxu0
      %v392 = vpop.f32.mrf.mxu0
      %v393 = vadd.f32 %v286, %v392
      %v394 = vpop.f32.mrf.mxu0
      %395 = vmatprep.mubr.bf16.mxu0 0
      %396 = vmatmul.mubr.bf16.gmra.mxu0 %v304
      %v397 = vpop.f32.mrf.mxu0
      %v398 = vadd.f32 %v286, %v397
      %v399 = vpop.f32.mrf.mxu0
      %v400 = vpop.f32.mrf.mxu0
      %v401 = vadd.f32 %v286, %v400
      %v402 = vpop.f32.mrf.mxu0
      %403 = vmatprep.mubr.bf16.mxu0 0
      %404 = vmatmul.mubr.bf16.gmra.mxu0 %v307
      %v405 = vpop.f32.mrf.mxu0
      %v406 = vadd.f32 %v286, %v405
      %v407 = vpop.f32.mrf.mxu0
      %v408 = vpop.f32.mrf.mxu0
      %v409 = vadd.f32 %v286, %v408
      %v410 = vpop.f32.mrf.mxu0
      %411 = vmatprep.mubr.bf16.mxu0 0
      %412 = vmatmul.mubr.bf16.gmra.mxu0 %v310
      %v413 = vpop.f32.mrf.mxu0
      %v414 = vadd.f32 %v286, %v413
      %v415 = vpop.f32.mrf.mxu0
      %v416 = vpop.f32.mrf.mxu0
      %v417 = vadd.f32 %v286, %v416
      %v418 = vpop.f32.mrf.mxu0
      %419 = vmatprep.mubr.bf16.mxu0 0
      %420 = vmatmul.mubr.bf16.gmra.mxu0 %v313
      %v421 = vpop.f32.mrf.mxu0
      %v422 = vadd.f32 %v286, %v421
      %v423 = vpop.f32.mrf.mxu0
      %v424 = vpop.f32.mrf.mxu0
      %v425 = vadd.f32 %v286, %v424
      %v426 = vpop.f32.mrf.mxu0
      %427 = vmatprep.mubr.bf16.mxu0 0
      %428 = vmatmul.mubr.bf16.gmra.mxu0 %v316
      %v429 = vpop.f32.mrf.mxu0
      %v430 = vadd.f32 %v286, %v429
      %v431 = vpop.f32.mrf.mxu0
      %v432 = vpop.f32.mrf.mxu0
      %v433 = vadd.f32 %v286, %v432
      %v434 = vpop.f32.mrf.mxu0
      %435 = vmatprep.mubr.bf16.mxu0 0
      %436 = vmatmul.mubr.bf16.gmra.mxu0 %v319
      %v437 = vpop.f32.mrf.mxu0
      %v438 = vadd.f32 %v286, %v437
      %v439 = vpop.f32.mrf.mxu0
      %v440 = vpop.f32.mrf.mxu0
      %v441 = vadd.f32 %v286, %v440
      %v442 = vpop.f32.mrf.mxu0
      %443 = vmatprep.mubr.bf16.mxu0 0
      %444 = vmatmul.mubr.bf16.gmra.mxu0 %v322
      %v445 = vpop.f32.mrf.mxu0
      %v446 = vadd.f32 %v286, %v445
      %v447 = vpop.f32.mrf.mxu0
      %v448 = vpop.f32.mrf.mxu0
      %v449 = vadd.f32 %v286, %v448
      %v450 = vpop.f32.mrf.mxu0
      %451 = vmatprep.mubr.bf16.mxu0 0
      %452 = vmatmul.mubr.bf16.gmra.mxu0 %v325
      %v453 = vpop.f32.mrf.mxu0
      %v454 = vadd.f32 %v286, %v453
      %v455 = vpop.f32.mrf.mxu0
      %v456 = vpop.f32.mrf.mxu0
      %v457 = vadd.f32 %v286, %v456
      %v458 = vpop.f32.mrf.mxu0
      %459 = vmatprep.mubr.bf16.mxu0 0
      %460 = vmatmul.mubr.bf16.gmra.mxu0 %v328
      %v461 = vpop.f32.mrf.mxu0
      %v462 = vadd.f32 %v286, %v461
      %v463 = vpop.f32.mrf.mxu0
      %v464 = vpop.f32.mrf.mxu0
      %v465 = vadd.f32 %v286, %v464
      %v466 = vpop.f32.mrf.mxu0
      %467 = vmatprep.mubr.bf16.mxu0 0
      %468 = vmatmul.mubr.bf16.gmra.mxu0 %v331
      %v469 = vpop.f32.mrf.mxu0
      %v470 = vadd.f32 %v286, %v469
      %v471 = vpop.f32.mrf.mxu0
      %v472 = vpop.f32.mrf.mxu0
      %v473 = vadd.f32 %v286, %v472
      %v474 = vpop.f32.mrf.mxu0
      %475 = vmatprep.mubr.bf16.mxu0 0
      %476 = vmatmul.mubr.bf16.gmra.mxu0 %v334
      %v477 = vpop.f32.mrf.mxu0
      %v478 = vadd.f32 %v286, %v477
      %v479 = vpop.f32.mrf.mxu0
      %v480 = vpop.f32.mrf.mxu0
      %v481 = vadd.f32 %v286, %v480
      %v482 = vpop.f32.mrf.mxu0
      %483 = vmatprep.mubr.bf16.mxu0 0
      %484 = vmatmul.mubr.bf16.gmra.mxu0 %v337
      %v485 = vpop.f32.mrf.mxu0
      %v486 = vadd.f32 %v286, %v485
      %v487 = vpop.f32.mrf.mxu0
      %v488 = vpop.f32.mrf.mxu0
      %v489 = vadd.f32 %v286, %v488
      %v490 = vpop.f32.mrf.mxu0
      %491 = vmatprep.mubr.bf16.mxu0 0
      %492 = vmatmul.mubr.bf16.gmra.mxu0 %v340
      %v493 = vpop.f32.mrf.mxu0
      %v494 = vadd.f32 %v286, %v493
      %v495 = vpop.f32.mrf.mxu0
      %v496 = vpop.f32.mrf.mxu0
      %v497 = vadd.f32 %v286, %v496
      %v498 = vpop.f32.mrf.mxu0
      %499 = vmatprep.mubr.bf16.mxu0 0
      %500 = vmatmul.mubr.bf16.gmra.mxu0 %v343
      %v501 = vpop.f32.mrf.mxu0
      %v502 = vadd.f32 %v286, %v501
      %v503 = vpop.f32.mrf.mxu0
      %v504 = vpop.f32.mrf.mxu0
      %v505 = vadd.f32 %v286, %v504
      %v506 = vpop.f32.mrf.mxu0
      %507 = vmatprep.mubr.bf16.mxu0 0
      %508 = vmatmul.mubr.bf16.gmra.mxu0 %v346
      %v509 = vpop.f32.mrf.mxu0
      %v510 = vadd.f32 %v286, %v509
      %v511 = vpop.f32.mrf.mxu0
      %v512 = vpop.f32.mrf.mxu0
      %v513 = vadd.f32 %v286, %v512
      %v514 = vpop.f32.mrf.mxu0
      %515 = vdwg.mxu0
      %v516 = vmax.f32 %v390, 0.0
      %v517 = vmax.f32 %v393, 0.0
      %v518 = vmax.f32 %v398, 0.0
      %v519 = vmax.f32 %v401, 0.0
      %v520 = vmax.f32 %v406, 0.0
      %v521 = vmax.f32 %v409, 0.0
      %v522 = vmax.f32 %v414, 0.0
      %v523 = vmax.f32 %v417, 0.0
      %v524 = vmax.f32 %v422, 0.0
      %v525 = vmax.f32 %v425, 0.0
      %v526 = vmax.f32 %v430, 0.0
      %v527 = vmax.f32 %v433, 0.0
      %v528 = vmax.f32 %v438, 0.0
      %v529 = vmax.f32 %v441, 0.0
      %v530 = vmax.f32 %v446, 0.0
      %v531 = vmax.f32 %v449, 0.0
      %v532 = vmax.f32 %v454, 0.0
      %v533 = vmax.f32 %v457, 0.0
      %v534 = vmax.f32 %v462, 0.0
      %v535 = vmax.f32 %v465, 0.0
      %v536 = vmax.f32 %v470, 0.0
      %v537 = vmax.f32 %v473, 0.0
      %v538 = vmax.f32 %v478, 0.0
      %v539 = vmax.f32 %v481, 0.0
      %v540 = vmax.f32 %v486, 0.0
      %v541 = vmax.f32 %v489, 0.0
      %v542 = vmax.f32 %v494, 0.0
      %v543 = vmax.f32 %v497, 0.0
      %v544 = vmax.f32 %v502, 0.0
      %v545 = vmax.f32 %v505, 0.0
      %v546 = vmax.f32 %v510, 0.0
      %v547 = vmax.f32 %v513, 0.0
      %v548 = vld [vmem:[%s3] sm:$0x1]
      %v550 = vlaneseq
      %v551 = vshrl.u32 %v550, 7
      %v552 = vsub.s32 0, %v551
      %v553 = vrot.slane %v548, %v552
      %v555 = vmul.f32 %v516, %v553
      %v556 = vmul.f32 %v517, %v553
      %v557 = vmul.f32 %v518, %v553
      %v558 = vmul.f32 %v519, %v553
      %v559 = vmul.f32 %v520, %v553
      %v560 = vmul.f32 %v521, %v553
      %v561 = vmul.f32 %v522, %v553
      %v562 = vmul.f32 %v523, %v553
      %v563 = vmul.f32 %v524, %v553
      %v564 = vmul.f32 %v525, %v553
      %v565 = vmul.f32 %v526, %v553
      %v566 = vmul.f32 %v527, %v553
      %v567 = vmul.f32 %v528, %v553
      %v568 = vmul.f32 %v529, %v553
      %v569 = vmul.f32 %v530, %v553
      %v570 = vmul.f32 %v531, %v553
      %v571 = vmul.f32 %v532, %v553
      %v572 = vmul.f32 %v533, %v553
      %v573 = vmul.f32 %v534, %v553
      %v574 = vmul.f32 %v535, %v553
      %v575 = vmul.f32 %v536, %v553
      %v576 = vmul.f32 %v537, %v553
      %v577 = vmul.f32 %v538, %v553
      %v578 = vmul.f32 %v539, %v553
      %v579 = vmul.f32 %v540, %v553
      %v580 = vmul.f32 %v541, %v553
      %v581 = vmul.f32 %v542, %v553
      %v582 = vmul.f32 %v543, %v553
      %v583 = vmul.f32 %v544, %v553
      %v584 = vmul.f32 %v545, %v553
      %v585 = vmul.f32 %v546, %v553
      %v586 = vmul.f32 %v547, %v553
      %v587 = vld [vmem:[%s4] sm:$0x1]
      %v589 = vlaneseq
      %v590 = vshrl.u32 %v589, 7
      %v591 = vsub.s32 0, %v590
      %v592 = vrot.slane %v587, %v591
      %v594 = vadd.f32 %v555, %v592
      %v595 = vadd.f32 %v556, %v592
      %v596 = vadd.f32 %v557, %v592
      %v597 = vadd.f32 %v558, %v592
      %v598 = vadd.f32 %v559, %v592
      %v599 = vadd.f32 %v560, %v592
      %v600 = vadd.f32 %v561, %v592
      %v601 = vadd.f32 %v562, %v592
      %v602 = vadd.f32 %v563, %v592
      %v603 = vadd.f32 %v564, %v592
      %v604 = vadd.f32 %v565, %v592
      %v605 = vadd.f32 %v566, %v592
      %v606 = vadd.f32 %v567, %v592
      %v607 = vadd.f32 %v568, %v592
      %v608 = vadd.f32 %v569, %v592
      %v609 = vadd.f32 %v570, %v592
      %v610 = vadd.f32 %v571, %v592
      %v611 = vadd.f32 %v572, %v592
      %v612 = vadd.f32 %v573, %v592
      %v613 = vadd.f32 %v574, %v592
      %v614 = vadd.f32 %v575, %v592
      %v615 = vadd.f32 %v576, %v592
      %v616 = vadd.f32 %v577, %v592
      %v617 = vadd.f32 %v578, %v592
      %v618 = vadd.f32 %v579, %v592
      %v619 = vadd.f32 %v580, %v592
      %v620 = vadd.f32 %v581, %v592
      %v621 = vadd.f32 %v582, %v592
      %v622 = vadd.f32 %v583, %v592
      %v623 = vadd.f32 %v584, %v592
      %v624 = vadd.f32 %v585, %v592
      %v625 = vadd.f32 %v586, %v592
      %vm626 = vcmask 261120
      %627 = vst.msk [vmem:[%s226] sm:$0xff] %vm626, %v594
      %628 = vst.msk [vmem:[%s226 + $0x8] sm:$0xff] %vm626, %v595
      %629 = vst.msk [vmem:[%s226 + $0x10] sm:$0xff] %vm626, %v596
      %630 = vst.msk [vmem:[%s226 + $0x18] sm:$0xff] %vm626, %v597
      %631 = vst.msk [vmem:[%s226 + $0x20] sm:$0xff] %vm626, %v598
      %632 = vst.msk [vmem:[%s226 + $0x28] sm:$0xff] %vm626, %v599
      %633 = vst.msk [vmem:[%s226 + $0x30] sm:$0xff] %vm626, %v600
      %634 = vst.msk [vmem:[%s226 + $0x38] sm:$0xff] %vm626, %v601
      %635 = vst.msk [vmem:[%s226 + $0x40] sm:$0xff] %vm626, %v602
      %636 = vst.msk [vmem:[%s226 + $0x48] sm:$0xff] %vm626, %v603
      %637 = vst.msk [vmem:[%s226 + $0x50] sm:$0xff] %vm626, %v604
      %638 = vst.msk [vmem:[%s226 + $0x58] sm:$0xff] %vm626, %v605
      %639 = vst.msk [vmem:[%s226 + $0x60] sm:$0xff] %vm626, %v606
      %640 = vst.msk [vmem:[%s226 + $0x68] sm:$0xff] %vm626, %v607
      %641 = vst.msk [vmem:[%s226 + $0x70] sm:$0xff] %vm626, %v608
      %642 = vst.msk [vmem:[%s226 + $0x78] sm:$0xff] %vm626, %v609
      %643 = vst.msk [vmem:[%s226 + $0x80] sm:$0xff] %vm626, %v610
      %644 = vst.msk [vmem:[%s226 + $0x88] sm:$0xff] %vm626, %v611
      %645 = vst.msk [vmem:[%s226 + $0x90] sm:$0xff] %vm626, %v612
      %646 = vst.msk [vmem:[%s226 + $0x98] sm:$0xff] %vm626, %v613
      %647 = vst.msk [vmem:[%s226 + $0xa0] sm:$0xff] %vm626, %v614
      %648 = vst.msk [vmem:[%s226 + $0xa8] sm:$0xff] %vm626, %v615
      %649 = vst.msk [vmem:[%s226 + $0xb0] sm:$0xff] %vm626, %v616
      %650 = vst.msk [vmem:[%s226 + $0xb8] sm:$0xff] %vm626, %v617
      %651 = vst.msk [vmem:[%s226 + $0xc0] sm:$0xff] %vm626, %v618
      %652 = vst.msk [vmem:[%s226 + $0xc8] sm:$0xff] %vm626, %v619
      %653 = vst.msk [vmem:[%s226 + $0xd0] sm:$0xff] %vm626, %v620
      %654 = vst.msk [vmem:[%s226 + $0xd8] sm:$0xff] %vm626, %v621
      %655 = vst.msk [vmem:[%s226 + $0xe0] sm:$0xff] %vm626, %v622
      %656 = vst.msk [vmem:[%s226 + $0xe8] sm:$0xff] %vm626, %v623
      %657 = vst.msk [vmem:[%s226 + $0xf0] sm:$0xff] %vm626, %v624
      %658 = vst.msk [vmem:[%s226 + $0xf8] sm:$0xff] %vm626, %v625
      %s659 = smul.u32 32, %s16
      %p660 = scmp.lt.s32.totalorder %s659, 63
      %s661 = scalar_select %p660, %s659, 63
      %s662 = smul.addr %s661, 8
      %s663 = scalar_lea.vmem %s5, %s662
      // Predicated region
      $region41: #{qnetwork_forward.4} parent=39 // pred_check
        %p664 = pneg %p144
      $region42: #{qnetwork_forward.4} parent=39 // pred_check_branch
        %666 = sbr.rel (%p664) target = $region44
      $region43: #{qnetwork_forward.4} parent=39 // pred_region
        %s667 = smul.u32 32, %s16
      $region44: #{qnetwork_forward.4} parent=39 // pred_fallthru
        _
    $region40: #{qnetwork_forward.4} parent=5 // pred_fallthru
      _
    %p668 = scmp.le.s32.totalorder 2, %s11
    // Predicated region
    $region45: #{qnetwork_forward.4} parent=5 // pred_check
      %p669 = pneg %p668
    $region46: #{qnetwork_forward.4} parent=5 // pred_check_branch
      %671 = sbr.rel (%p669) target = $region48
    $region47: #{qnetwork_forward.4} parent=5 // pred_region
      %s672 = ssub.s32 %s11, 2
      // Predicated region
      $region49: #{qnetwork_forward.4} parent=47 // pred_check
        %p673 = pneg %p150
      $region50: #{qnetwork_forward.4} parent=47 // pred_check_branch
        %675 = sbr.rel (%p673) target = $region52
      $region51: #{qnetwork_forward.4} parent=47 // pred_region
        %s676 = smul.u32 32, %s17
        %p677 = scmp.lt.s32.totalorder %s676, 63
        %s678 = scalar_select %p677, %s676, 63
        %s679 = smul.addr %s678, 8
        %s680 = scalar_lea.vmem %s5, %s679
      $region52: #{qnetwork_forward.4} parent=47 // pred_fallthru
        _
    $region48: #{qnetwork_forward.4} parent=5 // pred_fallthru
      _
  $region6: #{qnetwork_forward.4} parent=0 // loop_footer
    %s15 = sadd.s32 1, %s11
  $region7: #{qnetwork_forward.4} parent=0 // loop_footer_branch
    %10 = sbr.rel target = $region3
  $region8: #{qnetwork_forward.4} parent=0 // loop_exit
    _

// kernel: qnetwork_forward.5
$region0: #{qnetwork_forward.5}
  #allocation0 [shape = 'u32[]', space=smem, size = 0x4, offset = 0x4, fixed_abs, tag = 'smem constant byte address 0x4 - core index']
  #allocation1 [shape = 'u32[144,128]{1,0:T(1,128)}', space=vmem, size = 0x12000, scoped, tag = 'internal scratch']
  %s0 = inlined_call_operand.vmem [shape: f32[128,288], index: 0, kind: input, shape index: {}]
  %s1 = inlined_call_operand.vmem [shape: bf16[288,64], index: 1, kind: input, shape index: {}]
  %s2 = inlined_call_operand.vmem [shape: f32[1,64], index: 2, kind: input, shape index: {}]
  %s3 = inlined_call_operand.vmem [shape: f32[1,64], index: 3, kind: input, shape index: {}]
  %s4 = inlined_call_operand.vmem [shape: f32[1,64], index: 4, kind: input, shape index: {}]
  %s5 = inlined_call_operand.vmem [shape: f32[128,64], index: 5, kind: output, shape index: {}]
  %s6 = sld [smem:[#allocation0]]
  $region30: #{qnetwork_forward.5} parent=0
    _
  %s8 = ssub.s32 1, %s6
  %s9 = scalar_select 0, %s8, %s6
  // Predicated region
  $region2: #{qnetwork_forward.5} parent=0 // pred_check
    _
  $region3: #{qnetwork_forward.5} parent=0 // pred_check_branch
    %11 = sbr.rel (0) target = $region5
  $region4: #{qnetwork_forward.5} parent=0 // pred_region
    _
  $region5: #{qnetwork_forward.5} parent=0 // pred_fallthru
    _
  // Predicated region
  $region6: #{qnetwork_forward.5} parent=0 // pred_check
    _
  $region7: #{qnetwork_forward.5} parent=0 // pred_check_branch
    %13 = sbr.rel (0) target = $region9
  $region8: #{qnetwork_forward.5} parent=0 // pred_region
    _
  $region9: #{qnetwork_forward.5} parent=0 // pred_fallthru
    _
  // Predicated region
  $region10: #{qnetwork_forward.5} parent=0 // pred_check
    _
  $region11: #{qnetwork_forward.5} parent=0 // pred_check_branch
    %15 = sbr.rel (0) target = $region13
  $region12: #{qnetwork_forward.5} parent=0 // pred_region
    _
  $region13: #{qnetwork_forward.5} parent=0 // pred_fallthru
    _
  // Predicated region
  $region14: #{qnetwork_forward.5} parent=0 // pred_check
    _
  $region15: #{qnetwork_forward.5} parent=0 // pred_check_branch
    %17 = sbr.rel (0) target = $region17
  $region16: #{qnetwork_forward.5} parent=0 // pred_region
    _
  $region17: #{qnetwork_forward.5} parent=0 // pred_fallthru
    _
  // Predicated region
  $region18: #{qnetwork_forward.5} parent=0 // pred_check
    _
  $region19: #{qnetwork_forward.5} parent=0 // pred_check_branch
    %19 = sbr.rel (0) target = $region21
  $region20: #{qnetwork_forward.5} parent=0 // pred_region
    _
  $region21: #{qnetwork_forward.5} parent=0 // pred_fallthru
    _
  %v21 = vld [vmem:[%s0] sm:$0xff]
  %v22 = vld [vmem:[%s0 + $0x8] sm:$0xff]
  %v23 = vld [vmem:[%s0 + $0x10] sm:$0xff]
  %v24 = vld [vmem:[%s0 + $0x18] sm:$0xff]
  %v25 = vld [vmem:[%s0 + $0x20] sm:$0xff]
  %v26 = vld [vmem:[%s0 + $0x28] sm:$0xff]
  %v27 = vld [vmem:[%s0 + $0x30] sm:$0xff]
  %v28 = vld [vmem:[%s0 + $0x38] sm:$0xff]
  %v29 = vld [vmem:[%s0 + $0x40] sm:$0xff]
  %v30 = vld [vmem:[%s0 + $0x48] sm:$0xff]
  %v31 = vld [vmem:[%s0 + $0x50] sm:$0xff]
  %v32 = vld [vmem:[%s0 + $0x58] sm:$0xff]
  %v33 = vld [vmem:[%s0 + $0x60] sm:$0xff]
  %v34 = vld [vmem:[%s0 + $0x68] sm:$0xff]
  %v35 = vld [vmem:[%s0 + $0x70] sm:$0xff]
  %v36 = vld [vmem:[%s0 + $0x78] sm:$0xff]
  %v37 = vld [vmem:[%s0 + $0x80] sm:$0xff]
  %v38 = vld [vmem:[%s0 + $0x88] sm:$0xff]
  %v39 = vld [vmem:[%s0 + $0x90] sm:$0xff]
  %v40 = vld [vmem:[%s0 + $0x98] sm:$0xff]
  %v41 = vld [vmem:[%s0 + $0xa0] sm:$0xff]
  %v42 = vld [vmem:[%s0 + $0xa8] sm:$0xff]
  %v43 = vld [vmem:[%s0 + $0xb0] sm:$0xff]
  %v44 = vld [vmem:[%s0 + $0xb8] sm:$0xff]
  %v45 = vld [vmem:[%s0 + $0xc0] sm:$0xff]
  %v46 = vld [vmem:[%s0 + $0xc8] sm:$0xff]
  %v47 = vld [vmem:[%s0 + $0xd0] sm:$0xff]
  %v48 = vld [vmem:[%s0 + $0xd8] sm:$0xff]
  %v49 = vld [vmem:[%s0 + $0xe0] sm:$0xff]
  %v50 = vld [vmem:[%s0 + $0xe8] sm:$0xff]
  %v51 = vld [vmem:[%s0 + $0xf0] sm:$0xff]
  %v52 = vld [vmem:[%s0 + $0xf8] sm:$0xff]
  %v53 = vld [vmem:[%s0 + $0x100] sm:$0xff]
  %v54 = vld [vmem:[%s0 + $0x108] sm:$0xff]
  %v55 = vld [vmem:[%s0 + $0x110] sm:$0xff]
  %v56 = vld [vmem:[%s0 + $0x118] sm:$0xff]
  %v57 = vld [vmem:[%s0 + $0x120] sm:$0xff]
  %v58 = vld [vmem:[%s0 + $0x128] sm:$0xff]
  %v59 = vld [vmem:[%s0 + $0x130] sm:$0xff]
  %v60 = vld [vmem:[%s0 + $0x138] sm:$0xff]
  %v61 = vld [vmem:[%s0 + $0x140] sm:$0xff]
  %v62 = vld [vmem:[%s0 + $0x148] sm:$0xff]
  %v63 = vld [vmem:[%s0 + $0x150] sm:$0xff]
  %v64 = vld [vmem:[%s0 + $0x158] sm:$0xff]
  %v65 = vld [vmem:[%s0 + $0x160] sm:$0xff]
  %v66 = vld [vmem:[%s0 + $0x168] sm:$0xff]
  %v67 = vld [vmem:[%s0 + $0x170] sm:$0xff]
  %v68 = vld [vmem:[%s0 + $0x178] sm:$0xff]
  %v69 = vpack.c.bf16 %v24, %v21
  %v70 = vpack.c.bf16 %v25, %v22
  %v71 = vpack.c.bf16 %v26, %v23
  %v72 = vpack.c.bf16 %v30, %v27
  %v73 = vpack.c.bf16 %v31, %v28
  %v74 = vpack.c.bf16 %v32, %v29
  %v75 = vpack.c.bf16 %v36, %v33
  %v76 = vpack.c.bf16 %v37, %v34
  %v77 = vpack.c.bf16 %v38, %v35
  %v78 = vpack.c.bf16 %v42, %v39
  %v79 = vpack.c.bf16 %v43, %v40
  %v80 = vpack.c.bf16 %v44, %v41
  %v81 = vpack.c.bf16 %v48, %v45
  %v82 = vpack.c.bf16 %v49, %v46
  %v83 = vpack.c.bf16 %v50, %v47
  %v84 = vpack.c.bf16 %v54, %v51
  %v85 = vpack.c.bf16 %v55, %v52
  %v86 = vpack.c.bf16 %v56, %v53
  %v87 = vpack.c.bf16 %v60, %v57
  %v88 = vpack.c.bf16 %v61, %v58
  %v89 = vpack.c.bf16 %v62, %v59
  %v90 = vpack.c.bf16 %v66, %v63
  %v91 = vpack.c.bf16 %v67, %v64
  %v92 = vpack.c.bf16 %v68, %v65
  %v93 = vld [vmem:[%s1] sm:$0xf]
  %v94 = vld [vmem:[%s1 + $0x4] sm:$0xf]
  %v95 = vld [vmem:[%s1 + $0x8] sm:$0xf]
  %v96 = vld [vmem:[%s1 + $0xc] sm:$0xf]
  %v97 = vld [vmem:[%s1 + $0x10] sm:$0xf]
  %v98 = vld [vmem:[%s1 + $0x14] sm:$0xf]
  %v99 = vld [vmem:[%s1 + $0x18] sm:$0xf]
  %v100 = vld [vmem:[%s1 + $0x1c] sm:$0xf]
  %v101 = vld [vmem:[%s1 + $0x20] sm:$0xf]
  %v102 = vld [vmem:[%s1 + $0x24] sm:$0xf]
  %v103 = vld [vmem:[%s1 + $0x28] sm:$0xf]
  %v104 = vld [vmem:[%s1 + $0x2c] sm:$0xf]
  %v105 = vld [vmem:[%s1 + $0x30] sm:$0xf]
  %v106 = vld [vmem:[%s1 + $0x34] sm:$0xf]
  %v107 = vld [vmem:[%s1 + $0x38] sm:$0xf]
  %v108 = vld [vmem:[%s1 + $0x3c] sm:$0xf]
  %v109 = vld [vmem:[%s1 + $0x40] sm:$0xf]
  %v110 = vld [vmem:[%s1 + $0x44] sm:$0xf]
  %v111 = vld [vmem:[%s1 + $0x48] sm:$0xf]
  %v112 = vld [vmem:[%s1 + $0x4c] sm:$0xf]
  %v113 = vld [vmem:[%s1 + $0x50] sm:$0xf]
  %v114 = vld [vmem:[%s1 + $0x54] sm:$0xf]
  %v115 = vld [vmem:[%s1 + $0x58] sm:$0xf]
  %v116 = vld [vmem:[%s1 + $0x5c] sm:$0xf]
  %v117 = vld [vmem:[%s1 + $0x60] sm:$0xf]
  %v118 = vld [vmem:[%s1 + $0x64] sm:$0xf]
  %v119 = vld [vmem:[%s1 + $0x68] sm:$0xf]
  %v120 = vld [vmem:[%s1 + $0x6c] sm:$0xf]
  %v121 = vld [vmem:[%s1 + $0x70] sm:$0xf]
  %v122 = vld [vmem:[%s1 + $0x74] sm:$0xf]
  %v123 = vld [vmem:[%s1 + $0x78] sm:$0xf]
  %v124 = vld [vmem:[%s1 + $0x7c] sm:$0xf]
  %v125 = vld [vmem:[%s1 + $0x80] sm:$0xf]
  %v126 = vld [vmem:[%s1 + $0x84] sm:$0xf]
  %v127 = vld [vmem:[%s1 + $0x88] sm:$0xf]
  %v128 = vld [vmem:[%s1 + $0x8c] sm:$0xf]
  %v129 = vld [vmem:[%s2] sm:$0x1]
  %v131 = vlaneseq
  %v132 = vshrl.u32 %v131, 7
  %v133 = vsub.s32 0, %v132
  %v134 = vrot.slane %v129, %v133
  %v172 = vunpack.c.l.b16 %v93
  %v173 = vunpack.c.l.b16 %v94
  %v174 = vunpack.c.l.b16 %v95
  %v175 = vunpack.c.l.b16 %v96
  %v176 = vunpack.c.l.b16 %v97
  %v177 = vunpack.c.l.b16 %v98
  %v178 = vunpack.c.l.b16 %v99
  %v179 = vunpack.c.l.b16 %v100
  %v180 = vunpack.c.l.b16 %v101
  %v181 = vunpack.c.l.b16 %v102
  %v182 = vunpack.c.l.b16 %v103
  %v183 = vunpack.c.l.b16 %v104
  %v184 = vunpack.c.l.b16 %v105
  %v185 = vunpack.c.l.b16 %v106
  %v186 = vunpack.c.l.b16 %v107
  %v187 = vunpack.c.l.b16 %v108
  %v188 = vunpack.c.l.b16 %v109
  %v189 = vunpack.c.l.b16 %v110
  %v190 = vunpack.c.l.b16 %v111
  %v191 = vunpack.c.l.b16 %v112
  %v192 = vunpack.c.l.b16 %v113
  %v193 = vunpack.c.l.b16 %v114
  %v194 = vunpack.c.l.b16 %v115
  %v195 = vunpack.c.l.b16 %v116
  %v196 = vunpack.c.l.b16 %v117
  %v197 = vunpack.c.l.b16 %v118
  %v198 = vunpack.c.l.b16 %v119
  %v199 = vunpack.c.l.b16 %v120
  %v200 = vunpack.c.l.b16 %v121
  %v201 = vunpack.c.l.b16 %v122
  %v202 = vunpack.c.l.b16 %v123
  %v203 = vunpack.c.l.b16 %v124
  %v204 = vunpack.c.l.b16 %v125
  %v205 = vunpack.c.l.b16 %v126
  %v206 = vunpack.c.l.b16 %v127
  %v207 = vunpack.c.l.b16 %v128
  %v208 = vpack.c.b16 %v173, %v172
  %v209 = vpack.c.b16 %v175, %v174
  %v210 = vpack.c.b16 %v177, %v176
  %v211 = vpack.c.b16 %v179, %v178
  %v212 = vpack.c.b16 %v181, %v180
  %v213 = vpack.c.b16 %v183, %v182
  %v214 = vpack.c.b16 %v185, %v184
  %v215 = vpack.c.b16 %v187, %v186
  %v216 = vpack.c.b16 %v189, %v188
  %v217 = vpack.c.b16 %v191, %v190
  %v218 = vpack.c.b16 %v193, %v192
  %v219 = vpack.c.b16 %v195, %v194
  %v220 = vpack.c.b16 %v197, %v196
  %v221 = vpack.c.b16 %v199, %v198
  %v222 = vpack.c.b16 %v201, %v200
  %v223 = vpack.c.b16 %v203, %v202
  %v224 = vpack.c.b16 %v205, %v204
  %v225 = vpack.c.b16 %v207, %v206
  %vm244 = vcmask 261120
  %v246 = vsel %vm244, %v71, 0
  %v249 = vsel %vm244, %v74, 0
  %v252 = vsel %vm244, %v77, 0
  %v255 = vsel %vm244, %v80, 0
  %v258 = vsel %vm244, %v83, 0
  %v261 = vsel %vm244, %v86, 0
  %v264 = vsel %vm244, %v89, 0
  %v267 = vsel %vm244, %v92, 0
  %269 = vmatprep.subr.bf16.mxu0 0
  %270 = vmatpush1.bf16.msra.mxu0 %v215
  %271 = vmatprep.subr.bf16.mxu0 0
  %272 = vmatpush1.bf16.msra.mxu0 %v214
  %273 = vmatprep.subr.bf16.mxu0 0
  %274 = vmatpush1.bf16.msra.mxu0 %v213
  %275 = vmatprep.subr.bf16.mxu0 0
  %276 = vmatpush1.bf16.msra.mxu0 %v212
  %277 = vmatprep.subr.bf16.mxu0 0
  %278 = vmatpush1.bf16.msra.mxu0 %v211
  %279 = vmatprep.subr.bf16.mxu0 0
  %280 = vmatpush1.bf16.msra.mxu0 %v210
  %281 = vmatprep.subr.bf16.mxu0 0
  %282 = vmatpush1.bf16.msra.mxu0 %v209
  %283 = vmatprep.subr.bf16.mxu0 0
  %284 = vmatpush1.bf16.msra.mxu0 %v208
  %285 = vmatprep.subr.bf16.mxu0 0
  %286 = vmatpush2.bf16.msra.mxu0 %v223
  %287 = vmatprep.subr.bf16.mxu0 0
  %288 = vmatpush2.bf16.msra.mxu0 %v222
  %289 = vmatprep.subr.bf16.mxu0 0
  %290 = vmatpush2.bf16.msra.mxu0 %v221
  %291 = vmatprep.subr.bf16.mxu0 0
  %292 = vmatpush2.bf16.msra.mxu0 %v220
  %293 = vmatprep.subr.bf16.mxu0 0
  %294 = vmatpush2.bf16.msra.mxu0 %v219
  %295 = vmatprep.subr.bf16.mxu0 0
  %296 = vmatpush2.bf16.msra.mxu0 %v218
  %297 = vmatprep.subr.bf16.mxu0 0
  %298 = vmatpush2.bf16.msra.mxu0 %v217
  %299 = vmatprep.subr.bf16.mxu0 0
  %300 = vmatpush2.bf16.msra.mxu0 %v216
  %301 = vmatprep.mubr.bf16.mxu0 %v70
  %302 = vmatmul.mubr.bf16.gmra.mxu0 %v69
  %v303 = vpop.f32.mrf.mxu0
  %v304 = vadd.f32 %v134, %v303
  %v305 = vpop.f32.mrf.mxu0
  %v306 = vpop.f32.mrf.mxu0
  %v307 = vadd.f32 %v134, %v306
  %v308 = vpop.f32.mrf.mxu0
  %309 = vmatprep.mubr.bf16.mxu0 %v73
  %310 = vmatmul.mubr.bf16.gmra.mxu0 %v72
  %v311 = vpop.f32.mrf.mxu0
  %v312 = vadd.f32 %v134, %v311
  %v313 = vpop.f32.mrf.mxu0
  %v314 = vpop.f32.mrf.mxu0
  %v315 = vadd.f32 %v134, %v314
  %v316 = vpop.f32.mrf.mxu0
  %317 = vmatprep.mubr.bf16.mxu0 %v76
  %318 = vmatmul.mubr.bf16.gmra.mxu0 %v75
  %v319 = vpop.f32.mrf.mxu0
  %v320 = vadd.f32 %v134, %v319
  %v321 = vpop.f32.mrf.mxu0
  %v322 = vpop.f32.mrf.mxu0
  %v323 = vadd.f32 %v134, %v322
  %v324 = vpop.f32.mrf.mxu0
  %325 = vmatprep.mubr.bf16.mxu0 %v79
  %326 = vmatmul.mubr.bf16.gmra.mxu0 %v78
  %v327 = vpop.f32.mrf.mxu0
  %v328 = vadd.f32 %v134, %v327
  %v329 = vpop.f32.mrf.mxu0
  %v330 = vpop.f32.mrf.mxu0
  %v331 = vadd.f32 %v134, %v330
  %v332 = vpop.f32.mrf.mxu0
  %333 = vmatprep.mubr.bf16.mxu0 %v82
  %334 = vmatmul.mubr.bf16.gmra.mxu0 %v81
  %v335 = vpop.f32.mrf.mxu0
  %v336 = vadd.f32 %v134, %v335
  %v337 = vpop.f32.mrf.mxu0
  %v338 = vpop.f32.mrf.mxu0
  %v339 = vadd.f32 %v134, %v338
  %v340 = vpop.f32.mrf.mxu0
  %341 = vmatprep.mubr.bf16.mxu0 %v85
  %342 = vmatmul.mubr.bf16.gmra.mxu0 %v84
  %v343 = vpop.f32.mrf.mxu0
  %v344 = vadd.f32 %v134, %v343
  %v345 = vpop.f32.mrf.mxu0
  %v346 = vpop.f32.mrf.mxu0
  %v347 = vadd.f32 %v134, %v346
  %v348 = vpop.f32.mrf.mxu0
  %349 = vmatprep.mubr.bf16.mxu0 %v88
  %350 = vmatmul.mubr.bf16.gmra.mxu0 %v87
  %v351 = vpop.f32.mrf.mxu0
  %v352 = vadd.f32 %v134, %v351
  %v353 = vpop.f32.mrf.mxu0
  %v354 = vpop.f32.mrf.mxu0
  %v355 = vadd.f32 %v134, %v354
  %v356 = vpop.f32.mrf.mxu0
  %357 = vmatprep.mubr.bf16.mxu0 %v91
  %358 = vmatmul.mubr.bf16.gmra.mxu0 %v90
  %v359 = vpop.f32.mrf.mxu0
  %v360 = vadd.f32 %v134, %v359
  %v361 = vpop.f32.mrf.mxu0
  %v362 = vpop.f32.mrf.mxu0
  %v363 = vadd.f32 %v134, %v362
  %v364 = vpop.f32.mrf.mxu0
  %365 = vdwg.mxu0
  %366 = vmatprep.subr.bf16.mxu0 0
  %367 = vmatpush1.bf16.msra.mxu0 0
  %368 = vmatprep.subr.bf16.mxu0 0
  %369 = vmatpush1.bf16.msra.mxu0 0
  %370 = vmatprep.subr.bf16.mxu0 0
  %371 = vmatpush1.bf16.msra.mxu0 0
  %372 = vmatprep.subr.bf16.mxu0 0
  %373 = vmatpush1.bf16.msra.mxu0 0
  %374 = vmatprep.subr.bf16.mxu0 0
  %375 = vmatpush1.bf16.msra.mxu0 0
  %376 = vmatprep.subr.bf16.mxu0 0
  %377 = vmatpush1.bf16.msra.mxu0 0
  %378 = vmatprep.subr.bf16.mxu0 0
  %379 = vmatpush1.bf16.msra.mxu0 %v225
  %380 = vmatprep.subr.bf16.mxu0 0
  %381 = vmatpush1.bf16.msra.mxu0 %v224
  %382 = vmatprep.subr.bf16.mxu0 0
  %383 = vmatpush2.bf16.msra.mxu0 0
  %384 = vmatprep.subr.bf16.mxu0 0
  %385 = vmatpush2.bf16.msra.mxu0 0
  %386 = vmatprep.subr.bf16.mxu0 0
  %387 = vmatpush2.bf16.msra.mxu0 0
  %388 = vmatprep.subr.bf16.mxu0 0
  %389 = vmatpush2.bf16.msra.mxu0 0
  %390 = vmatprep.subr.bf16.mxu0 0
  %391 = vmatpush2.bf16.msra.mxu0 0
  %392 = vmatprep.subr.bf16.mxu0 0
  %393 = vmatpush2.bf16.msra.mxu0 0
  %394 = vmatprep.subr.bf16.mxu0 0
  %395 = vmatpush2.bf16.msra.mxu0 0
  %396 = vmatprep.subr.bf16.mxu0 0
  %397 = vmatpush2.bf16.msra.mxu0 0
  %398 = vmatprep.mubr.bf16.mxu0 0
  %399 = vmatmul.mubr.bf16.gmra.mxu0 %v246
  %v400 = vpop.f32.mrf.mxu0
  %v401 = vadd.f32 %v304, %v400
  %v402 = vpop.f32.mrf.mxu0
  %v403 = vpop.f32.mrf.mxu0
  %v404 = vadd.f32 %v307, %v403
  %v405 = vpop.f32.mrf.mxu0
  %406 = vmatprep.mubr.bf16.mxu0 0
  %407 = vmatmul.mubr.bf16.gmra.mxu0 %v249
  %v408 = vpop.f32.mrf.mxu0
  %v409 = vadd.f32 %v312, %v408
  %v410 = vpop.f32.mrf.mxu0
  %v411 = vpop.f32.mrf.mxu0
  %v412 = vadd.f32 %v315, %v411
  %v413 = vpop.f32.mrf.mxu0
  %414 = vmatprep.mubr.bf16.mxu0 0
  %415 = vmatmul.mubr.bf16.gmra.mxu0 %v252
  %v416 = vpop.f32.mrf.mxu0
  %v417 = vadd.f32 %v320, %v416
  %v418 = vpop.f32.mrf.mxu0
  %v419 = vpop.f32.mrf.mxu0
  %v420 = vadd.f32 %v323, %v419
  %v421 = vpop.f32.mrf.mxu0
  %422 = vmatprep.mubr.bf16.mxu0 0
  %423 = vmatmul.mubr.bf16.gmra.mxu0 %v255
  %v424 = vpop.f32.mrf.mxu0
  %v425 = vadd.f32 %v328, %v424
  %v426 = vpop.f32.mrf.mxu0
  %v427 = vpop.f32.mrf.mxu0
  %v428 = vadd.f32 %v331, %v427
  %v429 = vpop.f32.mrf.mxu0
  %430 = vmatprep.mubr.bf16.mxu0 0
  %431 = vmatmul.mubr.bf16.gmra.mxu0 %v258
  %v432 = vpop.f32.mrf.mxu0
  %v433 = vadd.f32 %v336, %v432
  %v434 = vpop.f32.mrf.mxu0
  %v435 = vpop.f32.mrf.mxu0
  %v436 = vadd.f32 %v339, %v435
  %v437 = vpop.f32.mrf.mxu0
  %438 = vmatprep.mubr.bf16.mxu0 0
  %439 = vmatmul.mubr.bf16.gmra.mxu0 %v261
  %v440 = vpop.f32.mrf.mxu0
  %v441 = vadd.f32 %v344, %v440
  %v442 = vpop.f32.mrf.mxu0
  %v443 = vpop.f32.mrf.mxu0
  %v444 = vadd.f32 %v347, %v443
  %v445 = vpop.f32.mrf.mxu0
  %446 = vmatprep.mubr.bf16.mxu0 0
  %447 = vmatmul.mubr.bf16.gmra.mxu0 %v264
  %v448 = vpop.f32.mrf.mxu0
  %v449 = vadd.f32 %v352, %v448
  %v450 = vpop.f32.mrf.mxu0
  %v451 = vpop.f32.mrf.mxu0
  %v452 = vadd.f32 %v355, %v451
  %v453 = vpop.f32.mrf.mxu0
  %454 = vmatprep.mubr.bf16.mxu0 0
  %455 = vmatmul.mubr.bf16.gmra.mxu0 %v267
  %v456 = vpop.f32.mrf.mxu0
  %v457 = vadd.f32 %v360, %v456
  %v458 = vpop.f32.mrf.mxu0
  %v459 = vpop.f32.mrf.mxu0
  %v460 = vadd.f32 %v363, %v459
  %v461 = vpop.f32.mrf.mxu0
  %462 = vdwg.mxu0
  %v463 = vmax.f32 %v401, 0.0
  %v464 = vmax.f32 %v404, 0.0
  %v465 = vmax.f32 %v409, 0.0
  %v466 = vmax.f32 %v412, 0.0
  %v467 = vmax.f32 %v417, 0.0
  %v468 = vmax.f32 %v420, 0.0
  %v469 = vmax.f32 %v425, 0.0
  %v470 = vmax.f32 %v428, 0.0
  %v471 = vmax.f32 %v433, 0.0
  %v472 = vmax.f32 %v436, 0.0
  %v473 = vmax.f32 %v441, 0.0
  %v474 = vmax.f32 %v444, 0.0
  %v475 = vmax.f32 %v449, 0.0
  %v476 = vmax.f32 %v452, 0.0
  %v477 = vmax.f32 %v457, 0.0
  %v478 = vmax.f32 %v460, 0.0
  %v479 = vld [vmem:[%s3] sm:$0x1]
  %v481 = vlaneseq
  %v482 = vshrl.u32 %v481, 7
  %v483 = vsub.s32 0, %v482
  %v484 = vrot.slane %v479, %v483
  %v486 = vmul.f32 %v463, %v484
  %v487 = vmul.f32 %v464, %v484
  %v488 = vmul.f32 %v465, %v484
  %v489 = vmul.f32 %v466, %v484
  %v490 = vmul.f32 %v467, %v484
  %v491 = vmul.f32 %v468, %v484
  %v492 = vmul.f32 %v469, %v484
  %v493 = vmul.f32 %v470, %v484
  %v494 = vmul.f32 %v471, %v484
  %v495 = vmul.f32 %v472, %v484
  %v496 = vmul.f32 %v473, %v484
  %v497 = vmul.f32 %v474, %v484
  %v498 = vmul.f32 %v475, %v484
  %v499 = vmul.f32 %v476, %v484
  %v500 = vmul.f32 %v477, %v484
  %v501 = vmul.f32 %v478, %v484
  %v502 = vld [vmem:[%s4] sm:$0x1]
  %v504 = vlaneseq
  %v505 = vshrl.u32 %v504, 7
  %v506 = vsub.s32 0, %v505
  %v507 = vrot.slane %v502, %v506
  %v509 = vadd.f32 %v486, %v507
  %v510 = vadd.f32 %v487, %v507
  %v511 = vadd.f32 %v488, %v507
  %v512 = vadd.f32 %v489, %v507
  %v513 = vadd.f32 %v490, %v507
  %v514 = vadd.f32 %v491, %v507
  %v515 = vadd.f32 %v492, %v507
  %v516 = vadd.f32 %v493, %v507
  %v517 = vadd.f32 %v494, %v507
  %v518 = vadd.f32 %v495, %v507
  %v519 = vadd.f32 %v496, %v507
  %v520 = vadd.f32 %v497, %v507
  %v521 = vadd.f32 %v498, %v507
  %v522 = vadd.f32 %v499, %v507
  %v523 = vadd.f32 %v500, %v507
  %v524 = vadd.f32 %v501, %v507
  %vm525 = vcmask 523264
  %526 = vst.msk [vmem:[%s5] sm:$0xff] %vm525, %v509
  %527 = vst.msk [vmem:[%s5 + $0x8] sm:$0xff] %vm525, %v510
  %528 = vst.msk [vmem:[%s5 + $0x10] sm:$0xff] %vm525, %v511
  %529 = vst.msk [vmem:[%s5 + $0x18] sm:$0xff] %vm525, %v512
  %530 = vst.msk [vmem:[%s5 + $0x20] sm:$0xff] %vm525, %v513
  %531 = vst.msk [vmem:[%s5 + $0x28] sm:$0xff] %vm525, %v514
  %532 = vst.msk [vmem:[%s5 + $0x30] sm:$0xff] %vm525, %v515
  %533 = vst.msk [vmem:[%s5 + $0x38] sm:$0xff] %vm525, %v516
  %534 = vst.msk [vmem:[%s5 + $0x40] sm:$0xff] %vm525, %v517
  %535 = vst.msk [vmem:[%s5 + $0x48] sm:$0xff] %vm525, %v518
  %536 = vst.msk [vmem:[%s5 + $0x50] sm:$0xff] %vm525, %v519
  %537 = vst.msk [vmem:[%s5 + $0x58] sm:$0xff] %vm525, %v520
  %538 = vst.msk [vmem:[%s5 + $0x60] sm:$0xff] %vm525, %v521
  %539 = vst.msk [vmem:[%s5 + $0x68] sm:$0xff] %vm525, %v522
  %540 = vst.msk [vmem:[%s5 + $0x70] sm:$0xff] %vm525, %v523
  %541 = vst.msk [vmem:[%s5 + $0x78] sm:$0xff] %vm525, %v524
  // Predicated region
  $region22: #{qnetwork_forward.5} parent=0 // pred_check
    _
  $region23: #{qnetwork_forward.5} parent=0 // pred_check_branch
    %543 = sbr.rel (0) target = $region25
  $region24: #{qnetwork_forward.5} parent=0 // pred_region
    _
  $region25: #{qnetwork_forward.5} parent=0 // pred_fallthru
    _
  // Predicated region
  $region26: #{qnetwork_forward.5} parent=0 // pred_check
    _
  $region27: #{qnetwork_forward.5} parent=0 // pred_check_branch
    %545 = sbr.rel (0) target = $region29
  $region28: #{qnetwork_forward.5} parent=0 // pred_region
    _
  $region29: #{qnetwork_forward.5} parent=0 // pred_fallthru
    _

// kernel: qnetwork_forward.6
$region0: #{qnetwork_forward.6}
  #allocation0 [shape = 'u32[]', space=smem, size = 0x4, offset = 0x4, fixed_abs, tag = 'smem constant byte address 0x4 - core index']
  #allocation1 [shape = 'u32[144,128]{1,0:T(1,128)}', space=vmem, size = 0x12000, scoped, tag = 'internal scratch']
  %s0 = inlined_call_operand.vmem [shape: f32[32,576], index: 0, kind: input, shape index: {}]
  %s1 = inlined_call_operand.vmem [shape: bf16[576,64], index: 1, kind: input, shape index: {}]
  %s2 = inlined_call_operand.vmem [shape: f32[1,64], index: 2, kind: input, shape index: {}]
  %s3 = inlined_call_operand.vmem [shape: f32[1,64], index: 3, kind: input, shape index: {}]
  %s4 = inlined_call_operand.vmem [shape: f32[1,64], index: 4, kind: input, shape index: {}]
  %s5 = inlined_call_operand.vmem [shape: f32[32,64], index: 5, kind: output, shape index: {}]
  %s6 = sld [smem:[#allocation0]]
  $region30: #{qnetwork_forward.6} parent=0
    _
  %s8 = ssub.s32 1, %s6
  %s9 = scalar_select 0, %s8, %s6
  // Predicated region
  $region2: #{qnetwork_forward.6} parent=0 // pred_check
    _
  $region3: #{qnetwork_forward.6} parent=0 // pred_check_branch
    %11 = sbr.rel (0) target = $region5
  $region4: #{qnetwork_forward.6} parent=0 // pred_region
    _
  $region5: #{qnetwork_forward.6} parent=0 // pred_fallthru
    _
  // Predicated region
  $region6: #{qnetwork_forward.6} parent=0 // pred_check
    _
  $region7: #{qnetwork_forward.6} parent=0 // pred_check_branch
    %13 = sbr.rel (0) target = $region9
  $region8: #{qnetwork_forward.6} parent=0 // pred_region
    _
  $region9: #{qnetwork_forward.6} parent=0 // pred_fallthru
    _
  // Predicated region
  $region10: #{qnetwork_forward.6} parent=0 // pred_check
    _
  $region11: #{qnetwork_forward.6} parent=0 // pred_check_branch
    %15 = sbr.rel (0) target = $region13
  $region12: #{qnetwork_forward.6} parent=0 // pred_region
    _
  $region13: #{qnetwork_forward.6} parent=0 // pred_fallthru
    _
  // Predicated region
  $region14: #{qnetwork_forward.6} parent=0 // pred_check
    _
  $region15: #{qnetwork_forward.6} parent=0 // pred_check_branch
    %17 = sbr.rel (0) target = $region17
  $region16: #{qnetwork_forward.6} parent=0 // pred_region
    _
  $region17: #{qnetwork_forward.6} parent=0 // pred_fallthru
    _
  // Predicated region
  $region18: #{qnetwork_forward.6} parent=0 // pred_check
    _
  $region19: #{qnetwork_forward.6} parent=0 // pred_check_branch
    %19 = sbr.rel (0) target = $region21
  $region20: #{qnetwork_forward.6} parent=0 // pred_region
    _
  $region21: #{qnetwork_forward.6} parent=0 // pred_fallthru
    _
  %v21 = vld [vmem:[%s0] sm:$0xff]
  %v22 = vld [vmem:[%s0 + $0x8] sm:$0xff]
  %v23 = vld [vmem:[%s0 + $0x10] sm:$0xff]
  %v24 = vld [vmem:[%s0 + $0x18] sm:$0xff]
  %v25 = vld [vmem:[%s0 + $0x20] sm:$0xff]
  %v26 = vld [vmem:[%s0 + $0x28] sm:$0xff]
  %v27 = vld [vmem:[%s0 + $0x30] sm:$0xff]
  %v28 = vld [vmem:[%s0 + $0x38] sm:$0xff]
  %v29 = vld [vmem:[%s0 + $0x40] sm:$0xff]
  %v30 = vld [vmem:[%s0 + $0x48] sm:$0xff]
  %v31 = vld [vmem:[%s0 + $0x50] sm:$0xff]
  %v32 = vld [vmem:[%s0 + $0x58] sm:$0xff]
  %v33 = vld [vmem:[%s0 + $0x60] sm:$0xff]
  %v34 = vld [vmem:[%s0 + $0x68] sm:$0xff]
  %v35 = vld [vmem:[%s0 + $0x70] sm:$0xff]
  %v36 = vld [vmem:[%s0 + $0x78] sm:$0xff]
  %v37 = vld [vmem:[%s0 + $0x80] sm:$0xff]
  %v38 = vld [vmem:[%s0 + $0x88] sm:$0xff]
  %v39 = vld [vmem:[%s0 + $0x90] sm:$0xff]
  %v40 = vld [vmem:[%s0 + $0x98] sm:$0xff]
  %v41 = vpack.c.bf16 %v26, %v21
  %v42 = vpack.c.bf16 %v27, %v22
  %v43 = vpack.c.bf16 %v28, %v23
  %v44 = vpack.c.bf16 %v29, %v24
  %v45 = vpack.c.bf16 %v30, %v25
  %v46 = vpack.c.bf16 %v36, %v31
  %v47 = vpack.c.bf16 %v37, %v32
  %v48 = vpack.c.bf16 %v38, %v33
  %v49 = vpack.c.bf16 %v39, %v34
  %v50 = vpack.c.bf16 %v40, %v35
  %v51 = vld [vmem:[%s1] sm:$0xf]
  %v52 = vld [vmem:[%s1 + $0x4] sm:$0xf]
  %v53 = vld [vmem:[%s1 + $0x8] sm:$0xf]
  %v54 = vld [vmem:[%s1 + $0xc] sm:$0xf]
  %v55 = vld [vmem:[%s1 + $0x10] sm:$0xf]
  %v56 = vld [vmem:[%s1 + $0x14] sm:$0xf]
  %v57 = vld [vmem:[%s1 + $0x18] sm:$0xf]
  %v58 = vld [vmem:[%s1 + $0x1c] sm:$0xf]
  %v59 = vld [vmem:[%s1 + $0x20] sm:$0xf]
  %v60 = vld [vmem:[%s1 + $0x24] sm:$0xf]
  %v61 = vld [vmem:[%s1 + $0x28] sm:$0xf]
  %v62 = vld [vmem:[%s1 + $0x2c] sm:$0xf]
  %v63 = vld [vmem:[%s1 + $0x30] sm:$0xf]
  %v64 = vld [vmem:[%s1 + $0x34] sm:$0xf]
  %v65 = vld [vmem:[%s1 + $0x38] sm:$0xf]
  %v66 = vld [vmem:[%s1 + $0x3c] sm:$0xf]
  %v67 = vld [vmem:[%s1 + $0x40] sm:$0xf]
  %v68 = vld [vmem:[%s1 + $0x44] sm:$0xf]
  %v69 = vld [vmem:[%s1 + $0x48] sm:$0xf]
  %v70 = vld [vmem:[%s1 + $0x4c] sm:$0xf]
  %v71 = vld [vmem:[%s1 + $0x50] sm:$0xf]
  %v72 = vld [vmem:[%s1 + $0x54] sm:$0xf]
  %v73 = vld [vmem:[%s1 + $0x58] sm:$0xf]
  %v74 = vld [vmem:[%s1 + $0x5c] sm:$0xf]
  %v75 = vld [vmem:[%s1 + $0x60] sm:$0xf]
  %v76 = vld [vmem:[%s1 + $0x64] sm:$0xf]
  %v77 = vld [vmem:[%s1 + $0x68] sm:$0xf]
  %v78 = vld [vmem:[%s1 + $0x6c] sm:$0xf]
  %v79 = vld [vmem:[%s1 + $0x70] sm:$0xf]
  %v80 = vld [vmem:[%s1 + $0x74] sm:$0xf]
  %v81 = vld [vmem:[%s1 + $0x78] sm:$0xf]
  %v82 = vld [vmem:[%s1 + $0x7c] sm:$0xf]
  %v83 = vld [vmem:[%s1 + $0x80] sm:$0xf]
  %v84 = vld [vmem:[%s1 + $0x84] sm:$0xf]
  %v85 = vld [vmem:[%s1 + $0x88] sm:$0xf]
  %v86 = vld [vmem:[%s1 + $0x8c] sm:$0xf]
  %v87 = vld [vmem:[%s1 + $0x90] sm:$0xf]
  %v88 = vld [vmem:[%s1 + $0x94] sm:$0xf]
  %v89 = vld [vmem:[%s1 + $0x98] sm:$0xf]
  %v90 = vld [vmem:[%s1 + $0x9c] sm:$0xf]
  %v91 = vld [vmem:[%s1 + $0xa0] sm:$0xf]
  %v92 = vld [vmem:[%s1 + $0xa4] sm:$0xf]
  %v93 = vld [vmem:[%s1 + $0xa8] sm:$0xf]
  %v94 = vld [vmem:[%s1 + $0xac] sm:$0xf]
  %v95 = vld [vmem:[%s1 + $0xb0] sm:$0xf]
  %v96 = vld [vmem:[%s1 + $0xb4] sm:$0xf]
  %v97 = vld [vmem:[%s1 + $0xb8] sm:$0xf]
  %v98 = vld [vmem:[%s1 + $0xbc] sm:$0xf]
  %v99 = vld [vmem:[%s1 + $0xc0] sm:$0xf]
  %v100 = vld [vmem:[%s1 + $0xc4] sm:$0xf]
  %v101 = vld [vmem:[%s1 + $0xc8] sm:$0xf]
  %v102 = vld [vmem:[%s1 + $0xcc] sm:$0xf]
  %v103 = vld [vmem:[%s1 + $0xd0] sm:$0xf]
  %v104 = vld [vmem:[%s1 + $0xd4] sm:$0xf]
  %v105 = vld [vmem:[%s1 + $0xd8] sm:$0xf]
  %v106 = vld [vmem:[%s1 + $0xdc] sm:$0xf]
  %v107 = vld [vmem:[%s1 + $0xe0] sm:$0xf]
  %v108 = vld [vmem:[%s1 + $0xe4] sm:$0xf]
  %v109 = vld [vmem:[%s1 + $0xe8] sm:$0xf]
  %v110 = vld [vmem:[%s1 + $0xec] sm:$0xf]
  %v111 = vld [vmem:[%s1 + $0xf0] sm:$0xf]
  %v112 = vld [vmem:[%s1 + $0xf4] sm:$0xf]
  %v113 = vld [vmem:[%s1 + $0xf8] sm:$0xf]
  %v114 = vld [vmem:[%s1 + $0xfc] sm:$0xf]
  %v115 = vld [vmem:[%s1 + $0x100] sm:$0xf]
  %v116 = vld [vmem:[%s1 + $0x104] sm:$0xf]
  %v117 = vld [vmem:[%s1 + $0x108] sm:$0xf]
  %v118 = vld [vmem:[%s1 + $0x10c] sm:$0xf]
  %v119 = vld [vmem:[%s1 + $0x110] sm:$0xf]
  %v120 = vld [vmem:[%s1 + $0x114] sm:$0xf]
  %v121 = vld [vmem:[%s1 + $0x118] sm:$0xf]
  %v122 = vld [vmem:[%s1 + $0x11c] sm:$0xf]
  %v123 = vld [vmem:[%s2] sm:$0x1]
  %v125 = vlaneseq
  %v126 = vshrl.u32 %v125, 7
  %v127 = vsub.s32 0, %v126
  %v128 = vrot.slane %v123, %v127
  %v202 = vunpack.c.l.b16 %v51
  %v203 = vunpack.c.l.b16 %v52
  %v204 = vunpack.c.l.b16 %v53
  %v205 = vunpack.c.l.b16 %v54
  %v206 = vunpack.c.l.b16 %v55
  %v207 = vunpack.c.l.b16 %v56
  %v208 = vunpack.c.l.b16 %v57
  %v209 = vunpack.c.l.b16 %v58
  %v210 = vunpack.c.l.b16 %v59
  %v211 = vunpack.c.l.b16 %v60
  %v212 = vunpack.c.l.b16 %v61
  %v213 = vunpack.c.l.b16 %v62
  %v214 = vunpack.c.l.b16 %v63
  %v215 = vunpack.c.l.b16 %v64
  %v216 = vunpack.c.l.b16 %v65
  %v217 = vunpack.c.l.b16 %v66
  %v218 = vunpack.c.l.b16 %v67
  %v219 = vunpack.c.l.b16 %v68
  %v220 = vunpack.c.l.b16 %v69
  %v221 = vunpack.c.l.b16 %v70
  %v222 = vunpack.c.l.b16 %v71
  %v223 = vunpack.c.l.b16 %v72
  %v224 = vunpack.c.l.b16 %v73
  %v225 = vunpack.c.l.b16 %v74
  %v226 = vunpack.c.l.b16 %v75
  %v227 = vunpack.c.l.b16 %v76
  %v228 = vunpack.c.l.b16 %v77
  %v229 = vunpack.c.l.b16 %v78
  %v230 = vunpack.c.l.b16 %v79
  %v231 = vunpack.c.l.b16 %v80
  %v232 = vunpack.c.l.b16 %v81
  %v233 = vunpack.c.l.b16 %v82
  %v234 = vunpack.c.l.b16 %v83
  %v235 = vunpack.c.l.b16 %v84
  %v236 = vunpack.c.l.b16 %v85
  %v237 = vunpack.c.l.b16 %v86
  %v238 = vunpack.c.l.b16 %v87
  %v239 = vunpack.c.l.b16 %v88
  %v240 = vunpack.c.l.b16 %v89
  %v241 = vunpack.c.l.b16 %v90
  %v242 = vunpack.c.l.b16 %v91
  %v243 = vunpack.c.l.b16 %v92
  %v244 = vunpack.c.l.b16 %v93
  %v245 = vunpack.c.l.b16 %v94
  %v246 = vunpack.c.l.b16 %v95
  %v247 = vunpack.c.l.b16 %v96
  %v248 = vunpack.c.l.b16 %v97
  %v249 = vunpack.c.l.b16 %v98
  %v250 = vunpack.c.l.b16 %v99
  %v251 = vunpack.c.l.b16 %v100
  %v252 = vunpack.c.l.b16 %v101
  %v253 = vunpack.c.l.b16 %v102
  %v254 = vunpack.c.l.b16 %v103
  %v255 = vunpack.c.l.b16 %v104
  %v256 = vunpack.c.l.b16 %v105
  %v257 = vunpack.c.l.b16 %v106
  %v258 = vunpack.c.l.b16 %v107
  %v259 = vunpack.c.l.b16 %v108
  %v260 = vunpack.c.l.b16 %v109
  %v261 = vunpack.c.l.b16 %v110
  %v262 = vunpack.c.l.b16 %v111
  %v263 = vunpack.c.l.b16 %v112
  %v264 = vunpack.c.l.b16 %v113
  %v265 = vunpack.c.l.b16 %v114
  %v266 = vunpack.c.l.b16 %v115
  %v267 = vunpack.c.l.b16 %v116
  %v268 = vunpack.c.l.b16 %v117
  %v269 = vunpack.c.l.b16 %v118
  %v270 = vunpack.c.l.b16 %v119
  %v271 = vunpack.c.l.b16 %v120
  %v272 = vunpack.c.l.b16 %v121
  %v273 = vunpack.c.l.b16 %v122
  %v274 = vpack.c.b16 %v203, %v202
  %v275 = vpack.c.b16 %v205, %v204
  %v276 = vpack.c.b16 %v207, %v206
  %v277 = vpack.c.b16 %v209, %v208
  %v278 = vpack.c.b16 %v211, %v210
  %v279 = vpack.c.b16 %v213, %v212
  %v280 = vpack.c.b16 %v215, %v214
  %v281 = vpack.c.b16 %v217, %v216
  %v282 = vpack.c.b16 %v219, %v218
  %v283 = vpack.c.b16 %v221, %v220
  %v284 = vpack.c.b16 %v223, %v222
  %v285 = vpack.c.b16 %v225, %v224
  %v286 = vpack.c.b16 %v227, %v226
  %v287 = vpack.c.b16 %v229, %v228
  %v288 = vpack.c.b16 %v231, %v230
  %v289 = vpack.c.b16 %v233, %v232
  %v290 = vpack.c.b16 %v235, %v234
  %v291 = vpack.c.b16 %v237, %v236
  %v292 = vpack.c.b16 %v239, %v238
  %v293 = vpack.c.b16 %v241, %v240
  %v294 = vpack.c.b16 %v243, %v242
  %v295 = vpack.c.b16 %v245, %v244
  %v296 = vpack.c.b16 %v247, %v246
  %v297 = vpack.c.b16 %v249, %v248
  %v298 = vpack.c.b16 %v251, %v250
  %v299 = vpack.c.b16 %v253, %v252
  %v300 = vpack.c.b16 %v255, %v254
  %v301 = vpack.c.b16 %v257, %v256
  %v302 = vpack.c.b16 %v259, %v258
  %v303 = vpack.c.b16 %v261, %v260
  %v304 = vpack.c.b16 %v263, %v262
  %v305 = vpack.c.b16 %v265, %v264
  %v306 = vpack.c.b16 %v267, %v266
  %v307 = vpack.c.b16 %v269, %v268
  %v308 = vpack.c.b16 %v271, %v270
  %v309 = vpack.c.b16 %v273, %v272
  %vm346 = vcmask 523264
  %v348 = vsel %vm346, %v45, 0
  %v351 = vsel %vm346, %v50, 0
  %353 = vmatprep.subr.bf16.mxu0 0
  %354 = vmatpush1.bf16.msra.mxu0 %v281
  %355 = vmatprep.subr.bf16.mxu0 0
  %356 = vmatpush1.bf16.msra.mxu0 %v280
  %357 = vmatprep.subr.bf16.mxu0 0
  %358 = vmatpush1.bf16.msra.mxu0 %v279
  %359 = vmatprep.subr.bf16.mxu0 0
  %360 = vmatpush1.bf16.msra.mxu0 %v278
  %361 = vmatprep.subr.bf16.mxu0 0
  %362 = vmatpush1.bf16.msra.mxu0 %v277
  %363 = vmatprep.subr.bf16.mxu0 0
  %364 = vmatpush1.bf16.msra.mxu0 %v276
  %365 = vmatprep.subr.bf16.mxu0 0
  %366 = vmatpush1.bf16.msra.mxu0 %v275
  %367 = vmatprep.subr.bf16.mxu0 0
  %368 = vmatpush1.bf16.msra.mxu0 %v274
  %369 = vmatprep.subr.bf16.mxu0 0
  %370 = vmatpush2.bf16.msra.mxu0 %v289
  %371 = vmatprep.subr.bf16.mxu0 0
  %372 = vmatpush2.bf16.msra.mxu0 %v288
  %373 = vmatprep.subr.bf16.mxu0 0
  %374 = vmatpush2.bf16.msra.mxu0 %v287
  %375 = vmatprep.subr.bf16.mxu0 0
  %376 = vmatpush2.bf16.msra.mxu0 %v286
  %377 = vmatprep.subr.bf16.mxu0 0
  %378 = vmatpush2.bf16.msra.mxu0 %v285
  %379 = vmatprep.subr.bf16.mxu0 0
  %380 = vmatpush2.bf16.msra.mxu0 %v284
  %381 = vmatprep.subr.bf16.mxu0 0
  %382 = vmatpush2.bf16.msra.mxu0 %v283
  %383 = vmatprep.subr.bf16.mxu0 0
  %384 = vmatpush2.bf16.msra.mxu0 %v282
  %385 = vmatprep.mubr.bf16.mxu0 %v42
  %386 = vmatmul.mubr.bf16.gmra.mxu0 %v41
  %v387 = vpop.f32.mrf.mxu0
  %v388 = vadd.f32 %v128, %v387
  %v389 = vpop.f32.mrf.mxu0
  %v390 = vpop.f32.mrf.mxu0
  %v391 = vadd.f32 %v128, %v390
  %v392 = vpop.f32.mrf.mxu0
  %393 = vmatprep.mubr.bf16.mxu0 %v47
  %394 = vmatmul.mubr.bf16.gmra.mxu0 %v46
  %v395 = vpop.f32.mrf.mxu0
  %v396 = vadd.f32 %v128, %v395
  %v397 = vpop.f32.mrf.mxu0
  %v398 = vpop.f32.mrf.mxu0
  %v399 = vadd.f32 %v128, %v398
  %v400 = vpop.f32.mrf.mxu0
  %401 = vdwg.mxu0
  %402 = vmatprep.subr.bf16.mxu0 0
  %403 = vmatpush1.bf16.msra.mxu0 %v297
  %404 = vmatprep.subr.bf16.mxu0 0
  %405 = vmatpush1.bf16.msra.mxu0 %v296
  %406 = vmatprep.subr.bf16.mxu0 0
  %407 = vmatpush1.bf16.msra.mxu0 %v295
  %408 = vmatprep.subr.bf16.mxu0 0
  %409 = vmatpush1.bf16.msra.mxu0 %v294
  %410 = vmatprep.subr.bf16.mxu0 0
  %411 = vmatpush1.bf16.msra.mxu0 %v293
  %412 = vmatprep.subr.bf16.mxu0 0
  %413 = vmatpush1.bf16.msra.mxu0 %v292
  %414 = vmatprep.subr.bf16.mxu0 0
  %415 = vmatpush1.bf16.msra.mxu0 %v291
  %416 = vmatprep.subr.bf16.mxu0 0
  %417 = vmatpush1.bf16.msra.mxu0 %v290
  %418 = vmatprep.subr.bf16.mxu0 0
  %419 = vmatpush2.bf16.msra.mxu0 %v305
  %420 = vmatprep.subr.bf16.mxu0 0
  %421 = vmatpush2.bf16.msra.mxu0 %v304
  %422 = vmatprep.subr.bf16.mxu0 0
  %423 = vmatpush2.bf16.msra.mxu0 %v303
  %424 = vmatprep.subr.bf16.mxu0 0
  %425 = vmatpush2.bf16.msra.mxu0 %v302
  %426 = vmatprep.subr.bf16.mxu0 0
  %427 = vmatpush2.bf16.msra.mxu0 %v301
  %428 = vmatprep.subr.bf16.mxu0 0
  %429 = vmatpush2.bf16.msra.mxu0 %v300
  %430 = vmatprep.subr.bf16.mxu0 0
  %431 = vmatpush2.bf16.msra.mxu0 %v299
  %432 = vmatprep.subr.bf16.mxu0 0
  %433 = vmatpush2.bf16.msra.mxu0 %v298
  %434 = vmatprep.mubr.bf16.mxu0 %v44
  %435 = vmatmul.mubr.bf16.gmra.mxu0 %v43
  %v436 = vpop.f32.mrf.mxu0
  %v437 = vadd.f32 %v388, %v436
  %v438 = vpop.f32.mrf.mxu0
  %v439 = vpop.f32.mrf.mxu0
  %v440 = vadd.f32 %v391, %v439
  %v441 = vpop.f32.mrf.mxu0
  %442 = vmatprep.mubr.bf16.mxu0 %v49
  %443 = vmatmul.mubr.bf16.gmra.mxu0 %v48
  %v444 = vpop.f32.mrf.mxu0
  %v445 = vadd.f32 %v396, %v444
  %v446 = vpop.f32.mrf.mxu0
  %v447 = vpop.f32.mrf.mxu0
  %v448 = vadd.f32 %v399, %v447
  %v449 = vpop.f32.mrf.mxu0
  %450 = vdwg.mxu0
  %451 = vmatprep.subr.bf16.mxu0 0
  %452 = vmatpush1.bf16.msra.mxu0 0
  %453 = vmatprep.subr.bf16.mxu0 0
  %454 = vmatpush1.bf16.msra.mxu0 0
  %455 = vmatprep.subr.bf16.mxu0 0
  %456 = vmatpush1.bf16.msra.mxu0 0
  %457 = vmatprep.subr.bf16.mxu0 0
  %458 = vmatpush1.bf16.msra.mxu0 0
  %459 = vmatprep.subr.bf16.mxu0 0
  %460 = vmatpush1.bf16.msra.mxu0 %v309
  %461 = vmatprep.subr.bf16.mxu0 0
  %462 = vmatpush1.bf16.msra.mxu0 %v308
  %463 = vmatprep.subr.bf16.mxu0 0
  %464 = vmatpush1.bf16.msra.mxu0 %v307
  %465 = vmatprep.subr.bf16.mxu0 0
  %466 = vmatpush1.bf16.msra.mxu0 %v306
  %467 = vmatprep.subr.bf16.mxu0 0
  %468 = vmatpush2.bf16.msra.mxu0 0
  %469 = vmatprep.subr.bf16.mxu0 0
  %470 = vmatpush2.bf16.msra.mxu0 0
  %471 = vmatprep.subr.bf16.mxu0 0
  %472 = vmatpush2.bf16.msra.mxu0 0
  %473 = vmatprep.subr.bf16.mxu0 0
  %474 = vmatpush2.bf16.msra.mxu0 0
  %475 = vmatprep.subr.bf16.mxu0 0
  %476 = vmatpush2.bf16.msra.mxu0 0
  %477 = vmatprep.subr.bf16.mxu0 0
  %478 = vmatpush2.bf16.msra.mxu0 0
  %479 = vmatprep.subr.bf16.mxu0 0
  %480 = vmatpush2.bf16.msra.mxu0 0
  %481 = vmatprep.subr.bf16.mxu0 0
  %482 = vmatpush2.bf16.msra.mxu0 0
  %483 = vmatprep.mubr.bf16.mxu0 0
  %484 = vmatmul.mubr.bf16.gmra.mxu0 %v348
  %v485 = vpop.f32.mrf.mxu0
  %v486 = vadd.f32 %v437, %v485
  %v487 = vpop.f32.mrf.mxu0
  %v488 = vpop.f32.mrf.mxu0
  %v489 = vadd.f32 %v440, %v488
  %v490 = vpop.f32.mrf.mxu0
  %491 = vmatprep.mubr.bf16.mxu0 0
  %492 = vmatmul.mubr.bf16.gmra.mxu0 %v351
  %v493 = vpop.f32.mrf.mxu0
  %v494 = vadd.f32 %v445, %v493
  %v495 = vpop.f32.mrf.mxu0
  %v496 = vpop.f32.mrf.mxu0
  %v497 = vadd.f32 %v448, %v496
  %v498 = vpop.f32.mrf.mxu0
  %499 = vdwg.mxu0
  %v500 = vmax.f32 %v486, 0.0
  %v501 = vmax.f32 %v489, 0.0
  %v502 = vmax.f32 %v494, 0.0
  %v503 = vmax.f32 %v497, 0.0
  %v504 = vld [vmem:[%s3] sm:$0x1]
  %v506 = vlaneseq
  %v507 = vshrl.u32 %v506, 7
  %v508 = vsub.s32 0, %v507
  %v509 = vrot.slane %v504, %v508
  %v511 = vmul.f32 %v500, %v509
  %v512 = vmul.f32 %v501, %v509
  %v513 = vmul.f32 %v502, %v509
  %v514 = vmul.f32 %v503, %v509
  %v515 = vld [vmem:[%s4] sm:$0x1]
  %v517 = vlaneseq
  %v518 = vshrl.u32 %v517, 7
  %v519 = vsub.s32 0, %v518
  %v520 = vrot.slane %v515, %v519
  %v522 = vadd.f32 %v511, %v520
  %v523 = vadd.f32 %v512, %v520
  %v524 = vadd.f32 %v513, %v520
  %v525 = vadd.f32 %v514, %v520
  %526 = vst.msk [vmem:[%s5] sm:$0xff] %vm346, %v522
  %527 = vst.msk [vmem:[%s5 + $0x8] sm:$0xff] %vm346, %v523
  %528 = vst.msk [vmem:[%s5 + $0x10] sm:$0xff] %vm346, %v524
  %529 = vst.msk [vmem:[%s5 + $0x18] sm:$0xff] %vm346, %v525
  // Predicated region
  $region22: #{qnetwork_forward.6} parent=0 // pred_check
    _
  $region23: #{qnetwork_forward.6} parent=0 // pred_check_branch
    %531 = sbr.rel (0) target = $region25
  $region24: #{qnetwork_forward.6} parent=0 // pred_region
    _
  $region25: #{qnetwork_forward.6} parent=0 // pred_fallthru
    _
  // Predicated region
  $region26: #{qnetwork_forward.6} parent=0 // pred_check
    _
  $region27: #{qnetwork_forward.6} parent=0 // pred_check_branch
    %533 = sbr.rel (0) target = $region29
  $region28: #{qnetwork_forward.6} parent=0 // pred_region
    _
  $region29: #{qnetwork_forward.6} parent=0 // pred_fallthru
    _

// kernel: qnetwork_forward.7
$region0: #{qnetwork_forward.7}
  #allocation0 [shape = 'u32[]', space=smem, size = 0x4, offset = 0x4, fixed_abs, tag = 'smem constant byte address 0x4 - core index']
  #allocation1 [shape = 'u32[144,128]{1,0:T(1,128)}', space=vmem, size = 0x12000, scoped, tag = 'internal scratch']
  #allocation2 [shape = 'f32[1,1]{1,0:T(1,128)S(1)}', space=vmem, size = 0x200, scoped, tag = 'scoped memory for qnetwork_forward.7']
  %s0 = inlined_call_operand.vmem [shape: f32[2,1024], index: 0, kind: input, shape index: {}]
  %s1 = inlined_call_operand.vmem [shape: f32[2,3], index: 1, kind: input, shape index: {}]
  %s2 = inlined_call_operand.vmem [shape: bf16[1024,256], index: 2, kind: input, shape index: {}]
  %s3 = inlined_call_operand.vmem [shape: f32[1,256], index: 3, kind: input, shape index: {}]
  %s4 = inlined_call_operand.vmem [shape: bf16[256,256], index: 4, kind: input, shape index: {}]
  %s5 = inlined_call_operand.vmem [shape: f32[1,256], index: 5, kind: input, shape index: {}]
  %s6 = inlined_call_operand.vmem [shape: bf16[256,64], index: 6, kind: input, shape index: {}]
  %s7 = inlined_call_operand.vmem [shape: f32[1,64], index: 7, kind: input, shape index: {}]
  %s8 = inlined_call_operand.vmem [shape: bf16[3,16], index: 8, kind: input, shape index: {}]
  %s9 = inlined_call_operand.vmem [shape: f32[1,16], index: 9, kind: input, shape index: {}]
  %s10 = inlined_call_operand.vmem [shape: bf16[16,32], index: 10, kind: input, shape index: {}]
  %s11 = inlined_call_operand.vmem [shape: f32[1,32], index: 11, kind: input, shape index: {}]
  %s12 = inlined_call_operand.vmem [shape: bf16[32,64], index: 12, kind: input, shape index: {}]
  %s13 = inlined_call_operand.vmem [shape: f32[1,64], index: 13, kind: input, shape index: {}]
  %s14 = inlined_call_operand.vmem [shape: bf16[64,128], index: 14, kind: input, shape index: {}]
  %s15 = inlined_call_operand.vmem [shape: f32[1,128], index: 15, kind: input, shape index: {}]
  %s16 = inlined_call_operand.vmem [shape: bf16[128,256], index: 16, kind: input, shape index: {}]
  %s17 = inlined_call_operand.vmem [shape: f32[1,256], index: 17, kind: input, shape index: {}]
  %s18 = inlined_call_operand.vmem [shape: bf16[256,256], index: 18, kind: input, shape index: {}]
  %s19 = inlined_call_operand.vmem [shape: f32[1,256], index: 19, kind: input, shape index: {}]
  %s20 = inlined_call_operand.vmem [shape: bf16[256,16], index: 20, kind: input, shape index: {}]
  %s21 = inlined_call_operand.vmem [shape: f32[1,16], index: 21, kind: input, shape index: {}]
  %s22 = inlined_call_operand.vmem [shape: bf16[16,1], index: 22, kind: input, shape index: {}]
  %s23 = inlined_call_operand.<no memory space> [shape: f32[1,1], index: 23, kind: input, shape index: {}]
  %s24 = inlined_call_operand.vmem [shape: f32[2,1], index: 24, kind: output, shape index: {}]
  %s25 = sld [smem:[#allocation0]]
  $region106: #{qnetwork_forward.7} parent=0
    _
  %s27 = ssub.s32 1, %s25
  %s28 = scalar_select 0, %s27, %s25
  %v29 = vstv %s23
  %30 = vst [vmem:[#allocation2] sm:$0x1] %v29
  // Predicated region
  $region2: #{qnetwork_forward.7} parent=0 // pred_check
    _
  $region3: #{qnetwork_forward.7} parent=0 // pred_check_branch
    %32 = sbr.rel (0) target = $region5
  $region4: #{qnetwork_forward.7} parent=0 // pred_region
    _
  $region5: #{qnetwork_forward.7} parent=0 // pred_fallthru
    _
  // Predicated region
  $region6: #{qnetwork_forward.7} parent=0 // pred_check
    _
  $region7: #{qnetwork_forward.7} parent=0 // pred_check_branch
    %34 = sbr.rel (0) target = $region9
  $region8: #{qnetwork_forward.7} parent=0 // pred_region
    _
  $region9: #{qnetwork_forward.7} parent=0 // pred_fallthru
    _
  // Predicated region
  $region10: #{qnetwork_forward.7} parent=0 // pred_check
    _
  $region11: #{qnetwork_forward.7} parent=0 // pred_check_branch
    %36 = sbr.rel (0) target = $region13
  $region12: #{qnetwork_forward.7} parent=0 // pred_region
    _
  $region13: #{qnetwork_forward.7} parent=0 // pred_fallthru
    _
  // Predicated region
  $region14: #{qnetwork_forward.7} parent=0 // pred_check
    _
  $region15: #{qnetwork_forward.7} parent=0 // pred_check_branch
    %38 = sbr.rel (0) target = $region17
  $region16: #{qnetwork_forward.7} parent=0 // pred_region
    _
  $region17: #{qnetwork_forward.7} parent=0 // pred_fallthru
    _
  // Predicated region
  $region18: #{qnetwork_forward.7} parent=0 // pred_check
    _
  $region19: #{qnetwork_forward.7} parent=0 // pred_check_branch
    %40 = sbr.rel (0) target = $region21
  $region20: #{qnetwork_forward.7} parent=0 // pred_region
    _
  $region21: #{qnetwork_forward.7} parent=0 // pred_fallthru
    _
  // Predicated region
  $region22: #{qnetwork_forward.7} parent=0 // pred_check
    _
  $region23: #{qnetwork_forward.7} parent=0 // pred_check_branch
    %42 = sbr.rel (0) target = $region25
  $region24: #{qnetwork_forward.7} parent=0 // pred_region
    _
  $region25: #{qnetwork_forward.7} parent=0 // pred_fallthru
    _
  // Predicated region
  $region26: #{qnetwork_forward.7} parent=0 // pred_check
    _
  $region27: #{qnetwork_forward.7} parent=0 // pred_check_branch
    %44 = sbr.rel (0) target = $region29
  $region28: #{qnetwork_forward.7} parent=0 // pred_region
    _
  $region29: #{qnetwork_forward.7} parent=0 // pred_fallthru
    _
  // Predicated region
  $region30: #{qnetwork_forward.7} parent=0 // pred_check
    _
  $region31: #{qnetwork_forward.7} parent=0 // pred_check_branch
    %46 = sbr.rel (0) target = $region33
  $region32: #{qnetwork_forward.7} parent=0 // pred_region
    _
  $region33: #{qnetwork_forward.7} parent=0 // pred_fallthru
    _
  // Predicated region
  $region34: #{qnetwork_forward.7} parent=0 // pred_check
    _
  $region35: #{qnetwork_forward.7} parent=0 // pred_check_branch
    %48 = sbr.rel (0) target = $region37
  $region36: #{qnetwork_forward.7} parent=0 // pred_region
    _
  $region37: #{qnetwork_forward.7} parent=0 // pred_fallthru
    _
  // Predicated region
  $region38: #{qnetwork_forward.7} parent=0 // pred_check
    _
  $region39: #{qnetwork_forward.7} parent=0 // pred_check_branch
    %50 = sbr.rel (0) target = $region41
  $region40: #{qnetwork_forward.7} parent=0 // pred_region
    _
  $region41: #{qnetwork_forward.7} parent=0 // pred_fallthru
    _
  // Predicated region
  $region42: #{qnetwork_forward.7} parent=0 // pred_check
    _
  $region43: #{qnetwork_forward.7} parent=0 // pred_check_branch
    %52 = sbr.rel (0) target = $region45
  $region44: #{qnetwork_forward.7} parent=0 // pred_region
    _
  $region45: #{qnetwork_forward.7} parent=0 // pred_fallthru
    _
  // Predicated region
  $region46: #{qnetwork_forward.7} parent=0 // pred_check
    _
  $region47: #{qnetwork_forward.7} parent=0 // pred_check_branch
    %54 = sbr.rel (0) target = $region49
  $region48: #{qnetwork_forward.7} parent=0 // pred_region
    _
  $region49: #{qnetwork_forward.7} parent=0 // pred_fallthru
    _
  // Predicated region
  $region50: #{qnetwork_forward.7} parent=0 // pred_check
    _
  $region51: #{qnetwork_forward.7} parent=0 // pred_check_branch
    %56 = sbr.rel (0) target = $region53
  $region52: #{qnetwork_forward.7} parent=0 // pred_region
    _
  $region53: #{qnetwork_forward.7} parent=0 // pred_fallthru
    _
  // Predicated region
  $region54: #{qnetwork_forward.7} parent=0 // pred_check
    _
  $region55: #{qnetwork_forward.7} parent=0 // pred_check_branch
    %58 = sbr.rel (0) target = $region57
  $region56: #{qnetwork_forward.7} parent=0 // pred_region
    _
  $region57: #{qnetwork_forward.7} parent=0 // pred_fallthru
    _
  // Predicated region
  $region58: #{qnetwork_forward.7} parent=0 // pred_check
    _
  $region59: #{qnetwork_forward.7} parent=0 // pred_check_branch
    %60 = sbr.rel (0) target = $region61
  $region60: #{qnetwork_forward.7} parent=0 // pred_region
    _
  $region61: #{qnetwork_forward.7} parent=0 // pred_fallthru
    _
  // Predicated region
  $region62: #{qnetwork_forward.7} parent=0 // pred_check
    _
  $region63: #{qnetwork_forward.7} parent=0 // pred_check_branch
    %62 = sbr.rel (0) target = $region65
  $region64: #{qnetwork_forward.7} parent=0 // pred_region
    _
  $region65: #{qnetwork_forward.7} parent=0 // pred_fallthru
    _
  // Predicated region
  $region66: #{qnetwork_forward.7} parent=0 // pred_check
    _
  $region67: #{qnetwork_forward.7} parent=0 // pred_check_branch
    %64 = sbr.rel (0) target = $region69
  $region68: #{qnetwork_forward.7} parent=0 // pred_region
    _
  $region69: #{qnetwork_forward.7} parent=0 // pred_fallthru
    _
  // Predicated region
  $region70: #{qnetwork_forward.7} parent=0 // pred_check
    _
  $region71: #{qnetwork_forward.7} parent=0 // pred_check_branch
    %66 = sbr.rel (0) target = $region73
  $region72: #{qnetwork_forward.7} parent=0 // pred_region
    _
  $region73: #{qnetwork_forward.7} parent=0 // pred_fallthru
    _
  // Predicated region
  $region74: #{qnetwork_forward.7} parent=0 // pred_check
    _
  $region75: #{qnetwork_forward.7} parent=0 // pred_check_branch
    %68 = sbr.rel (0) target = $region77
  $region76: #{qnetwork_forward.7} parent=0 // pred_region
    _
  $region77: #{qnetwork_forward.7} parent=0 // pred_fallthru
    _
  // Predicated region
  $region78: #{qnetwork_forward.7} parent=0 // pred_check
    _
  $region79: #{qnetwork_forward.7} parent=0 // pred_check_branch
    %70 = sbr.rel (0) target = $region81
  $region80: #{qnetwork_forward.7} parent=0 // pred_region
    _
  $region81: #{qnetwork_forward.7} parent=0 // pred_fallthru
    _
  // Predicated region
  $region82: #{qnetwork_forward.7} parent=0 // pred_check
    _
  $region83: #{qnetwork_forward.7} parent=0 // pred_check_branch
    %72 = sbr.rel (0) target = $region85
  $region84: #{qnetwork_forward.7} parent=0 // pred_region
    _
  $region85: #{qnetwork_forward.7} parent=0 // pred_fallthru
    _
  // Predicated region
  $region86: #{qnetwork_forward.7} parent=0 // pred_check
    _
  $region87: #{qnetwork_forward.7} parent=0 // pred_check_branch
    %74 = sbr.rel (0) target = $region89
  $region88: #{qnetwork_forward.7} parent=0 // pred_region
    _
  $region89: #{qnetwork_forward.7} parent=0 // pred_fallthru
    _
  // Predicated region
  $region90: #{qnetwork_forward.7} parent=0 // pred_check
    _
  $region91: #{qnetwork_forward.7} parent=0 // pred_check_branch
    %76 = sbr.rel (0) target = $region93
  $region92: #{qnetwork_forward.7} parent=0 // pred_region
    _
  $region93: #{qnetwork_forward.7} parent=0 // pred_fallthru
    _
  // Predicated region
  $region94: #{qnetwork_forward.7} parent=0 // pred_check
    _
  $region95: #{qnetwork_forward.7} parent=0 // pred_check_branch
    %78 = sbr.rel (0) target = $region97
  $region96: #{qnetwork_forward.7} parent=0 // pred_region
    _
  $region97: #{qnetwork_forward.7} parent=0 // pred_fallthru
    _
  %v80 = vld [vmem:[%s0] sm:$0xff]
  %v81 = vld [vmem:[%s0 + $0x8] sm:$0xff]
  %v82 = vld [vmem:[%s2] sm:$0xff]
  %v83 = vld [vmem:[%s2 + $0x8] sm:$0xff]
  %v84 = vld [vmem:[%s2 + $0x10] sm:$0xff]
  %v85 = vld [vmem:[%s2 + $0x18] sm:$0xff]
  %v86 = vld [vmem:[%s2 + $0x20] sm:$0xff]
  %v87 = vld [vmem:[%s2 + $0x28] sm:$0xff]
  %v88 = vld [vmem:[%s2 + $0x30] sm:$0xff]
  %v89 = vld [vmem:[%s2 + $0x38] sm:$0xff]
  %v90 = vld [vmem:[%s2 + $0x40] sm:$0xff]
  %v91 = vld [vmem:[%s2 + $0x48] sm:$0xff]
  %v92 = vld [vmem:[%s2 + $0x50] sm:$0xff]
  %v93 = vld [vmem:[%s2 + $0x58] sm:$0xff]
  %v94 = vld [vmem:[%s2 + $0x60] sm:$0xff]
  %v95 = vld [vmem:[%s2 + $0x68] sm:$0xff]
  %v96 = vld [vmem:[%s2 + $0x70] sm:$0xff]
  %v97 = vld [vmem:[%s2 + $0x78] sm:$0xff]
  %v98 = vld [vmem:[%s2 + $0x80] sm:$0xff]
  %v99 = vld [vmem:[%s2 + $0x88] sm:$0xff]
  %v100 = vld [vmem:[%s2 + $0x90] sm:$0xff]
  %v101 = vld [vmem:[%s2 + $0x98] sm:$0xff]
  %v102 = vld [vmem:[%s2 + $0xa0] sm:$0xff]
  %v103 = vld [vmem:[%s2 + $0xa8] sm:$0xff]
  %v104 = vld [vmem:[%s2 + $0xb0] sm:$0xff]
  %v105 = vld [vmem:[%s2 + $0xb8] sm:$0xff]
  %v106 = vld [vmem:[%s2 + $0xc0] sm:$0xff]
  %v107 = vld [vmem:[%s2 + $0xc8] sm:$0xff]
  %v108 = vld [vmem:[%s2 + $0xd0] sm:$0xff]
  %v109 = vld [vmem:[%s2 + $0xd8] sm:$0xff]
  %v110 = vld [vmem:[%s2 + $0xe0] sm:$0xff]
  %v111 = vld [vmem:[%s2 + $0xe8] sm:$0xff]
  %v112 = vld [vmem:[%s2 + $0xf0] sm:$0xff]
  %v113 = vld [vmem:[%s2 + $0xf8] sm:$0xff]
  %v114 = vld [vmem:[%s2 + $0x100] sm:$0xff]
  %v115 = vld [vmem:[%s2 + $0x108] sm:$0xff]
  %v116 = vld [vmem:[%s2 + $0x110] sm:$0xff]
  %v117 = vld [vmem:[%s2 + $0x118] sm:$0xff]
  %v118 = vld [vmem:[%s2 + $0x120] sm:$0xff]
  %v119 = vld [vmem:[%s2 + $0x128] sm:$0xff]
  %v120 = vld [vmem:[%s2 + $0x130] sm:$0xff]
  %v121 = vld [vmem:[%s2 + $0x138] sm:$0xff]
  %v122 = vld [vmem:[%s2 + $0x140] sm:$0xff]
  %v123 = vld [vmem:[%s2 + $0x148] sm:$0xff]
  %v124 = vld [vmem:[%s2 + $0x150] sm:$0xff]
  %v125 = vld [vmem:[%s2 + $0x158] sm:$0xff]
  %v126 = vld [vmem:[%s2 + $0x160] sm:$0xff]
  %v127 = vld [vmem:[%s2 + $0x168] sm:$0xff]
  %v128 = vld [vmem:[%s2 + $0x170] sm:$0xff]
  %v129 = vld [vmem:[%s2 + $0x178] sm:$0xff]
  %v130 = vld [vmem:[%s2 + $0x180] sm:$0xff]
  %v131 = vld [vmem:[%s2 + $0x188] sm:$0xff]
  %v132 = vld [vmem:[%s2 + $0x190] sm:$0xff]
  %v133 = vld [vmem:[%s2 + $0x198] sm:$0xff]
  %v134 = vld [vmem:[%s2 + $0x1a0] sm:$0xff]
  %v135 = vld [vmem:[%s2 + $0x1a8] sm:$0xff]
  %v136 = vld [vmem:[%s2 + $0x1b0] sm:$0xff]
  %v137 = vld [vmem:[%s2 + $0x1b8] sm:$0xff]
  %v138 = vld [vmem:[%s2 + $0x1c0] sm:$0xff]
  %v139 = vld [vmem:[%s2 + $0x1c8] sm:$0xff]
  %v140 = vld [vmem:[%s2 + $0x1d0] sm:$0xff]
  %v141 = vld [vmem:[%s2 + $0x1d8] sm:$0xff]
  %v142 = vld [vmem:[%s2 + $0x1e0] sm:$0xff]
  %v143 = vld [vmem:[%s2 + $0x1e8] sm:$0xff]
  %v144 = vld [vmem:[%s2 + $0x1f0] sm:$0xff]
  %v145 = vld [vmem:[%s2 + $0x1f8] sm:$0xff]
  %v146 = vld [vmem:[%s2 + $0x200] sm:$0xff]
  %v147 = vld [vmem:[%s2 + $0x208] sm:$0xff]
  %v148 = vld [vmem:[%s2 + $0x210] sm:$0xff]
  %v149 = vld [vmem:[%s2 + $0x218] sm:$0xff]
  %v150 = vld [vmem:[%s2 + $0x220] sm:$0xff]
  %v151 = vld [vmem:[%s2 + $0x228] sm:$0xff]
  %v152 = vld [vmem:[%s2 + $0x230] sm:$0xff]
  %v153 = vld [vmem:[%s2 + $0x238] sm:$0xff]
  %v154 = vld [vmem:[%s2 + $0x240] sm:$0xff]
  %v155 = vld [vmem:[%s2 + $0x248] sm:$0xff]
  %v156 = vld [vmem:[%s2 + $0x250] sm:$0xff]
  %v157 = vld [vmem:[%s2 + $0x258] sm:$0xff]
  %v158 = vld [vmem:[%s2 + $0x260] sm:$0xff]
  %v159 = vld [vmem:[%s2 + $0x268] sm:$0xff]
  %v160 = vld [vmem:[%s2 + $0x270] sm:$0xff]
  %v161 = vld [vmem:[%s2 + $0x278] sm:$0xff]
  %v162 = vld [vmem:[%s2 + $0x280] sm:$0xff]
  %v163 = vld [vmem:[%s2 + $0x288] sm:$0xff]
  %v164 = vld [vmem:[%s2 + $0x290] sm:$0xff]
  %v165 = vld [vmem:[%s2 + $0x298] sm:$0xff]
  %v166 = vld [vmem:[%s2 + $0x2a0] sm:$0xff]
  %v167 = vld [vmem:[%s2 + $0x2a8] sm:$0xff]
  %v168 = vld [vmem:[%s2 + $0x2b0] sm:$0xff]
  %v169 = vld [vmem:[%s2 + $0x2b8] sm:$0xff]
  %v170 = vld [vmem:[%s2 + $0x2c0] sm:$0xff]
  %v171 = vld [vmem:[%s2 + $0x2c8] sm:$0xff]
  %v172 = vld [vmem:[%s2 + $0x2d0] sm:$0xff]
  %v173 = vld [vmem:[%s2 + $0x2d8] sm:$0xff]
  %v174 = vld [vmem:[%s2 + $0x2e0] sm:$0xff]
  %v175 = vld [vmem:[%s2 + $0x2e8] sm:$0xff]
  %v176 = vld [vmem:[%s2 + $0x2f0] sm:$0xff]
  %v177 = vld [vmem:[%s2 + $0x2f8] sm:$0xff]
  %v178 = vld [vmem:[%s2 + $0x300] sm:$0xff]
  %v179 = vld [vmem:[%s2 + $0x308] sm:$0xff]
  %v180 = vld [vmem:[%s2 + $0x310] sm:$0xff]
  %v181 = vld [vmem:[%s2 + $0x318] sm:$0xff]
  %v182 = vld [vmem:[%s2 + $0x320] sm:$0xff]
  %v183 = vld [vmem:[%s2 + $0x328] sm:$0xff]
  %v184 = vld [vmem:[%s2 + $0x330] sm:$0xff]
  %v185 = vld [vmem:[%s2 + $0x338] sm:$0xff]
  %v186 = vld [vmem:[%s2 + $0x340] sm:$0xff]
  %v187 = vld [vmem:[%s2 + $0x348] sm:$0xff]
  %v188 = vld [vmem:[%s2 + $0x350] sm:$0xff]
  %v189 = vld [vmem:[%s2 + $0x358] sm:$0xff]
  %v190 = vld [vmem:[%s2 + $0x360] sm:$0xff]
  %v191 = vld [vmem:[%s2 + $0x368] sm:$0xff]
  %v192 = vld [vmem:[%s2 + $0x370] sm:$0xff]
  %v193 = vld [vmem:[%s2 + $0x378] sm:$0xff]
  %v194 = vld [vmem:[%s2 + $0x380] sm:$0xff]
  %v195 = vld [vmem:[%s2 + $0x388] sm:$0xff]
  %v196 = vld [vmem:[%s2 + $0x390] sm:$0xff]
  %v197 = vld [vmem:[%s2 + $0x398] sm:$0xff]
  %v198 = vld [vmem:[%s2 + $0x3a0] sm:$0xff]
  %v199 = vld [vmem:[%s2 + $0x3a8] sm:$0xff]
  %v200 = vld [vmem:[%s2 + $0x3b0] sm:$0xff]
  %v201 = vld [vmem:[%s2 + $0x3b8] sm:$0xff]
  %v202 = vld [vmem:[%s2 + $0x3c0] sm:$0xff]
  %v203 = vld [vmem:[%s2 + $0x3c8] sm:$0xff]
  %v204 = vld [vmem:[%s2 + $0x3d0] sm:$0xff]
  %v205 = vld [vmem:[%s2 + $0x3d8] sm:$0xff]
  %v206 = vld [vmem:[%s2 + $0x3e0] sm:$0xff]
  %v207 = vld [vmem:[%s2 + $0x3e8] sm:$0xff]
  %v208 = vld [vmem:[%s2 + $0x3f0] sm:$0xff]
  %v209 = vld [vmem:[%s2 + $0x3f8] sm:$0xff]
  %v210 = vld [vmem:[%s3] sm:$0x3]
  %v213 = vcombine.high %v80, %v80
  %v215 = vunpack.c.l.s4 1983009808
  %v216 = vunpack.c.0.s8 %v215
  %v217 = vlaneseq
  %v218 = vshrl.u32 %v217, 7
  %v219 = vsub.s32 %v216, %v218
  %v220 = vrot.slane %v80, %v219
  %v222 = vunpack.c.l.s4 1983009808
  %v223 = vunpack.c.0.s8 %v222
  %v224 = vlaneseq
  %v225 = vshrl.u32 %v224, 7
  %v226 = vsub.s32 %v223, %v225
  %v227 = vrot.slane %v213, %v226
  %v228 = vcombine.high %v220, %v220
  %v229 = vcombine.high %v227, %v227
  %v230 = vcombine.high %v81, %v81
  %v232 = vunpack.c.l.s4 1983009808
  %v233 = vunpack.c.0.s8 %v232
  %v234 = vlaneseq
  %v235 = vshrl.u32 %v234, 7
  %v236 = vsub.s32 %v233, %v235
  %v237 = vrot.slane %v81, %v236
  %v239 = vunpack.c.l.s4 1983009808
  %v240 = vunpack.c.0.s8 %v239
  %v241 = vlaneseq
  %v242 = vshrl.u32 %v241, 7
  %v243 = vsub.s32 %v240, %v242
  %v244 = vrot.slane %v230, %v243
  %v245 = vcombine.high %v237, %v237
  %v246 = vcombine.high %v244, %v244
  %v255 = vpack.c.bf16 %v220, %v220
  %v256 = vpack.c.bf16 %v228, %v228
  %v257 = vpack.c.bf16 %v227, %v227
  %v258 = vpack.c.bf16 %v229, %v229
  %v259 = vpack.c.bf16 %v237, %v237
  %v260 = vpack.c.bf16 %v245, %v245
  %v261 = vpack.c.bf16 %v244, %v244
  %v262 = vpack.c.bf16 %v246, %v246
  %v264 = vlaneseq
  %v265 = vshrl.u32 %v264, 7
  %v266 = vsub.s32 0, %v265
  %v267 = vrot.slane %v210, %v266
  %v268 = vlaneseq
  %v269 = vshrl.u32 %v268, 7
  %v270 = vsub.s32 1, %v269
  %v271 = vrot.slane %v210, %v270
  %v402 = vunpack.c.l.b16 %v82
  %v403 = vunpack.c.h.b16 %v82
  %v404 = vunpack.c.l.b16 %v83
  %v405 = vunpack.c.h.b16 %v83
  %v406 = vunpack.c.l.b16 %v84
  %v407 = vunpack.c.h.b16 %v84
  %v408 = vunpack.c.l.b16 %v85
  %v409 = vunpack.c.h.b16 %v85
  %v410 = vunpack.c.l.b16 %v86
  %v411 = vunpack.c.h.b16 %v86
  %v412 = vunpack.c.l.b16 %v87
  %v413 = vunpack.c.h.b16 %v87
  %v414 = vunpack.c.l.b16 %v88
  %v415 = vunpack.c.h.b16 %v88
  %v416 = vunpack.c.l.b16 %v89
  %v417 = vunpack.c.h.b16 %v89
  %v418 = vunpack.c.l.b16 %v90
  %v419 = vunpack.c.h.b16 %v90
  %v420 = vunpack.c.l.b16 %v91
  %v421 = vunpack.c.h.b16 %v91
  %v422 = vunpack.c.l.b16 %v92
  %v423 = vunpack.c.h.b16 %v92
  %v424 = vunpack.c.l.b16 %v93
  %v425 = vunpack.c.h.b16 %v93
  %v426 = vunpack.c.l.b16 %v94
  %v427 = vunpack.c.h.b16 %v94
  %v428 = vunpack.c.l.b16 %v95
  %v429 = vunpack.c.h.b16 %v95
  %v430 = vunpack.c.l.b16 %v96
  %v431 = vunpack.c.h.b16 %v96
  %v432 = vunpack.c.l.b16 %v97
  %v433 = vunpack.c.h.b16 %v97
  %v434 = vunpack.c.l.b16 %v98
  %v435 = vunpack.c.h.b16 %v98
  %v436 = vunpack.c.l.b16 %v99
  %v437 = vunpack.c.h.b16 %v99
  %v438 = vunpack.c.l.b16 %v100
  %v439 = vunpack.c.h.b16 %v100
  %v440 = vunpack.c.l.b16 %v101
  %v441 = vunpack.c.h.b16 %v101
  %v442 = vunpack.c.l.b16 %v102
  %v443 = vunpack.c.h.b16 %v102
  %v444 = vunpack.c.l.b16 %v103
  %v445 = vunpack.c.h.b16 %v103
  %v446 = vunpack.c.l.b16 %v104
  %v447 = vunpack.c.h.b16 %v104
  %v448 = vunpack.c.l.b16 %v105
  %v449 = vunpack.c.h.b16 %v105
  %v450 = vunpack.c.l.b16 %v106
  %v451 = vunpack.c.h.b16 %v106
  %v452 = vunpack.c.l.b16 %v107
  %v453 = vunpack.c.h.b16 %v107
  %v454 = vunpack.c.l.b16 %v108
  %v455 = vunpack.c.h.b16 %v108
  %v456 = vunpack.c.l.b16 %v109
  %v457 = vunpack.c.h.b16 %v109
  %v458 = vunpack.c.l.b16 %v110
  %v459 = vunpack.c.h.b16 %v110
  %v460 = vunpack.c.l.b16 %v111
  %v461 = vunpack.c.h.b16 %v111
  %v462 = vunpack.c.l.b16 %v112
  %v463 = vunpack.c.h.b16 %v112
  %v464 = vunpack.c.l.b16 %v113
  %v465 = vunpack.c.h.b16 %v113
  %v466 = vunpack.c.l.b16 %v114
  %v467 = vunpack.c.h.b16 %v114
  %v468 = vunpack.c.l.b16 %v115
  %v469 = vunpack.c.h.b16 %v115
  %v470 = vunpack.c.l.b16 %v116
  %v471 = vunpack.c.h.b16 %v116
  %v472 = vunpack.c.l.b16 %v117
  %v473 = vunpack.c.h.b16 %v117
  %v474 = vunpack.c.l.b16 %v118
  %v475 = vunpack.c.h.b16 %v118
  %v476 = vunpack.c.l.b16 %v119
  %v477 = vunpack.c.h.b16 %v119
  %v478 = vunpack.c.l.b16 %v120
  %v479 = vunpack.c.h.b16 %v120
  %v480 = vunpack.c.l.b16 %v121
  %v481 = vunpack.c.h.b16 %v121
  %v482 = vunpack.c.l.b16 %v122
  %v483 = vunpack.c.h.b16 %v122
  %v484 = vunpack.c.l.b16 %v123
  %v485 = vunpack.c.h.b16 %v123
  %v486 = vunpack.c.l.b16 %v124
  %v487 = vunpack.c.h.b16 %v124
  %v488 = vunpack.c.l.b16 %v125
  %v489 = vunpack.c.h.b16 %v125
  %v490 = vunpack.c.l.b16 %v126
  %v491 = vunpack.c.h.b16 %v126
  %v492 = vunpack.c.l.b16 %v127
  %v493 = vunpack.c.h.b16 %v127
  %v494 = vunpack.c.l.b16 %v128
  %v495 = vunpack.c.h.b16 %v128
  %v496 = vunpack.c.l.b16 %v129
  %v497 = vunpack.c.h.b16 %v129
  %v498 = vunpack.c.l.b16 %v130
  %v499 = vunpack.c.h.b16 %v130
  %v500 = vunpack.c.l.b16 %v131
  %v501 = vunpack.c.h.b16 %v131
  %v502 = vunpack.c.l.b16 %v132
  %v503 = vunpack.c.h.b16 %v132
  %v504 = vunpack.c.l.b16 %v133
  %v505 = vunpack.c.h.b16 %v133
  %v506 = vunpack.c.l.b16 %v134
  %v507 = vunpack.c.h.b16 %v134
  %v508 = vunpack.c.l.b16 %v135
  %v509 = vunpack.c.h.b16 %v135
  %v510 = vunpack.c.l.b16 %v136
  %v511 = vunpack.c.h.b16 %v136
  %v512 = vunpack.c.l.b16 %v137
  %v513 = vunpack.c.h.b16 %v137
  %v514 = vunpack.c.l.b16 %v138
  %v515 = vunpack.c.h.b16 %v138
  %v516 = vunpack.c.l.b16 %v139
  %v517 = vunpack.c.h.b16 %v139
  %v518 = vunpack.c.l.b16 %v140
  %v519 = vunpack.c.h.b16 %v140
  %v520 = vunpack.c.l.b16 %v141
  %v521 = vunpack.c.h.b16 %v141
  %v522 = vunpack.c.l.b16 %v142
  %v523 = vunpack.c.h.b16 %v142
  %v524 = vunpack.c.l.b16 %v143
  %v525 = vunpack.c.h.b16 %v143
  %v526 = vunpack.c.l.b16 %v144
  %v527 = vunpack.c.h.b16 %v144
  %v528 = vunpack.c.l.b16 %v145
  %v529 = vunpack.c.h.b16 %v145
  %v530 = vunpack.c.l.b16 %v146
  %v531 = vunpack.c.h.b16 %v146
  %v532 = vunpack.c.l.b16 %v147
  %v533 = vunpack.c.h.b16 %v147
  %v534 = vunpack.c.l.b16 %v148
  %v535 = vunpack.c.h.b16 %v148
  %v536 = vunpack.c.l.b16 %v149
  %v537 = vunpack.c.h.b16 %v149
  %v538 = vunpack.c.l.b16 %v150
  %v539 = vunpack.c.h.b16 %v150
  %v540 = vunpack.c.l.b16 %v151
  %v541 = vunpack.c.h.b16 %v151
  %v542 = vunpack.c.l.b16 %v152
  %v543 = vunpack.c.h.b16 %v152
  %v544 = vunpack.c.l.b16 %v153
  %v545 = vunpack.c.h.b16 %v153
  %v546 = vunpack.c.l.b16 %v154
  %v547 = vunpack.c.h.b16 %v154
  %v548 = vunpack.c.l.b16 %v155
  %v549 = vunpack.c.h.b16 %v155
  %v550 = vunpack.c.l.b16 %v156
  %v551 = vunpack.c.h.b16 %v156
  %v552 = vunpack.c.l.b16 %v157
  %v553 = vunpack.c.h.b16 %v157
  %v554 = vunpack.c.l.b16 %v158
  %v555 = vunpack.c.h.b16 %v158
  %v556 = vunpack.c.l.b16 %v159
  %v557 = vunpack.c.h.b16 %v159
  %v558 = vunpack.c.l.b16 %v160
  %v559 = vunpack.c.h.b16 %v160
  %v560 = vunpack.c.l.b16 %v161
  %v561 = vunpack.c.h.b16 %v161
  %v562 = vunpack.c.l.b16 %v162
  %v563 = vunpack.c.h.b16 %v162
  %v564 = vunpack.c.l.b16 %v163
  %v565 = vunpack.c.h.b16 %v163
  %v566 = vunpack.c.l.b16 %v164
  %v567 = vunpack.c.h.b16 %v164
  %v568 = vunpack.c.l.b16 %v165
  %v569 = vunpack.c.h.b16 %v165
  %v570 = vunpack.c.l.b16 %v166
  %v571 = vunpack.c.h.b16 %v166
  %v572 = vunpack.c.l.b16 %v167
  %v573 = vunpack.c.h.b16 %v167
  %v574 = vunpack.c.l.b16 %v168
  %v575 = vunpack.c.h.b16 %v168
  %v576 = vunpack.c.l.b16 %v169
  %v577 = vunpack.c.h.b16 %v169
  %v578 = vunpack.c.l.b16 %v170
  %v579 = vunpack.c.h.b16 %v170
  %v580 = vunpack.c.l.b16 %v171
  %v581 = vunpack.c.h.b16 %v171
  %v582 = vunpack.c.l.b16 %v172
  %v583 = vunpack.c.h.b16 %v172
  %v584 = vunpack.c.l.b16 %v173
  %v585 = vunpack.c.h.b16 %v173
  %v586 = vunpack.c.l.b16 %v174
  %v587 = vunpack.c.h.b16 %v174
  %v588 = vunpack.c.l.b16 %v175
  %v589 = vunpack.c.h.b16 %v175
  %v590 = vunpack.c.l.b16 %v176
  %v591 = vunpack.c.h.b16 %v176
  %v592 = vunpack.c.l.b16 %v177
  %v593 = vunpack.c.h.b16 %v177
  %v594 = vunpack.c.l.b16 %v178
  %v595 = vunpack.c.h.b16 %v178
  %v596 = vunpack.c.l.b16 %v179
  %v597 = vunpack.c.h.b16 %v179
  %v598 = vunpack.c.l.b16 %v180
  %v599 = vunpack.c.h.b16 %v180
  %v600 = vunpack.c.l.b16 %v181
  %v601 = vunpack.c.h.b16 %v181
  %v602 = vunpack.c.l.b16 %v182
  %v603 = vunpack.c.h.b16 %v182
  %v604 = vunpack.c.l.b16 %v183
  %v605 = vunpack.c.h.b16 %v183
  %v606 = vunpack.c.l.b16 %v184
  %v607 = vunpack.c.h.b16 %v184
  %v608 = vunpack.c.l.b16 %v185
  %v609 = vunpack.c.h.b16 %v185
  %v610 = vunpack.c.l.b16 %v186
  %v611 = vunpack.c.h.b16 %v186
  %v612 = vunpack.c.l.b16 %v187
  %v613 = vunpack.c.h.b16 %v187
  %v614 = vunpack.c.l.b16 %v188
  %v615 = vunpack.c.h.b16 %v188
  %v616 = vunpack.c.l.b16 %v189
  %v617 = vunpack.c.h.b16 %v189
  %v618 = vunpack.c.l.b16 %v190
  %v619 = vunpack.c.h.b16 %v190
  %v620 = vunpack.c.l.b16 %v191
  %v621 = vunpack.c.h.b16 %v191
  %v622 = vunpack.c.l.b16 %v192
  %v623 = vunpack.c.h.b16 %v192
  %v624 = vunpack.c.l.b16 %v193
  %v625 = vunpack.c.h.b16 %v193
  %v626 = vunpack.c.l.b16 %v194
  %v627 = vunpack.c.h.b16 %v194
  %v628 = vunpack.c.l.b16 %v195
  %v629 = vunpack.c.h.b16 %v195
  %v630 = vunpack.c.l.b16 %v196
  %v631 = vunpack.c.h.b16 %v196
  %v632 = vunpack.c.l.b16 %v197
  %v633 = vunpack.c.h.b16 %v197
  %v634 = vunpack.c.l.b16 %v198
  %v635 = vunpack.c.h.b16 %v198
  %v636 = vunpack.c.l.b16 %v199
  %v637 = vunpack.c.h.b16 %v199
  %v638 = vunpack.c.l.b16 %v200
  %v639 = vunpack.c.h.b16 %v200
  %v640 = vunpack.c.l.b16 %v201
  %v641 = vunpack.c.h.b16 %v201
  %v642 = vunpack.c.l.b16 %v202
  %v643 = vunpack.c.h.b16 %v202
  %v644 = vunpack.c.l.b16 %v203
  %v645 = vunpack.c.h.b16 %v203
  %v646 = vunpack.c.l.b16 %v204
  %v647 = vunpack.c.h.b16 %v204
  %v648 = vunpack.c.l.b16 %v205
  %v649 = vunpack.c.h.b16 %v205
  %v650 = vunpack.c.l.b16 %v206
  %v651 = vunpack.c.h.b16 %v206
  %v652 = vunpack.c.l.b16 %v207
  %v653 = vunpack.c.h.b16 %v207
  %v654 = vunpack.c.l.b16 %v208
  %v655 = vunpack.c.h.b16 %v208
  %v656 = vunpack.c.l.b16 %v209
  %v657 = vunpack.c.h.b16 %v209
  %v658 = vpack.c.b16 %v404, %v402
  %v659 = vpack.c.b16 %v405, %v403
  %v660 = vpack.c.b16 %v408, %v406
  %v661 = vpack.c.b16 %v409, %v407
  %v662 = vpack.c.b16 %v412, %v410
  %v663 = vpack.c.b16 %v413, %v411
  %v664 = vpack.c.b16 %v416, %v414
  %v665 = vpack.c.b16 %v417, %v415
  %v666 = vpack.c.b16 %v420, %v418
  %v667 = vpack.c.b16 %v421, %v419
  %v668 = vpack.c.b16 %v424, %v422
  %v669 = vpack.c.b16 %v425, %v423
  %v670 = vpack.c.b16 %v428, %v426
  %v671 = vpack.c.b16 %v429, %v427
  %v672 = vpack.c.b16 %v432, %v430
  %v673 = vpack.c.b16 %v433, %v431
  %v674 = vpack.c.b16 %v436, %v434
  %v675 = vpack.c.b16 %v437, %v435
  %v676 = vpack.c.b16 %v440, %v438
  %v677 = vpack.c.b16 %v441, %v439
  %v678 = vpack.c.b16 %v444, %v442
  %v679 = vpack.c.b16 %v445, %v443
  %v680 = vpack.c.b16 %v448, %v446
  %v681 = vpack.c.b16 %v449, %v447
  %v682 = vpack.c.b16 %v452, %v450
  %v683 = vpack.c.b16 %v453, %v451
  %v684 = vpack.c.b16 %v456, %v454
  %v685 = vpack.c.b16 %v457, %v455
  %v686 = vpack.c.b16 %v460, %v458
  %v687 = vpack.c.b16 %v461, %v459
  %v688 = vpack.c.b16 %v464, %v462
  %v689 = vpack.c.b16 %v465, %v463
  %v690 = vpack.c.b16 %v468, %v466
  %v691 = vpack.c.b16 %v469, %v467
  %v692 = vpack.c.b16 %v472, %v470
  %v693 = vpack.c.b16 %v473, %v471
  %v694 = vpack.c.b16 %v476, %v474
  %v695 = vpack.c.b16 %v477, %v475
  %v696 = vpack.c.b16 %v480, %v478
  %v697 = vpack.c.b16 %v481, %v479
  %v698 = vpack.c.b16 %v484, %v482
  %v699 = vpack.c.b16 %v485, %v483
  %v700 = vpack.c.b16 %v488, %v486
  %v701 = vpack.c.b16 %v489, %v487
  %v702 = vpack.c.b16 %v492, %v490
  %v703 = vpack.c.b16 %v493, %v491
  %v704 = vpack.c.b16 %v496, %v494
  %v705 = vpack.c.b16 %v497, %v495
  %v706 = vpack.c.b16 %v500, %v498
  %v707 = vpack.c.b16 %v501, %v499
  %v708 = vpack.c.b16 %v504, %v502
  %v709 = vpack.c.b16 %v505, %v503
  %v710 = vpack.c.b16 %v508, %v506
  %v711 = vpack.c.b16 %v509, %v507
  %v712 = vpack.c.b16 %v512, %v510
  %v713 = vpack.c.b16 %v513, %v511
  %v714 = vpack.c.b16 %v516, %v514
  %v715 = vpack.c.b16 %v517, %v515
  %v716 = vpack.c.b16 %v520, %v518
  %v717 = vpack.c.b16 %v521, %v519
  %v718 = vpack.c.b16 %v524, %v522
  %v719 = vpack.c.b16 %v525, %v523
  %v720 = vpack.c.b16 %v528, %v526
  %v721 = vpack.c.b16 %v529, %v527
  %v722 = vpack.c.b16 %v532, %v530
  %v723 = vpack.c.b16 %v533, %v531
  %v724 = vpack.c.b16 %v536, %v534
  %v725 = vpack.c.b16 %v537, %v535
  %v726 = vpack.c.b16 %v540, %v538
  %v727 = vpack.c.b16 %v541, %v539
  %v728 = vpack.c.b16 %v544, %v542
  %v729 = vpack.c.b16 %v545, %v543
  %v730 = vpack.c.b16 %v548, %v546
  %v731 = vpack.c.b16 %v549, %v547
  %v732 = vpack.c.b16 %v552, %v550
  %v733 = vpack.c.b16 %v553, %v551
  %v734 = vpack.c.b16 %v556, %v554
  %v735 = vpack.c.b16 %v557, %v555
  %v736 = vpack.c.b16 %v560, %v558
  %v737 = vpack.c.b16 %v561, %v559
  %v738 = vpack.c.b16 %v564, %v562
  %v739 = vpack.c.b16 %v565, %v563
  %v740 = vpack.c.b16 %v568, %v566
  %v741 = vpack.c.b16 %v569, %v567
  %v742 = vpack.c.b16 %v572, %v570
  %v743 = vpack.c.b16 %v573, %v571
  %v744 = vpack.c.b16 %v576, %v574
  %v745 = vpack.c.b16 %v577, %v575
  %v746 = vpack.c.b16 %v580, %v578
  %v747 = vpack.c.b16 %v581, %v579
  %v748 = vpack.c.b16 %v584, %v582
  %v749 = vpack.c.b16 %v585, %v583
  %v750 = vpack.c.b16 %v588, %v586
  %v751 = vpack.c.b16 %v589, %v587
  %v752 = vpack.c.b16 %v592, %v590
  %v753 = vpack.c.b16 %v593, %v591
  %v754 = vpack.c.b16 %v596, %v594
  %v755 = vpack.c.b16 %v597, %v595
  %v756 = vpack.c.b16 %v600, %v598
  %v757 = vpack.c.b16 %v601, %v599
  %v758 = vpack.c.b16 %v604, %v602
  %v759 = vpack.c.b16 %v605, %v603
  %v760 = vpack.c.b16 %v608, %v606
  %v761 = vpack.c.b16 %v609, %v607
  %v762 = vpack.c.b16 %v612, %v610
  %v763 = vpack.c.b16 %v613, %v611
  %v764 = vpack.c.b16 %v616, %v614
  %v765 = vpack.c.b16 %v617, %v615
  %v766 = vpack.c.b16 %v620, %v618
  %v767 = vpack.c.b16 %v621, %v619
  %v768 = vpack.c.b16 %v624, %v622
  %v769 = vpack.c.b16 %v625, %v623
  %v770 = vpack.c.b16 %v628, %v626
  %v771 = vpack.c.b16 %v629, %v627
  %v772 = vpack.c.b16 %v632, %v630
  %v773 = vpack.c.b16 %v633, %v631
  %v774 = vpack.c.b16 %v636, %v634
  %v775 = vpack.c.b16 %v637, %v635
  %v776 = vpack.c.b16 %v640, %v638
  %v777 = vpack.c.b16 %v641, %v639
  %v778 = vpack.c.b16 %v644, %v642
  %v779 = vpack.c.b16 %v645, %v643
  %v780 = vpack.c.b16 %v648, %v646
  %v781 = vpack.c.b16 %v649, %v647
  %v782 = vpack.c.b16 %v652, %v650
  %v783 = vpack.c.b16 %v653, %v651
  %v784 = vpack.c.b16 %v656, %v654
  %v785 = vpack.c.b16 %v657, %v655
  %914 = vmatprep.subr.bf16.mxu0 %v673
  %915 = vmatpush1.bf16.msra.mxu0 %v672
  %916 = vmatprep.subr.bf16.mxu0 %v671
  %917 = vmatpush1.bf16.msra.mxu0 %v670
  %918 = vmatprep.subr.bf16.mxu0 %v669
  %919 = vmatpush1.bf16.msra.mxu0 %v668
  %920 = vmatprep.subr.bf16.mxu0 %v667
  %921 = vmatpush1.bf16.msra.mxu0 %v666
  %922 = vmatprep.subr.bf16.mxu0 %v665
  %923 = vmatpush1.bf16.msra.mxu0 %v664
  %924 = vmatprep.subr.bf16.mxu0 %v663
  %925 = vmatpush1.bf16.msra.mxu0 %v662
  %926 = vmatprep.subr.bf16.mxu0 %v661
  %927 = vmatpush1.bf16.msra.mxu0 %v660
  %928 = vmatprep.subr.bf16.mxu0 %v659
  %929 = vmatpush1.bf16.msra.mxu0 %v658
  %930 = vmatprep.subr.bf16.mxu0 %v689
  %931 = vmatpush2.bf16.msra.mxu0 %v688
  %932 = vmatprep.subr.bf16.mxu0 %v687
  %933 = vmatpush2.bf16.msra.mxu0 %v686
  %934 = vmatprep.subr.bf16.mxu0 %v685
  %935 = vmatpush2.bf16.msra.mxu0 %v684
  %936 = vmatprep.subr.bf16.mxu0 %v683
  %937 = vmatpush2.bf16.msra.mxu0 %v682
  %938 = vmatprep.subr.bf16.mxu0 %v681
  %939 = vmatpush2.bf16.msra.mxu0 %v680
  %940 = vmatprep.subr.bf16.mxu0 %v679
  %941 = vmatpush2.bf16.msra.mxu0 %v678
  %942 = vmatprep.subr.bf16.mxu0 %v677
  %943 = vmatpush2.bf16.msra.mxu0 %v676
  %944 = vmatprep.subr.bf16.mxu0 %v675
  %945 = vmatpush2.bf16.msra.mxu0 %v674
  %946 = vmatprep.mubr.bf16.mxu0 %v256
  %947 = vmatmul.mubr.bf16.gmra.mxu0 %v255
  %v948 = vpop.f32.mrf.mxu0
  %v949 = vadd.f32 %v267, %v948
  %v950 = vpop.f32.mrf.mxu0
  %v951 = vadd.f32 %v271, %v950
  %v952 = vpop.f32.mrf.mxu0
  %v953 = vpop.f32.mrf.mxu0
  %954 = vdwg.mxu0
  %955 = vmatprep.subr.bf16.mxu0 %v705
  %956 = vmatpush1.bf16.msra.mxu0 %v704
  %957 = vmatprep.subr.bf16.mxu0 %v703
  %958 = vmatpush1.bf16.msra.mxu0 %v702
  %959 = vmatprep.subr.bf16.mxu0 %v701
  %960 = vmatpush1.bf16.msra.mxu0 %v700
  %961 = vmatprep.subr.bf16.mxu0 %v699
  %962 = vmatpush1.bf16.msra.mxu0 %v698
  %963 = vmatprep.subr.bf16.mxu0 %v697
  %964 = vmatpush1.bf16.msra.mxu0 %v696
  %965 = vmatprep.subr.bf16.mxu0 %v695
  %966 = vmatpush1.bf16.msra.mxu0 %v694
  %967 = vmatprep.subr.bf16.mxu0 %v693
  %968 = vmatpush1.bf16.msra.mxu0 %v692
  %969 = vmatprep.subr.bf16.mxu0 %v691
  %970 = vmatpush1.bf16.msra.mxu0 %v690
  %971 = vmatprep.subr.bf16.mxu0 %v721
  %972 = vmatpush2.bf16.msra.mxu0 %v720
  %973 = vmatprep.subr.bf16.mxu0 %v719
  %974 = vmatpush2.bf16.msra.mxu0 %v718
  %975 = vmatprep.subr.bf16.mxu0 %v717
  %976 = vmatpush2.bf16.msra.mxu0 %v716
  %977 = vmatprep.subr.bf16.mxu0 %v715
  %978 = vmatpush2.bf16.msra.mxu0 %v714
  %979 = vmatprep.subr.bf16.mxu0 %v713
  %980 = vmatpush2.bf16.msra.mxu0 %v712
  %981 = vmatprep.subr.bf16.mxu0 %v711
  %982 = vmatpush2.bf16.msra.mxu0 %v710
  %983 = vmatprep.subr.bf16.mxu0 %v709
  %984 = vmatpush2.bf16.msra.mxu0 %v708
  %985 = vmatprep.subr.bf16.mxu0 %v707
  %986 = vmatpush2.bf16.msra.mxu0 %v706
  %987 = vmatprep.mubr.bf16.mxu0 %v258
  %988 = vmatmul.mubr.bf16.gmra.mxu0 %v257
  %v989 = vpop.f32.mrf.mxu0
  %v990 = vadd.f32 %v949, %v989
  %v991 = vpop.f32.mrf.mxu0
  %v992 = vadd.f32 %v951, %v991
  %v993 = vpop.f32.mrf.mxu0
  %v994 = vpop.f32.mrf.mxu0
  %995 = vdwg.mxu0
  %996 = vmatprep.subr.bf16.mxu0 %v737
  %997 = vmatpush1.bf16.msra.mxu0 %v736
  %998 = vmatprep.subr.bf16.mxu0 %v735
  %999 = vmatpush1.bf16.msra.mxu0 %v734
  %1000 = vmatprep.subr.bf16.mxu0 %v733
  %1001 = vmatpush1.bf16.msra.mxu0 %v732
  %1002 = vmatprep.subr.bf16.mxu0 %v731
  %1003 = vmatpush1.bf16.msra.mxu0 %v730
  %1004 = vmatprep.subr.bf16.mxu0 %v729
  %1005 = vmatpush1.bf16.msra.mxu0 %v728
  %1006 = vmatprep.subr.bf16.mxu0 %v727
  %1007 = vmatpush1.bf16.msra.mxu0 %v726
  %1008 = vmatprep.subr.bf16.mxu0 %v725
  %1009 = vmatpush1.bf16.msra.mxu0 %v724
  %1010 = vmatprep.subr.bf16.mxu0 %v723
  %1011 = vmatpush1.bf16.msra.mxu0 %v722
  %1012 = vmatprep.subr.bf16.mxu0 %v753
  %1013 = vmatpush2.bf16.msra.mxu0 %v752
  %1014 = vmatprep.subr.bf16.mxu0 %v751
  %1015 = vmatpush2.bf16.msra.mxu0 %v750
  %1016 = vmatprep.subr.bf16.mxu0 %v749
  %1017 = vmatpush2.bf16.msra.mxu0 %v748
  %1018 = vmatprep.subr.bf16.mxu0 %v747
  %1019 = vmatpush2.bf16.msra.mxu0 %v746
  %1020 = vmatprep.subr.bf16.mxu0 %v745
  %1021 = vmatpush2.bf16.msra.mxu0 %v744
  %1022 = vmatprep.subr.bf16.mxu0 %v743
  %1023 = vmatpush2.bf16.msra.mxu0 %v742
  %1024 = vmatprep.subr.bf16.mxu0 %v741
  %1025 = vmatpush2.bf16.msra.mxu0 %v740
  %1026 = vmatprep.subr.bf16.mxu0 %v739
  %1027 = vmatpush2.bf16.msra.mxu0 %v738
  %1028 = vmatprep.mubr.bf16.mxu0 %v260
  %1029 = vmatmul.mubr.bf16.gmra.mxu0 %v259
  %v1030 = vpop.f32.mrf.mxu0
  %v1031 = vadd.f32 %v990, %v1030
  %v1032 = vpop.f32.mrf.mxu0
  %v1033 = vadd.f32 %v992, %v1032
  %v1034 = vpop.f32.mrf.mxu0
  %v1035 = vpop.f32.mrf.mxu0
  %1036 = vdwg.mxu0
  %1037 = vmatprep.subr.bf16.mxu0 %v769
  %1038 = vmatpush1.bf16.msra.mxu0 %v768
  %1039 = vmatprep.subr.bf16.mxu0 %v767
  %1040 = vmatpush1.bf16.msra.mxu0 %v766
  %1041 = vmatprep.subr.bf16.mxu0 %v765
  %1042 = vmatpush1.bf16.msra.mxu0 %v764
  %1043 = vmatprep.subr.bf16.mxu0 %v763
  %1044 = vmatpush1.bf16.msra.mxu0 %v762
  %1045 = vmatprep.subr.bf16.mxu0 %v761
  %1046 = vmatpush1.bf16.msra.mxu0 %v760
  %1047 = vmatprep.subr.bf16.mxu0 %v759
  %1048 = vmatpush1.bf16.msra.mxu0 %v758
  %1049 = vmatprep.subr.bf16.mxu0 %v757
  %1050 = vmatpush1.bf16.msra.mxu0 %v756
  %1051 = vmatprep.subr.bf16.mxu0 %v755
  %1052 = vmatpush1.bf16.msra.mxu0 %v754
  %1053 = vmatprep.subr.bf16.mxu0 %v785
  %1054 = vmatpush2.bf16.msra.mxu0 %v784
  %1055 = vmatprep.subr.bf16.mxu0 %v783
  %1056 = vmatpush2.bf16.msra.mxu0 %v782
  %1057 = vmatprep.subr.bf16.mxu0 %v781
  %1058 = vmatpush2.bf16.msra.mxu0 %v780
  %1059 = vmatprep.subr.bf16.mxu0 %v779
  %1060 = vmatpush2.bf16.msra.mxu0 %v778
  %1061 = vmatprep.subr.bf16.mxu0 %v777
  %1062 = vmatpush2.bf16.msra.mxu0 %v776
  %1063 = vmatprep.subr.bf16.mxu0 %v775
  %1064 = vmatpush2.bf16.msra.mxu0 %v774
  %1065 = vmatprep.subr.bf16.mxu0 %v773
  %1066 = vmatpush2.bf16.msra.mxu0 %v772
  %1067 = vmatprep.subr.bf16.mxu0 %v771
  %1068 = vmatpush2.bf16.msra.mxu0 %v770
  %1069 = vmatprep.mubr.bf16.mxu0 %v262
  %1070 = vmatmul.mubr.bf16.gmra.mxu0 %v261
  %v1071 = vpop.f32.mrf.mxu0
  %v1072 = vadd.f32 %v1031, %v1071
  %v1073 = vpop.f32.mrf.mxu0
  %v1074 = vadd.f32 %v1033, %v1073
  %v1075 = vpop.f32.mrf.mxu0
  %v1076 = vpop.f32.mrf.mxu0
  %1077 = vdwg.mxu0
  %v1078 = vmax.f32 %v1072, 0.0
  %v1079 = vmax.f32 %v1074, 0.0
  %v1080 = vld [vmem:[%s4] sm:$0xff]
  %v1081 = vld [vmem:[%s4 + $0x8] sm:$0xff]
  %v1082 = vld [vmem:[%s4 + $0x10] sm:$0xff]
  %v1083 = vld [vmem:[%s4 + $0x18] sm:$0xff]
  %v1084 = vld [vmem:[%s4 + $0x20] sm:$0xff]
  %v1085 = vld [vmem:[%s4 + $0x28] sm:$0xff]
  %v1086 = vld [vmem:[%s4 + $0x30] sm:$0xff]
  %v1087 = vld [vmem:[%s4 + $0x38] sm:$0xff]
  %v1088 = vld [vmem:[%s4 + $0x40] sm:$0xff]
  %v1089 = vld [vmem:[%s4 + $0x48] sm:$0xff]
  %v1090 = vld [vmem:[%s4 + $0x50] sm:$0xff]
  %v1091 = vld [vmem:[%s4 + $0x58] sm:$0xff]
  %v1092 = vld [vmem:[%s4 + $0x60] sm:$0xff]
  %v1093 = vld [vmem:[%s4 + $0x68] sm:$0xff]
  %v1094 = vld [vmem:[%s4 + $0x70] sm:$0xff]
  %v1095 = vld [vmem:[%s4 + $0x78] sm:$0xff]
  %v1096 = vld [vmem:[%s4 + $0x80] sm:$0xff]
  %v1097 = vld [vmem:[%s4 + $0x88] sm:$0xff]
  %v1098 = vld [vmem:[%s4 + $0x90] sm:$0xff]
  %v1099 = vld [vmem:[%s4 + $0x98] sm:$0xff]
  %v1100 = vld [vmem:[%s4 + $0xa0] sm:$0xff]
  %v1101 = vld [vmem:[%s4 + $0xa8] sm:$0xff]
  %v1102 = vld [vmem:[%s4 + $0xb0] sm:$0xff]
  %v1103 = vld [vmem:[%s4 + $0xb8] sm:$0xff]
  %v1104 = vld [vmem:[%s4 + $0xc0] sm:$0xff]
  %v1105 = vld [vmem:[%s4 + $0xc8] sm:$0xff]
  %v1106 = vld [vmem:[%s4 + $0xd0] sm:$0xff]
  %v1107 = vld [vmem:[%s4 + $0xd8] sm:$0xff]
  %v1108 = vld [vmem:[%s4 + $0xe0] sm:$0xff]
  %v1109 = vld [vmem:[%s4 + $0xe8] sm:$0xff]
  %v1110 = vld [vmem:[%s4 + $0xf0] sm:$0xff]
  %v1111 = vld [vmem:[%s4 + $0xf8] sm:$0xff]
  %v1112 = vld [vmem:[%s5] sm:$0x3]
  %v1113 = vpack.c.bf16 %v1078, %v1078
  %v1114 = vpack.c.bf16 %v1079, %v1079
  %v1116 = vlaneseq
  %v1117 = vshrl.u32 %v1116, 7
  %v1118 = vsub.s32 0, %v1117
  %v1119 = vrot.slane %v1112, %v1118
  %v1120 = vlaneseq
  %v1121 = vshrl.u32 %v1120, 7
  %v1122 = vsub.s32 1, %v1121
  %v1123 = vrot.slane %v1112, %v1122
  %v1158 = vunpack.c.l.b16 %v1080
  %v1159 = vunpack.c.h.b16 %v1080
  %v1160 = vunpack.c.l.b16 %v1081
  %v1161 = vunpack.c.h.b16 %v1081
  %v1162 = vunpack.c.l.b16 %v1082
  %v1163 = vunpack.c.h.b16 %v1082
  %v1164 = vunpack.c.l.b16 %v1083
  %v1165 = vunpack.c.h.b16 %v1083
  %v1166 = vunpack.c.l.b16 %v1084
  %v1167 = vunpack.c.h.b16 %v1084
  %v1168 = vunpack.c.l.b16 %v1085
  %v1169 = vunpack.c.h.b16 %v1085
  %v1170 = vunpack.c.l.b16 %v1086
  %v1171 = vunpack.c.h.b16 %v1086
  %v1172 = vunpack.c.l.b16 %v1087
  %v1173 = vunpack.c.h.b16 %v1087
  %v1174 = vunpack.c.l.b16 %v1088
  %v1175 = vunpack.c.h.b16 %v1088
  %v1176 = vunpack.c.l.b16 %v1089
  %v1177 = vunpack.c.h.b16 %v1089
  %v1178 = vunpack.c.l.b16 %v1090
  %v1179 = vunpack.c.h.b16 %v1090
  %v1180 = vunpack.c.l.b16 %v1091
  %v1181 = vunpack.c.h.b16 %v1091
  %v1182 = vunpack.c.l.b16 %v1092
  %v1183 = vunpack.c.h.b16 %v1092
  %v1184 = vunpack.c.l.b16 %v1093
  %v1185 = vunpack.c.h.b16 %v1093
  %v1186 = vunpack.c.l.b16 %v1094
  %v1187 = vunpack.c.h.b16 %v1094
  %v1188 = vunpack.c.l.b16 %v1095
  %v1189 = vunpack.c.h.b16 %v1095
  %v1190 = vunpack.c.l.b16 %v1096
  %v1191 = vunpack.c.h.b16 %v1096
  %v1192 = vunpack.c.l.b16 %v1097
  %v1193 = vunpack.c.h.b16 %v1097
  %v1194 = vunpack.c.l.b16 %v1098
  %v1195 = vunpack.c.h.b16 %v1098
  %v1196 = vunpack.c.l.b16 %v1099
  %v1197 = vunpack.c.h.b16 %v1099
  %v1198 = vunpack.c.l.b16 %v1100
  %v1199 = vunpack.c.h.b16 %v1100
  %v1200 = vunpack.c.l.b16 %v1101
  %v1201 = vunpack.c.h.b16 %v1101
  %v1202 = vunpack.c.l.b16 %v1102
  %v1203 = vunpack.c.h.b16 %v1102
  %v1204 = vunpack.c.l.b16 %v1103
  %v1205 = vunpack.c.h.b16 %v1103
  %v1206 = vunpack.c.l.b16 %v1104
  %v1207 = vunpack.c.h.b16 %v1104
  %v1208 = vunpack.c.l.b16 %v1105
  %v1209 = vunpack.c.h.b16 %v1105
  %v1210 = vunpack.c.l.b16 %v1106
  %v1211 = vunpack.c.h.b16 %v1106
  %v1212 = vunpack.c.l.b16 %v1107
  %v1213 = vunpack.c.h.b16 %v1107
  %v1214 = vunpack.c.l.b16 %v1108
  %v1215 = vunpack.c.h.b16 %v1108
  %v1216 = vunpack.c.l.b16 %v1109
  %v1217 = vunpack.c.h.b16 %v1109
  %v1218 = vunpack.c.l.b16 %v1110
  %v1219 = vunpack.c.h.b16 %v1110
  %v1220 = vunpack.c.l.b16 %v1111
  %v1221 = vunpack.c.h.b16 %v1111
  %v1222 = vpack.c.b16 %v1160, %v1158
  %v1223 = vpack.c.b16 %v1161, %v1159
  %v1224 = vpack.c.b16 %v1164, %v1162
  %v1225 = vpack.c.b16 %v1165, %v1163
  %v1226 = vpack.c.b16 %v1168, %v1166
  %v1227 = vpack.c.b16 %v1169, %v1167
  %v1228 = vpack.c.b16 %v1172, %v1170
  %v1229 = vpack.c.b16 %v1173, %v1171
  %v1230 = vpack.c.b16 %v1176, %v1174
  %v1231 = vpack.c.b16 %v1177, %v1175
  %v1232 = vpack.c.b16 %v1180, %v1178
  %v1233 = vpack.c.b16 %v1181, %v1179
  %v1234 = vpack.c.b16 %v1184, %v1182
  %v1235 = vpack.c.b16 %v1185, %v1183
  %v1236 = vpack.c.b16 %v1188, %v1186
  %v1237 = vpack.c.b16 %v1189, %v1187
  %v1238 = vpack.c.b16 %v1192, %v1190
  %v1239 = vpack.c.b16 %v1193, %v1191
  %v1240 = vpack.c.b16 %v1196, %v1194
  %v1241 = vpack.c.b16 %v1197, %v1195
  %v1242 = vpack.c.b16 %v1200, %v1198
  %v1243 = vpack.c.b16 %v1201, %v1199
  %v1244 = vpack.c.b16 %v1204, %v1202
  %v1245 = vpack.c.b16 %v1205, %v1203
  %v1246 = vpack.c.b16 %v1208, %v1206
  %v1247 = vpack.c.b16 %v1209, %v1207
  %v1248 = vpack.c.b16 %v1212, %v1210
  %v1249 = vpack.c.b16 %v1213, %v1211
  %v1250 = vpack.c.b16 %v1216, %v1214
  %v1251 = vpack.c.b16 %v1217, %v1215
  %v1252 = vpack.c.b16 %v1220, %v1218
  %v1253 = vpack.c.b16 %v1221, %v1219
  %1286 = vmatprep.subr.bf16.mxu0 %v1237
  %1287 = vmatpush1.bf16.msra.mxu0 %v1236
  %1288 = vmatprep.subr.bf16.mxu0 %v1235
  %1289 = vmatpush1.bf16.msra.mxu0 %v1234
  %1290 = vmatprep.subr.bf16.mxu0 %v1233
  %1291 = vmatpush1.bf16.msra.mxu0 %v1232
  %1292 = vmatprep.subr.bf16.mxu0 %v1231
  %1293 = vmatpush1.bf16.msra.mxu0 %v1230
  %1294 = vmatprep.subr.bf16.mxu0 %v1229
  %1295 = vmatpush1.bf16.msra.mxu0 %v1228
  %1296 = vmatprep.subr.bf16.mxu0 %v1227
  %1297 = vmatpush1.bf16.msra.mxu0 %v1226
  %1298 = vmatprep.subr.bf16.mxu0 %v1225
  %1299 = vmatpush1.bf16.msra.mxu0 %v1224
  %1300 = vmatprep.subr.bf16.mxu0 %v1223
  %1301 = vmatpush1.bf16.msra.mxu0 %v1222
  %1302 = vmatprep.subr.bf16.mxu0 %v1253
  %1303 = vmatpush2.bf16.msra.mxu0 %v1252
  %1304 = vmatprep.subr.bf16.mxu0 %v1251
  %1305 = vmatpush2.bf16.msra.mxu0 %v1250
  %1306 = vmatprep.subr.bf16.mxu0 %v1249
  %1307 = vmatpush2.bf16.msra.mxu0 %v1248
  %1308 = vmatprep.subr.bf16.mxu0 %v1247
  %1309 = vmatpush2.bf16.msra.mxu0 %v1246
  %1310 = vmatprep.subr.bf16.mxu0 %v1245
  %1311 = vmatpush2.bf16.msra.mxu0 %v1244
  %1312 = vmatprep.subr.bf16.mxu0 %v1243
  %1313 = vmatpush2.bf16.msra.mxu0 %v1242
  %1314 = vmatprep.subr.bf16.mxu0 %v1241
  %1315 = vmatpush2.bf16.msra.mxu0 %v1240
  %1316 = vmatprep.subr.bf16.mxu0 %v1239
  %1317 = vmatpush2.bf16.msra.mxu0 %v1238
  %1318 = vmatprep.mubr.bf16.mxu0 %v1114
  %1319 = vmatmul.mubr.bf16.gmra.mxu0 %v1113
  %v1320 = vpop.f32.mrf.mxu0
  %v1321 = vadd.f32 %v1119, %v1320
  %v1322 = vpop.f32.mrf.mxu0
  %v1323 = vadd.f32 %v1123, %v1322
  %v1324 = vpop.f32.mrf.mxu0
  %v1325 = vpop.f32.mrf.mxu0
  %1326 = vdwg.mxu0
  %v1327 = vmax.f32 %v1321, 0.0
  %v1328 = vmax.f32 %v1323, 0.0
  %v1329 = vld [vmem:[%s6] sm:$0xf]
  %v1330 = vld [vmem:[%s6 + $0x4] sm:$0xf]
  %v1331 = vld [vmem:[%s6 + $0x8] sm:$0xf]
  %v1332 = vld [vmem:[%s6 + $0xc] sm:$0xf]
  %v1333 = vld [vmem:[%s6 + $0x10] sm:$0xf]
  %v1334 = vld [vmem:[%s6 + $0x14] sm:$0xf]
  %v1335 = vld [vmem:[%s6 + $0x18] sm:$0xf]
  %v1336 = vld [vmem:[%s6 + $0x1c] sm:$0xf]
  %v1337 = vld [vmem:[%s6 + $0x20] sm:$0xf]
  %v1338 = vld [vmem:[%s6 + $0x24] sm:$0xf]
  %v1339 = vld [vmem:[%s6 + $0x28] sm:$0xf]
  %v1340 = vld [vmem:[%s6 + $0x2c] sm:$0xf]
  %v1341 = vld [vmem:[%s6 + $0x30] sm:$0xf]
  %v1342 = vld [vmem:[%s6 + $0x34] sm:$0xf]
  %v1343 = vld [vmem:[%s6 + $0x38] sm:$0xf]
  %v1344 = vld [vmem:[%s6 + $0x3c] sm:$0xf]
  %v1345 = vld [vmem:[%s6 + $0x40] sm:$0xf]
  %v1346 = vld [vmem:[%s6 + $0x44] sm:$0xf]
  %v1347 = vld [vmem:[%s6 + $0x48] sm:$0xf]
  %v1348 = vld [vmem:[%s6 + $0x4c] sm:$0xf]
  %v1349 = vld [vmem:[%s6 + $0x50] sm:$0xf]
  %v1350 = vld [vmem:[%s6 + $0x54] sm:$0xf]
  %v1351 = vld [vmem:[%s6 + $0x58] sm:$0xf]
  %v1352 = vld [vmem:[%s6 + $0x5c] sm:$0xf]
  %v1353 = vld [vmem:[%s6 + $0x60] sm:$0xf]
  %v1354 = vld [vmem:[%s6 + $0x64] sm:$0xf]
  %v1355 = vld [vmem:[%s6 + $0x68] sm:$0xf]
  %v1356 = vld [vmem:[%s6 + $0x6c] sm:$0xf]
  %v1357 = vld [vmem:[%s6 + $0x70] sm:$0xf]
  %v1358 = vld [vmem:[%s6 + $0x74] sm:$0xf]
  %v1359 = vld [vmem:[%s6 + $0x78] sm:$0xf]
  %v1360 = vld [vmem:[%s6 + $0x7c] sm:$0xf]
  %v1361 = vld [vmem:[%s7] sm:$0x1]
  %v1362 = vpack.c.bf16 %v1327, %v1327
  %v1363 = vpack.c.bf16 %v1328, %v1328
  %v1365 = vlaneseq
  %v1366 = vshrl.u32 %v1365, 7
  %v1367 = vsub.s32 0, %v1366
  %v1368 = vrot.slane %v1361, %v1367
  %v1402 = vunpack.c.l.b16 %v1329
  %v1403 = vunpack.c.l.b16 %v1330
  %v1404 = vunpack.c.l.b16 %v1331
  %v1405 = vunpack.c.l.b16 %v1332
  %v1406 = vunpack.c.l.b16 %v1333
  %v1407 = vunpack.c.l.b16 %v1334
  %v1408 = vunpack.c.l.b16 %v1335
  %v1409 = vunpack.c.l.b16 %v1336
  %v1410 = vunpack.c.l.b16 %v1337
  %v1411 = vunpack.c.l.b16 %v1338
  %v1412 = vunpack.c.l.b16 %v1339
  %v1413 = vunpack.c.l.b16 %v1340
  %v1414 = vunpack.c.l.b16 %v1341
  %v1415 = vunpack.c.l.b16 %v1342
  %v1416 = vunpack.c.l.b16 %v1343
  %v1417 = vunpack.c.l.b16 %v1344
  %v1418 = vunpack.c.l.b16 %v1345
  %v1419 = vunpack.c.l.b16 %v1346
  %v1420 = vunpack.c.l.b16 %v1347
  %v1421 = vunpack.c.l.b16 %v1348
  %v1422 = vunpack.c.l.b16 %v1349
  %v1423 = vunpack.c.l.b16 %v1350
  %v1424 = vunpack.c.l.b16 %v1351
  %v1425 = vunpack.c.l.b16 %v1352
  %v1426 = vunpack.c.l.b16 %v1353
  %v1427 = vunpack.c.l.b16 %v1354
  %v1428 = vunpack.c.l.b16 %v1355
  %v1429 = vunpack.c.l.b16 %v1356
  %v1430 = vunpack.c.l.b16 %v1357
  %v1431 = vunpack.c.l.b16 %v1358
  %v1432 = vunpack.c.l.b16 %v1359
  %v1433 = vunpack.c.l.b16 %v1360
  %v1434 = vpack.c.b16 %v1403, %v1402
  %v1435 = vpack.c.b16 %v1405, %v1404
  %v1436 = vpack.c.b16 %v1407, %v1406
  %v1437 = vpack.c.b16 %v1409, %v1408
  %v1438 = vpack.c.b16 %v1411, %v1410
  %v1439 = vpack.c.b16 %v1413, %v1412
  %v1440 = vpack.c.b16 %v1415, %v1414
  %v1441 = vpack.c.b16 %v1417, %v1416
  %v1442 = vpack.c.b16 %v1419, %v1418
  %v1443 = vpack.c.b16 %v1421, %v1420
  %v1444 = vpack.c.b16 %v1423, %v1422
  %v1445 = vpack.c.b16 %v1425, %v1424
  %v1446 = vpack.c.b16 %v1427, %v1426
  %v1447 = vpack.c.b16 %v1429, %v1428
  %v1448 = vpack.c.b16 %v1431, %v1430
  %v1449 = vpack.c.b16 %v1433, %v1432
  %1466 = vmatprep.subr.bf16.mxu0 0
  %1467 = vmatpush1.bf16.msra.mxu0 %v1441
  %1468 = vmatprep.subr.bf16.mxu0 0
  %1469 = vmatpush1.bf16.msra.mxu0 %v1440
  %1470 = vmatprep.subr.bf16.mxu0 0
  %1471 = vmatpush1.bf16.msra.mxu0 %v1439
  %1472 = vmatprep.subr.bf16.mxu0 0
  %1473 = vmatpush1.bf16.msra.mxu0 %v1438
  %1474 = vmatprep.subr.bf16.mxu0 0
  %1475 = vmatpush1.bf16.msra.mxu0 %v1437
  %1476 = vmatprep.subr.bf16.mxu0 0
  %1477 = vmatpush1.bf16.msra.mxu0 %v1436
  %1478 = vmatprep.subr.bf16.mxu0 0
  %1479 = vmatpush1.bf16.msra.mxu0 %v1435
  %1480 = vmatprep.subr.bf16.mxu0 0
  %1481 = vmatpush1.bf16.msra.mxu0 %v1434
  %1482 = vmatprep.subr.bf16.mxu0 0
  %1483 = vmatpush2.bf16.msra.mxu0 %v1449
  %1484 = vmatprep.subr.bf16.mxu0 0
  %1485 = vmatpush2.bf16.msra.mxu0 %v1448
  %1486 = vmatprep.subr.bf16.mxu0 0
  %1487 = vmatpush2.bf16.msra.mxu0 %v1447
  %1488 = vmatprep.subr.bf16.mxu0 0
  %1489 = vmatpush2.bf16.msra.mxu0 %v1446
  %1490 = vmatprep.subr.bf16.mxu0 0
  %1491 = vmatpush2.bf16.msra.mxu0 %v1445
  %1492 = vmatprep.subr.bf16.mxu0 0
  %1493 = vmatpush2.bf16.msra.mxu0 %v1444
  %1494 = vmatprep.subr.bf16.mxu0 0
  %1495 = vmatpush2.bf16.msra.mxu0 %v1443
  %1496 = vmatprep.subr.bf16.mxu0 0
  %1497 = vmatpush2.bf16.msra.mxu0 %v1442
  %1498 = vmatprep.mubr.bf16.mxu0 %v1363
  %1499 = vmatmul.mubr.bf16.gmra.mxu0 %v1362
  %v1500 = vpop.f32.mrf.mxu0
  %v1501 = vadd.f32 %v1368, %v1500
  %v1502 = vpop.f32.mrf.mxu0
  %v1503 = vpop.f32.mrf.mxu0
  %v1504 = vpop.f32.mrf.mxu0
  %1505 = vdwg.mxu0
  %v1506 = vmax.f32 %v1501, 0.0
  %v1507 = vld [vmem:[%s1] sm:$0x3]
  %v1508 = vld [vmem:[%s8] sm:$0x3]
  %v1509 = vld [vmem:[%s9] sm:$0x1]
  %v1510 = vpack.c.bf16 %v1507, %v1507
  %v1512 = vlaneseq
  %v1513 = vshrl.u32 %v1512, 7
  %v1514 = vsub.s32 0, %v1513
  %v1515 = vrot.slane %v1509, %v1514
  %vm1517 = vcmask 23552
  %v1519 = vsel %vm1517, %v1510, 0
  %vm1521 = vcmask 1040384
  %vm1522 = vcmask 1041408
  %v1523 = vsel %vm1521, 4294967295, 65535
  %v1524 = vsel %vm1522, %v1523, 0
  %v1526 = vand.u32 %v1508, %v1524
  %1528 = vmatprep.subr.bf16.mxu0 0
  %1529 = vmatpush1.bf16.msra.mxu0 0
  %1530 = vmatprep.subr.bf16.mxu0 0
  %1531 = vmatpush1.bf16.msra.mxu0 0
  %1532 = vmatprep.subr.bf16.mxu0 0
  %1533 = vmatpush1.bf16.msra.mxu0 0
  %1534 = vmatprep.subr.bf16.mxu0 0
  %1535 = vmatpush1.bf16.msra.mxu0 0
  %1536 = vmatprep.subr.bf16.mxu0 0
  %1537 = vmatpush1.bf16.msra.mxu0 0
  %1538 = vmatprep.subr.bf16.mxu0 0
  %1539 = vmatpush1.bf16.msra.mxu0 0
  %1540 = vmatprep.subr.bf16.mxu0 0
  %1541 = vmatpush1.bf16.msra.mxu0 0
  %1542 = vmatprep.subr.bf16.mxu0 0
  %1543 = vmatpush1.bf16.msra.mxu0 %v1526
  %1544 = vmatprep.subr.bf16.mxu0 0
  %1545 = vmatpush2.bf16.msra.mxu0 0
  %1546 = vmatprep.subr.bf16.mxu0 0
  %1547 = vmatpush2.bf16.msra.mxu0 0
  %1548 = vmatprep.subr.bf16.mxu0 0
  %1549 = vmatpush2.bf16.msra.mxu0 0
  %1550 = vmatprep.subr.bf16.mxu0 0
  %1551 = vmatpush2.bf16.msra.mxu0 0
  %1552 = vmatprep.subr.bf16.mxu0 0
  %1553 = vmatpush2.bf16.msra.mxu0 0
  %1554 = vmatprep.subr.bf16.mxu0 0
  %1555 = vmatpush2.bf16.msra.mxu0 0
  %1556 = vmatprep.subr.bf16.mxu0 0
  %1557 = vmatpush2.bf16.msra.mxu0 0
  %1558 = vmatprep.subr.bf16.mxu0 0
  %1559 = vmatpush2.bf16.msra.mxu0 0
  %1560 = vmatprep.mubr.bf16.mxu0 0
  %1561 = vmatmul.mubr.bf16.gmra.mxu0 %v1519
  %v1562 = vpop.f32.mrf.mxu0
  %v1563 = vadd.f32 %v1515, %v1562
  %v1564 = vpop.f32.mrf.mxu0
  %v1565 = vpop.f32.mrf.mxu0
  %v1566 = vpop.f32.mrf.mxu0
  %1567 = vdwg.mxu0
  %v1568 = vmax.f32 %v1563, 0.0
  %v1569 = vld [vmem:[%s10] sm:$0xf]
  %v1570 = vld [vmem:[%s10 + $0x4] sm:$0xf]
  %v1571 = vld [vmem:[%s11] sm:$0x1]
  %v1572 = vpack.c.bf16 %v1568, %v1568
  %v1574 = vlaneseq
  %v1575 = vshrl.u32 %v1574, 7
  %v1576 = vsub.s32 0, %v1575
  %v1577 = vrot.slane %v1571, %v1576
  %v1581 = vunpack.c.l.b16 %v1569
  %v1582 = vunpack.c.l.b16 %v1570
  %v1583 = vpack.c.b16 %v1582, %v1581
  %vm1585 = vcmask 130048
  %v1587 = vsel %vm1585, %v1572, 0
  %1589 = vmatprep.subr.bf16.mxu0 0
  %1590 = vmatpush1.bf16.msra.mxu0 0
  %1591 = vmatprep.subr.bf16.mxu0 0
  %1592 = vmatpush1.bf16.msra.mxu0 0
  %1593 = vmatprep.subr.bf16.mxu0 0
  %1594 = vmatpush1.bf16.msra.mxu0 0
  %1595 = vmatprep.subr.bf16.mxu0 0
  %1596 = vmatpush1.bf16.msra.mxu0 0
  %1597 = vmatprep.subr.bf16.mxu0 0
  %1598 = vmatpush1.bf16.msra.mxu0 0
  %1599 = vmatprep.subr.bf16.mxu0 0
  %1600 = vmatpush1.bf16.msra.mxu0 0
  %1601 = vmatprep.subr.bf16.mxu0 0
  %1602 = vmatpush1.bf16.msra.mxu0 0
  %1603 = vmatprep.subr.bf16.mxu0 0
  %1604 = vmatpush1.bf16.msra.mxu0 %v1583
  %1605 = vmatprep.subr.bf16.mxu0 0
  %1606 = vmatpush2.bf16.msra.mxu0 0
  %1607 = vmatprep.subr.bf16.mxu0 0
  %1608 = vmatpush2.bf16.msra.mxu0 0
  %1609 = vmatprep.subr.bf16.mxu0 0
  %1610 = vmatpush2.bf16.msra.mxu0 0
  %1611 = vmatprep.subr.bf16.mxu0 0
  %1612 = vmatpush2.bf16.msra.mxu0 0
  %1613 = vmatprep.subr.bf16.mxu0 0
  %1614 = vmatpush2.bf16.msra.mxu0 0
  %1615 = vmatprep.subr.bf16.mxu0 0
  %1616 = vmatpush2.bf16.msra.mxu0 0
  %1617 = vmatprep.subr.bf16.mxu0 0
  %1618 = vmatpush2.bf16.msra.mxu0 0
  %1619 = vmatprep.subr.bf16.mxu0 0
  %1620 = vmatpush2.bf16.msra.mxu0 0
  %1621 = vmatprep.mubr.bf16.mxu0 0
  %1622 = vmatmul.mubr.bf16.gmra.mxu0 %v1587
  %v1623 = vpop.f32.mrf.mxu0
  %v1624 = vadd.f32 %v1577, %v1623
  %v1625 = vpop.f32.mrf.mxu0
  %v1626 = vpop.f32.mrf.mxu0
  %v1627 = vpop.f32.mrf.mxu0
  %1628 = vdwg.mxu0
  %v1629 = vmax.f32 %v1624, 0.0
  %v1630 = vld [vmem:[%s12] sm:$0xf]
  %v1631 = vld [vmem:[%s12 + $0x4] sm:$0xf]
  %v1632 = vld [vmem:[%s12 + $0x8] sm:$0xf]
  %v1633 = vld [vmem:[%s12 + $0xc] sm:$0xf]
  %v1634 = vld [vmem:[%s13] sm:$0x1]
  %v1635 = vpack.c.bf16 %v1629, %v1629
  %v1637 = vlaneseq
  %v1638 = vshrl.u32 %v1637, 7
  %v1639 = vsub.s32 0, %v1638
  %v1640 = vrot.slane %v1634, %v1639
  %v1646 = vunpack.c.l.b16 %v1630
  %v1647 = vunpack.c.l.b16 %v1631
  %v1648 = vunpack.c.l.b16 %v1632
  %v1649 = vunpack.c.l.b16 %v1633
  %v1650 = vpack.c.b16 %v1647, %v1646
  %v1651 = vpack.c.b16 %v1649, %v1648
  %vm1654 = vcmask 261120
  %v1656 = vsel %vm1654, %v1635, 0
  %1658 = vmatprep.subr.bf16.mxu0 0
  %1659 = vmatpush1.bf16.msra.mxu0 0
  %1660 = vmatprep.subr.bf16.mxu0 0
  %1661 = vmatpush1.bf16.msra.mxu0 0
  %1662 = vmatprep.subr.bf16.mxu0 0
  %1663 = vmatpush1.bf16.msra.mxu0 0
  %1664 = vmatprep.subr.bf16.mxu0 0
  %1665 = vmatpush1.bf16.msra.mxu0 0
  %1666 = vmatprep.subr.bf16.mxu0 0
  %1667 = vmatpush1.bf16.msra.mxu0 0
  %1668 = vmatprep.subr.bf16.mxu0 0
  %1669 = vmatpush1.bf16.msra.mxu0 0
  %1670 = vmatprep.subr.bf16.mxu0 0
  %1671 = vmatpush1.bf16.msra.mxu0 %v1651
  %1672 = vmatprep.subr.bf16.mxu0 0
  %1673 = vmatpush1.bf16.msra.mxu0 %v1650
  %1674 = vmatprep.subr.bf16.mxu0 0
  %1675 = vmatpush2.bf16.msra.mxu0 0
  %1676 = vmatprep.subr.bf16.mxu0 0
  %1677 = vmatpush2.bf16.msra.mxu0 0
  %1678 = vmatprep.subr.bf16.mxu0 0
  %1679 = vmatpush2.bf16.msra.mxu0 0
  %1680 = vmatprep.subr.bf16.mxu0 0
  %1681 = vmatpush2.bf16.msra.mxu0 0
  %1682 = vmatprep.subr.bf16.mxu0 0
  %1683 = vmatpush2.bf16.msra.mxu0 0
  %1684 = vmatprep.subr.bf16.mxu0 0
  %1685 = vmatpush2.bf16.msra.mxu0 0
  %1686 = vmatprep.subr.bf16.mxu0 0
  %1687 = vmatpush2.bf16.msra.mxu0 0
  %1688 = vmatprep.subr.bf16.mxu0 0
  %1689 = vmatpush2.bf16.msra.mxu0 0
  %1690 = vmatprep.mubr.bf16.mxu0 0
  %1691 = vmatmul.mubr.bf16.gmra.mxu0 %v1656
  %v1692 = vpop.f32.mrf.mxu0
  %v1693 = vadd.f32 %v1640, %v1692
  %v1694 = vpop.f32.mrf.mxu0
  %v1695 = vpop.f32.mrf.mxu0
  %v1696 = vpop.f32.mrf.mxu0
  %1697 = vdwg.mxu0
  %v1698 = vmax.f32 %v1693, 0.0
  %v1699 = vadd.f32 %v1698, %v1506
  %v1700 = vld [vmem:[%s14] sm:$0xf]
  %v1701 = vld [vmem:[%s14 + $0x4] sm:$0xf]
  %v1702 = vld [vmem:[%s14 + $0x8] sm:$0xf]
  %v1703 = vld [vmem:[%s14 + $0xc] sm:$0xf]
  %v1704 = vld [vmem:[%s14 + $0x10] sm:$0xf]
  %v1705 = vld [vmem:[%s14 + $0x14] sm:$0xf]
  %v1706 = vld [vmem:[%s14 + $0x18] sm:$0xf]
  %v1707 = vld [vmem:[%s14 + $0x1c] sm:$0xf]
  %v1708 = vld [vmem:[%s15] sm:$0x1]
  %v1709 = vpack.c.bf16 %v1699, %v1699
  %v1711 = vlaneseq
  %v1712 = vshrl.u32 %v1711, 7
  %v1713 = vsub.s32 0, %v1712
  %v1714 = vrot.slane %v1708, %v1713
  %v1724 = vunpack.c.l.b16 %v1700
  %v1725 = vunpack.c.l.b16 %v1701
  %v1726 = vunpack.c.l.b16 %v1702
  %v1727 = vunpack.c.l.b16 %v1703
  %v1728 = vunpack.c.l.b16 %v1704
  %v1729 = vunpack.c.l.b16 %v1705
  %v1730 = vunpack.c.l.b16 %v1706
  %v1731 = vunpack.c.l.b16 %v1707
  %v1732 = vpack.c.b16 %v1725, %v1724
  %v1733 = vpack.c.b16 %v1727, %v1726
  %v1734 = vpack.c.b16 %v1729, %v1728
  %v1735 = vpack.c.b16 %v1731, %v1730
  %vm1740 = vcmask 523264
  %v1742 = vsel %vm1740, %v1709, 0
  %1744 = vmatprep.subr.bf16.mxu0 0
  %1745 = vmatpush1.bf16.msra.mxu0 0
  %1746 = vmatprep.subr.bf16.mxu0 0
  %1747 = vmatpush1.bf16.msra.mxu0 0
  %1748 = vmatprep.subr.bf16.mxu0 0
  %1749 = vmatpush1.bf16.msra.mxu0 0
  %1750 = vmatprep.subr.bf16.mxu0 0
  %1751 = vmatpush1.bf16.msra.mxu0 0
  %1752 = vmatprep.subr.bf16.mxu0 0
  %1753 = vmatpush1.bf16.msra.mxu0 %v1735
  %1754 = vmatprep.subr.bf16.mxu0 0
  %1755 = vmatpush1.bf16.msra.mxu0 %v1734
  %1756 = vmatprep.subr.bf16.mxu0 0
  %1757 = vmatpush1.bf16.msra.mxu0 %v1733
  %1758 = vmatprep.subr.bf16.mxu0 0
  %1759 = vmatpush1.bf16.msra.mxu0 %v1732
  %1760 = vmatprep.subr.bf16.mxu0 0
  %1761 = vmatpush2.bf16.msra.mxu0 0
  %1762 = vmatprep.subr.bf16.mxu0 0
  %1763 = vmatpush2.bf16.msra.mxu0 0
  %1764 = vmatprep.subr.bf16.mxu0 0
  %1765 = vmatpush2.bf16.msra.mxu0 0
  %1766 = vmatprep.subr.bf16.mxu0 0
  %1767 = vmatpush2.bf16.msra.mxu0 0
  %1768 = vmatprep.subr.bf16.mxu0 0
  %1769 = vmatpush2.bf16.msra.mxu0 0
  %1770 = vmatprep.subr.bf16.mxu0 0
  %1771 = vmatpush2.bf16.msra.mxu0 0
  %1772 = vmatprep.subr.bf16.mxu0 0
  %1773 = vmatpush2.bf16.msra.mxu0 0
  %1774 = vmatprep.subr.bf16.mxu0 0
  %1775 = vmatpush2.bf16.msra.mxu0 0
  %1776 = vmatprep.mubr.bf16.mxu0 0
  %1777 = vmatmul.mubr.bf16.gmra.mxu0 %v1742
  %v1778 = vpop.f32.mrf.mxu0
  %v1779 = vadd.f32 %v1714, %v1778
  %v1780 = vpop.f32.mrf.mxu0
  %v1781 = vpop.f32.mrf.mxu0
  %v1782 = vpop.f32.mrf.mxu0
  %1783 = vdwg.mxu0
  %v1784 = vmax.f32 %v1779, 0.0
  %v1785 = vld [vmem:[%s16] sm:$0xff]
  %v1786 = vld [vmem:[%s16 + $0x8] sm:$0xff]
  %v1787 = vld [vmem:[%s16 + $0x10] sm:$0xff]
  %v1788 = vld [vmem:[%s16 + $0x18] sm:$0xff]
  %v1789 = vld [vmem:[%s16 + $0x20] sm:$0xff]
  %v1790 = vld [vmem:[%s16 + $0x28] sm:$0xff]
  %v1791 = vld [vmem:[%s16 + $0x30] sm:$0xff]
  %v1792 = vld [vmem:[%s16 + $0x38] sm:$0xff]
  %v1793 = vld [vmem:[%s16 + $0x40] sm:$0xff]
  %v1794 = vld [vmem:[%s16 + $0x48] sm:$0xff]
  %v1795 = vld [vmem:[%s16 + $0x50] sm:$0xff]
  %v1796 = vld [vmem:[%s16 + $0x58] sm:$0xff]
  %v1797 = vld [vmem:[%s16 + $0x60] sm:$0xff]
  %v1798 = vld [vmem:[%s16 + $0x68] sm:$0xff]
  %v1799 = vld [vmem:[%s16 + $0x70] sm:$0xff]
  %v1800 = vld [vmem:[%s16 + $0x78] sm:$0xff]
  %v1801 = vld [vmem:[%s17] sm:$0x3]
  %v1802 = vpack.c.bf16 %v1784, %v1784
  %v1804 = vlaneseq
  %v1805 = vshrl.u32 %v1804, 7
  %v1806 = vsub.s32 0, %v1805
  %v1807 = vrot.slane %v1801, %v1806
  %v1808 = vlaneseq
  %v1809 = vshrl.u32 %v1808, 7
  %v1810 = vsub.s32 1, %v1809
  %v1811 = vrot.slane %v1801, %v1810
  %v1830 = vunpack.c.l.b16 %v1785
  %v1831 = vunpack.c.h.b16 %v1785
  %v1832 = vunpack.c.l.b16 %v1786
  %v1833 = vunpack.c.h.b16 %v1786
  %v1834 = vunpack.c.l.b16 %v1787
  %v1835 = vunpack.c.h.b16 %v1787
  %v1836 = vunpack.c.l.b16 %v1788
  %v1837 = vunpack.c.h.b16 %v1788
  %v1838 = vunpack.c.l.b16 %v1789
  %v1839 = vunpack.c.h.b16 %v1789
  %v1840 = vunpack.c.l.b16 %v1790
  %v1841 = vunpack.c.h.b16 %v1790
  %v1842 = vunpack.c.l.b16 %v1791
  %v1843 = vunpack.c.h.b16 %v1791
  %v1844 = vunpack.c.l.b16 %v1792
  %v1845 = vunpack.c.h.b16 %v1792
  %v1846 = vunpack.c.l.b16 %v1793
  %v1847 = vunpack.c.h.b16 %v1793
  %v1848 = vunpack.c.l.b16 %v1794
  %v1849 = vunpack.c.h.b16 %v1794
  %v1850 = vunpack.c.l.b16 %v1795
  %v1851 = vunpack.c.h.b16 %v1795
  %v1852 = vunpack.c.l.b16 %v1796
  %v1853 = vunpack.c.h.b16 %v1796
  %v1854 = vunpack.c.l.b16 %v1797
  %v1855 = vunpack.c.h.b16 %v1797
  %v1856 = vunpack.c.l.b16 %v1798
  %v1857 = vunpack.c.h.b16 %v1798
  %v1858 = vunpack.c.l.b16 %v1799
  %v1859 = vunpack.c.h.b16 %v1799
  %v1860 = vunpack.c.l.b16 %v1800
  %v1861 = vunpack.c.h.b16 %v1800
  %v1862 = vpack.c.b16 %v1832, %v1830
  %v1863 = vpack.c.b16 %v1833, %v1831
  %v1864 = vpack.c.b16 %v1836, %v1834
  %v1865 = vpack.c.b16 %v1837, %v1835
  %v1866 = vpack.c.b16 %v1840, %v1838
  %v1867 = vpack.c.b16 %v1841, %v1839
  %v1868 = vpack.c.b16 %v1844, %v1842
  %v1869 = vpack.c.b16 %v1845, %v1843
  %v1870 = vpack.c.b16 %v1848, %v1846
  %v1871 = vpack.c.b16 %v1849, %v1847
  %v1872 = vpack.c.b16 %v1852, %v1850
  %v1873 = vpack.c.b16 %v1853, %v1851
  %v1874 = vpack.c.b16 %v1856, %v1854
  %v1875 = vpack.c.b16 %v1857, %v1855
  %v1876 = vpack.c.b16 %v1860, %v1858
  %v1877 = vpack.c.b16 %v1861, %v1859
  %1894 = vmatprep.subr.bf16.mxu0 %v1877
  %1895 = vmatpush1.bf16.msra.mxu0 %v1876
  %1896 = vmatprep.subr.bf16.mxu0 %v1875
  %1897 = vmatpush1.bf16.msra.mxu0 %v1874
  %1898 = vmatprep.subr.bf16.mxu0 %v1873
  %1899 = vmatpush1.bf16.msra.mxu0 %v1872
  %1900 = vmatprep.subr.bf16.mxu0 %v1871
  %1901 = vmatpush1.bf16.msra.mxu0 %v1870
  %1902 = vmatprep.subr.bf16.mxu0 %v1869
  %1903 = vmatpush1.bf16.msra.mxu0 %v1868
  %1904 = vmatprep.subr.bf16.mxu0 %v1867
  %1905 = vmatpush1.bf16.msra.mxu0 %v1866
  %1906 = vmatprep.subr.bf16.mxu0 %v1865
  %1907 = vmatpush1.bf16.msra.mxu0 %v1864
  %1908 = vmatprep.subr.bf16.mxu0 %v1863
  %1909 = vmatpush1.bf16.msra.mxu0 %v1862
  %1910 = vmatprep.subr.bf16.mxu0 0
  %1911 = vmatpush2.bf16.msra.mxu0 0
  %1912 = vmatprep.subr.bf16.mxu0 0
  %1913 = vmatpush2.bf16.msra.mxu0 0
  %1914 = vmatprep.subr.bf16.mxu0 0
  %1915 = vmatpush2.bf16.msra.mxu0 0
  %1916 = vmatprep.subr.bf16.mxu0 0
  %1917 = vmatpush2.bf16.msra.mxu0 0
  %1918 = vmatprep.subr.bf16.mxu0 0
  %1919 = vmatpush2.bf16.msra.mxu0 0
  %1920 = vmatprep.subr.bf16.mxu0 0
  %1921 = vmatpush2.bf16.msra.mxu0 0
  %1922 = vmatprep.subr.bf16.mxu0 0
  %1923 = vmatpush2.bf16.msra.mxu0 0
  %1924 = vmatprep.subr.bf16.mxu0 0
  %1925 = vmatpush2.bf16.msra.mxu0 0
  %1926 = vmatprep.mubr.bf16.mxu0 0
  %1927 = vmatmul.mubr.bf16.gmra.mxu0 %v1802
  %v1928 = vpop.f32.mrf.mxu0
  %v1929 = vadd.f32 %v1807, %v1928
  %v1930 = vpop.f32.mrf.mxu0
  %v1931 = vadd.f32 %v1811, %v1930
  %v1932 = vpop.f32.mrf.mxu0
  %v1933 = vpop.f32.mrf.mxu0
  %1934 = vdwg.mxu0
  %v1935 = vmax.f32 %v1929, 0.0
  %v1936 = vmax.f32 %v1931, 0.0
  %v1937 = vld [vmem:[%s18] sm:$0xff]
  %v1938 = vld [vmem:[%s18 + $0x8] sm:$0xff]
  %v1939 = vld [vmem:[%s18 + $0x10] sm:$0xff]
  %v1940 = vld [vmem:[%s18 + $0x18] sm:$0xff]
  %v1941 = vld [vmem:[%s18 + $0x20] sm:$0xff]
  %v1942 = vld [vmem:[%s18 + $0x28] sm:$0xff]
  %v1943 = vld [vmem:[%s18 + $0x30] sm:$0xff]
  %v1944 = vld [vmem:[%s18 + $0x38] sm:$0xff]
  %v1945 = vld [vmem:[%s18 + $0x40] sm:$0xff]
  %v1946 = vld [vmem:[%s18 + $0x48] sm:$0xff]
  %v1947 = vld [vmem:[%s18 + $0x50] sm:$0xff]
  %v1948 = vld [vmem:[%s18 + $0x58] sm:$0xff]
  %v1949 = vld [vmem:[%s18 + $0x60] sm:$0xff]
  %v1950 = vld [vmem:[%s18 + $0x68] sm:$0xff]
  %v1951 = vld [vmem:[%s18 + $0x70] sm:$0xff]
  %v1952 = vld [vmem:[%s18 + $0x78] sm:$0xff]
  %v1953 = vld [vmem:[%s18 + $0x80] sm:$0xff]
  %v1954 = vld [vmem:[%s18 + $0x88] sm:$0xff]
  %v1955 = vld [vmem:[%s18 + $0x90] sm:$0xff]
  %v1956 = vld [vmem:[%s18 + $0x98] sm:$0xff]
  %v1957 = vld [vmem:[%s18 + $0xa0] sm:$0xff]
  %v1958 = vld [vmem:[%s18 + $0xa8] sm:$0xff]
  %v1959 = vld [vmem:[%s18 + $0xb0] sm:$0xff]
  %v1960 = vld [vmem:[%s18 + $0xb8] sm:$0xff]
  %v1961 = vld [vmem:[%s18 + $0xc0] sm:$0xff]
  %v1962 = vld [vmem:[%s18 + $0xc8] sm:$0xff]
  %v1963 = vld [vmem:[%s18 + $0xd0] sm:$0xff]
  %v1964 = vld [vmem:[%s18 + $0xd8] sm:$0xff]
  %v1965 = vld [vmem:[%s18 + $0xe0] sm:$0xff]
  %v1966 = vld [vmem:[%s18 + $0xe8] sm:$0xff]
  %v1967 = vld [vmem:[%s18 + $0xf0] sm:$0xff]
  %v1968 = vld [vmem:[%s18 + $0xf8] sm:$0xff]
  %v1969 = vld [vmem:[%s19] sm:$0x3]
  %v1970 = vpack.c.bf16 %v1935, %v1935
  %v1971 = vpack.c.bf16 %v1936, %v1936
  %v1973 = vlaneseq
  %v1974 = vshrl.u32 %v1973, 7
  %v1975 = vsub.s32 0, %v1974
  %v1976 = vrot.slane %v1969, %v1975
  %v1977 = vlaneseq
  %v1978 = vshrl.u32 %v1977, 7
  %v1979 = vsub.s32 1, %v1978
  %v1980 = vrot.slane %v1969, %v1979
  %v2015 = vunpack.c.l.b16 %v1937
  %v2016 = vunpack.c.h.b16 %v1937
  %v2017 = vunpack.c.l.b16 %v1938
  %v2018 = vunpack.c.h.b16 %v1938
  %v2019 = vunpack.c.l.b16 %v1939
  %v2020 = vunpack.c.h.b16 %v1939
  %v2021 = vunpack.c.l.b16 %v1940
  %v2022 = vunpack.c.h.b16 %v1940
  %v2023 = vunpack.c.l.b16 %v1941
  %v2024 = vunpack.c.h.b16 %v1941
  %v2025 = vunpack.c.l.b16 %v1942
  %v2026 = vunpack.c.h.b16 %v1942
  %v2027 = vunpack.c.l.b16 %v1943
  %v2028 = vunpack.c.h.b16 %v1943
  %v2029 = vunpack.c.l.b16 %v1944
  %v2030 = vunpack.c.h.b16 %v1944
  %v2031 = vunpack.c.l.b16 %v1945
  %v2032 = vunpack.c.h.b16 %v1945
  %v2033 = vunpack.c.l.b16 %v1946
  %v2034 = vunpack.c.h.b16 %v1946
  %v2035 = vunpack.c.l.b16 %v1947
  %v2036 = vunpack.c.h.b16 %v1947
  %v2037 = vunpack.c.l.b16 %v1948
  %v2038 = vunpack.c.h.b16 %v1948
  %v2039 = vunpack.c.l.b16 %v1949
  %v2040 = vunpack.c.h.b16 %v1949
  %v2041 = vunpack.c.l.b16 %v1950
  %v2042 = vunpack.c.h.b16 %v1950
  %v2043 = vunpack.c.l.b16 %v1951
  %v2044 = vunpack.c.h.b16 %v1951
  %v2045 = vunpack.c.l.b16 %v1952
  %v2046 = vunpack.c.h.b16 %v1952
  %v2047 = vunpack.c.l.b16 %v1953
  %v2048 = vunpack.c.h.b16 %v1953
  %v2049 = vunpack.c.l.b16 %v1954
  %v2050 = vunpack.c.h.b16 %v1954
  %v2051 = vunpack.c.l.b16 %v1955
  %v2052 = vunpack.c.h.b16 %v1955
  %v2053 = vunpack.c.l.b16 %v1956
  %v2054 = vunpack.c.h.b16 %v1956
  %v2055 = vunpack.c.l.b16 %v1957
  %v2056 = vunpack.c.h.b16 %v1957
  %v2057 = vunpack.c.l.b16 %v1958
  %v2058 = vunpack.c.h.b16 %v1958
  %v2059 = vunpack.c.l.b16 %v1959
  %v2060 = vunpack.c.h.b16 %v1959
  %v2061 = vunpack.c.l.b16 %v1960
  %v2062 = vunpack.c.h.b16 %v1960
  %v2063 = vunpack.c.l.b16 %v1961
  %v2064 = vunpack.c.h.b16 %v1961
  %v2065 = vunpack.c.l.b16 %v1962
  %v2066 = vunpack.c.h.b16 %v1962
  %v2067 = vunpack.c.l.b16 %v1963
  %v2068 = vunpack.c.h.b16 %v1963
  %v2069 = vunpack.c.l.b16 %v1964
  %v2070 = vunpack.c.h.b16 %v1964
  %v2071 = vunpack.c.l.b16 %v1965
  %v2072 = vunpack.c.h.b16 %v1965
  %v2073 = vunpack.c.l.b16 %v1966
  %v2074 = vunpack.c.h.b16 %v1966
  %v2075 = vunpack.c.l.b16 %v1967
  %v2076 = vunpack.c.h.b16 %v1967
  %v2077 = vunpack.c.l.b16 %v1968
  %v2078 = vunpack.c.h.b16 %v1968
  %v2079 = vpack.c.b16 %v2017, %v2015
  %v2080 = vpack.c.b16 %v2018, %v2016
  %v2081 = vpack.c.b16 %v2021, %v2019
  %v2082 = vpack.c.b16 %v2022, %v2020
  %v2083 = vpack.c.b16 %v2025, %v2023
  %v2084 = vpack.c.b16 %v2026, %v2024
  %v2085 = vpack.c.b16 %v2029, %v2027
  %v2086 = vpack.c.b16 %v2030, %v2028
  %v2087 = vpack.c.b16 %v2033, %v2031
  %v2088 = vpack.c.b16 %v2034, %v2032
  %v2089 = vpack.c.b16 %v2037, %v2035
  %v2090 = vpack.c.b16 %v2038, %v2036
  %v2091 = vpack.c.b16 %v2041, %v2039
  %v2092 = vpack.c.b16 %v2042, %v2040
  %v2093 = vpack.c.b16 %v2045, %v2043
  %v2094 = vpack.c.b16 %v2046, %v2044
  %v2095 = vpack.c.b16 %v2049, %v2047
  %v2096 = vpack.c.b16 %v2050, %v2048
  %v2097 = vpack.c.b16 %v2053, %v2051
  %v2098 = vpack.c.b16 %v2054, %v2052
  %v2099 = vpack.c.b16 %v2057, %v2055
  %v2100 = vpack.c.b16 %v2058, %v2056
  %v2101 = vpack.c.b16 %v2061, %v2059
  %v2102 = vpack.c.b16 %v2062, %v2060
  %v2103 = vpack.c.b16 %v2065, %v2063
  %v2104 = vpack.c.b16 %v2066, %v2064
  %v2105 = vpack.c.b16 %v2069, %v2067
  %v2106 = vpack.c.b16 %v2070, %v2068
  %v2107 = vpack.c.b16 %v2073, %v2071
  %v2108 = vpack.c.b16 %v2074, %v2072
  %v2109 = vpack.c.b16 %v2077, %v2075
  %v2110 = vpack.c.b16 %v2078, %v2076
  %2143 = vmatprep.subr.bf16.mxu0 %v2094
  %2144 = vmatpush1.bf16.msra.mxu0 %v2093
  %2145 = vmatprep.subr.bf16.mxu0 %v2092
  %2146 = vmatpush1.bf16.msra.mxu0 %v2091
  %2147 = vmatprep.subr.bf16.mxu0 %v2090
  %2148 = vmatpush1.bf16.msra.mxu0 %v2089
  %2149 = vmatprep.subr.bf16.mxu0 %v2088
  %2150 = vmatpush1.bf16.msra.mxu0 %v2087
  %2151 = vmatprep.subr.bf16.mxu0 %v2086
  %2152 = vmatpush1.bf16.msra.mxu0 %v2085
  %2153 = vmatprep.subr.bf16.mxu0 %v2084
  %2154 = vmatpush1.bf16.msra.mxu0 %v2083
  %2155 = vmatprep.subr.bf16.mxu0 %v2082
  %2156 = vmatpush1.bf16.msra.mxu0 %v2081
  %2157 = vmatprep.subr.bf16.mxu0 %v2080
  %2158 = vmatpush1.bf16.msra.mxu0 %v2079
  %2159 = vmatprep.subr.bf16.mxu0 %v2110
  %2160 = vmatpush2.bf16.msra.mxu0 %v2109
  %2161 = vmatprep.subr.bf16.mxu0 %v2108
  %2162 = vmatpush2.bf16.msra.mxu0 %v2107
  %2163 = vmatprep.subr.bf16.mxu0 %v2106
  %2164 = vmatpush2.bf16.msra.mxu0 %v2105
  %2165 = vmatprep.subr.bf16.mxu0 %v2104
  %2166 = vmatpush2.bf16.msra.mxu0 %v2103
  %2167 = vmatprep.subr.bf16.mxu0 %v2102
  %2168 = vmatpush2.bf16.msra.mxu0 %v2101
  %2169 = vmatprep.subr.bf16.mxu0 %v2100
  %2170 = vmatpush2.bf16.msra.mxu0 %v2099
  %2171 = vmatprep.subr.bf16.mxu0 %v2098
  %2172 = vmatpush2.bf16.msra.mxu0 %v2097
  %2173 = vmatprep.subr.bf16.mxu0 %v2096
  %2174 = vmatpush2.bf16.msra.mxu0 %v2095
  %2175 = vmatprep.mubr.bf16.mxu0 %v1971
  %2176 = vmatmul.mubr.bf16.gmra.mxu0 %v1970
  %v2177 = vpop.f32.mrf.mxu0
  %v2178 = vadd.f32 %v1976, %v2177
  %v2179 = vpop.f32.mrf.mxu0
  %v2180 = vadd.f32 %v1980, %v2179
  %v2181 = vpop.f32.mrf.mxu0
  %v2182 = vpop.f32.mrf.mxu0
  %2183 = vdwg.mxu0
  %v2184 = vmax.f32 %v2178, 0.0
  %v2185 = vmax.f32 %v2180, 0.0
  %v2186 = vld [vmem:[%s20] sm:$0xf]
  %v2187 = vld [vmem:[%s20 + $0x4] sm:$0xf]
  %v2188 = vld [vmem:[%s20 + $0x8] sm:$0xf]
  %v2189 = vld [vmem:[%s20 + $0xc] sm:$0xf]
  %v2190 = vld [vmem:[%s20 + $0x10] sm:$0xf]
  %v2191 = vld [vmem:[%s20 + $0x14] sm:$0xf]
  %v2192 = vld [vmem:[%s20 + $0x18] sm:$0xf]
  %v2193 = vld [vmem:[%s20 + $0x1c] sm:$0xf]
  %v2194 = vld [vmem:[%s20 + $0x20] sm:$0xf]
  %v2195 = vld [vmem:[%s20 + $0x24] sm:$0xf]
  %v2196 = vld [vmem:[%s20 + $0x28] sm:$0xf]
  %v2197 = vld [vmem:[%s20 + $0x2c] sm:$0xf]
  %v2198 = vld [vmem:[%s20 + $0x30] sm:$0xf]
  %v2199 = vld [vmem:[%s20 + $0x34] sm:$0xf]
  %v2200 = vld [vmem:[%s20 + $0x38] sm:$0xf]
  %v2201 = vld [vmem:[%s20 + $0x3c] sm:$0xf]
  %v2202 = vld [vmem:[%s20 + $0x40] sm:$0xf]
  %v2203 = vld [vmem:[%s20 + $0x44] sm:$0xf]
  %v2204 = vld [vmem:[%s20 + $0x48] sm:$0xf]
  %v2205 = vld [vmem:[%s20 + $0x4c] sm:$0xf]
  %v2206 = vld [vmem:[%s20 + $0x50] sm:$0xf]
  %v2207 = vld [vmem:[%s20 + $0x54] sm:$0xf]
  %v2208 = vld [vmem:[%s20 + $0x58] sm:$0xf]
  %v2209 = vld [vmem:[%s20 + $0x5c] sm:$0xf]
  %v2210 = vld [vmem:[%s20 + $0x60] sm:$0xf]
  %v2211 = vld [vmem:[%s20 + $0x64] sm:$0xf]
  %v2212 = vld [vmem:[%s20 + $0x68] sm:$0xf]
  %v2213 = vld [vmem:[%s20 + $0x6c] sm:$0xf]
  %v2214 = vld [vmem:[%s20 + $0x70] sm:$0xf]
  %v2215 = vld [vmem:[%s20 + $0x74] sm:$0xf]
  %v2216 = vld [vmem:[%s20 + $0x78] sm:$0xf]
  %v2217 = vld [vmem:[%s20 + $0x7c] sm:$0xf]
  %v2218 = vld [vmem:[%s21] sm:$0x1]
  %v2219 = vpack.c.bf16 %v2184, %v2184
  %v2220 = vpack.c.bf16 %v2185, %v2185
  %v2222 = vlaneseq
  %v2223 = vshrl.u32 %v2222, 7
  %v2224 = vsub.s32 0, %v2223
  %v2225 = vrot.slane %v2218, %v2224
  %v2259 = vunpack.c.l.b16 %v2186
  %v2260 = vunpack.c.l.b16 %v2187
  %v2261 = vunpack.c.l.b16 %v2188
  %v2262 = vunpack.c.l.b16 %v2189
  %v2263 = vunpack.c.l.b16 %v2190
  %v2264 = vunpack.c.l.b16 %v2191
  %v2265 = vunpack.c.l.b16 %v2192
  %v2266 = vunpack.c.l.b16 %v2193
  %v2267 = vunpack.c.l.b16 %v2194
  %v2268 = vunpack.c.l.b16 %v2195
  %v2269 = vunpack.c.l.b16 %v2196
  %v2270 = vunpack.c.l.b16 %v2197
  %v2271 = vunpack.c.l.b16 %v2198
  %v2272 = vunpack.c.l.b16 %v2199
  %v2273 = vunpack.c.l.b16 %v2200
  %v2274 = vunpack.c.l.b16 %v2201
  %v2275 = vunpack.c.l.b16 %v2202
  %v2276 = vunpack.c.l.b16 %v2203
  %v2277 = vunpack.c.l.b16 %v2204
  %v2278 = vunpack.c.l.b16 %v2205
  %v2279 = vunpack.c.l.b16 %v2206
  %v2280 = vunpack.c.l.b16 %v2207
  %v2281 = vunpack.c.l.b16 %v2208
  %v2282 = vunpack.c.l.b16 %v2209
  %v2283 = vunpack.c.l.b16 %v2210
  %v2284 = vunpack.c.l.b16 %v2211
  %v2285 = vunpack.c.l.b16 %v2212
  %v2286 = vunpack.c.l.b16 %v2213
  %v2287 = vunpack.c.l.b16 %v2214
  %v2288 = vunpack.c.l.b16 %v2215
  %v2289 = vunpack.c.l.b16 %v2216
  %v2290 = vunpack.c.l.b16 %v2217
  %v2291 = vpack.c.b16 %v2260, %v2259
  %v2292 = vpack.c.b16 %v2262, %v2261
  %v2293 = vpack.c.b16 %v2264, %v2263
  %v2294 = vpack.c.b16 %v2266, %v2265
  %v2295 = vpack.c.b16 %v2268, %v2267
  %v2296 = vpack.c.b16 %v2270, %v2269
  %v2297 = vpack.c.b16 %v2272, %v2271
  %v2298 = vpack.c.b16 %v2274, %v2273
  %v2299 = vpack.c.b16 %v2276, %v2275
  %v2300 = vpack.c.b16 %v2278, %v2277
  %v2301 = vpack.c.b16 %v2280, %v2279
  %v2302 = vpack.c.b16 %v2282, %v2281
  %v2303 = vpack.c.b16 %v2284, %v2283
  %v2304 = vpack.c.b16 %v2286, %v2285
  %v2305 = vpack.c.b16 %v2288, %v2287
  %v2306 = vpack.c.b16 %v2290, %v2289
  %2323 = vmatprep.subr.bf16.mxu0 0
  %2324 = vmatpush1.bf16.msra.mxu0 %v2298
  %2325 = vmatprep.subr.bf16.mxu0 0
  %2326 = vmatpush1.bf16.msra.mxu0 %v2297
  %2327 = vmatprep.subr.bf16.mxu0 0
  %2328 = vmatpush1.bf16.msra.mxu0 %v2296
  %2329 = vmatprep.subr.bf16.mxu0 0
  %2330 = vmatpush1.bf16.msra.mxu0 %v2295
  %2331 = vmatprep.subr.bf16.mxu0 0
  %2332 = vmatpush1.bf16.msra.mxu0 %v2294
  %2333 = vmatprep.subr.bf16.mxu0 0
  %2334 = vmatpush1.bf16.msra.mxu0 %v2293
  %2335 = vmatprep.subr.bf16.mxu0 0
  %2336 = vmatpush1.bf16.msra.mxu0 %v2292
  %2337 = vmatprep.subr.bf16.mxu0 0
  %2338 = vmatpush1.bf16.msra.mxu0 %v2291
  %2339 = vmatprep.subr.bf16.mxu0 0
  %2340 = vmatpush2.bf16.msra.mxu0 %v2306
  %2341 = vmatprep.subr.bf16.mxu0 0
  %2342 = vmatpush2.bf16.msra.mxu0 %v2305
  %2343 = vmatprep.subr.bf16.mxu0 0
  %2344 = vmatpush2.bf16.msra.mxu0 %v2304
  %2345 = vmatprep.subr.bf16.mxu0 0
  %2346 = vmatpush2.bf16.msra.mxu0 %v2303
  %2347 = vmatprep.subr.bf16.mxu0 0
  %2348 = vmatpush2.bf16.msra.mxu0 %v2302
  %2349 = vmatprep.subr.bf16.mxu0 0
  %2350 = vmatpush2.bf16.msra.mxu0 %v2301
  %2351 = vmatprep.subr.bf16.mxu0 0
  %2352 = vmatpush2.bf16.msra.mxu0 %v2300
  %2353 = vmatprep.subr.bf16.mxu0 0
  %2354 = vmatpush2.bf16.msra.mxu0 %v2299
  %2355 = vmatprep.mubr.bf16.mxu0 %v2220
  %2356 = vmatmul.mubr.bf16.gmra.mxu0 %v2219
  %v2357 = vpop.f32.mrf.mxu0
  %v2358 = vadd.f32 %v2225, %v2357
  %v2359 = vpop.f32.mrf.mxu0
  %v2360 = vpop.f32.mrf.mxu0
  %v2361 = vpop.f32.mrf.mxu0
  %2362 = vdwg.mxu0
  %v2363 = vmax.f32 %v2358, 0.0
  %v2364 = vld [vmem:[%s22] sm:$0xf]
  %v2365 = vld [vmem:[%s22 + $0x4] sm:$0xf]
  %v2366 = vld [vmem:[#allocation2] sm:$0x1]
  %v2367 = vpack.c.bf16 %v2363, %v2363
  %v2369 = vlaneseq
  %v2370 = vshrl.u32 %v2369, 7
  %v2371 = vsub.s32 0, %v2370
  %v2372 = vrot.slane %v2366, %v2371
  %v2376 = vunpack.c.l.b16 %v2364
  %v2377 = vunpack.c.l.b16 %v2365
  %v2378 = vpack.c.b16 %v2377, %v2376
  %v2381 = vsel %vm1585, %v2367, 0
  %2383 = vmatprep.subr.bf16.mxu0 0
  %2384 = vmatpush1.bf16.msra.mxu0 0
  %2385 = vmatprep.subr.bf16.mxu0 0
  %2386 = vmatpush1.bf16.msra.mxu0 0
  %2387 = vmatprep.subr.bf16.mxu0 0
  %2388 = vmatpush1.bf16.msra.mxu0 0
  %2389 = vmatprep.subr.bf16.mxu0 0
  %2390 = vmatpush1.bf16.msra.mxu0 0
  %2391 = vmatprep.subr.bf16.mxu0 0
  %2392 = vmatpush1.bf16.msra.mxu0 0
  %2393 = vmatprep.subr.bf16.mxu0 0
  %2394 = vmatpush1.bf16.msra.mxu0 0
  %2395 = vmatprep.subr.bf16.mxu0 0
  %2396 = vmatpush1.bf16.msra.mxu0 0
  %2397 = vmatprep.subr.bf16.mxu0 0
  %2398 = vmatpush1.bf16.msra.mxu0 %v2378
  %2399 = vmatprep.subr.bf16.mxu0 0
  %2400 = vmatpush2.bf16.msra.mxu0 0
  %2401 = vmatprep.subr.bf16.mxu0 0
  %2402 = vmatpush2.bf16.msra.mxu0 0
  %2403 = vmatprep.subr.bf16.mxu0 0
  %2404 = vmatpush2.bf16.msra.mxu0 0
  %2405 = vmatprep.subr.bf16.mxu0 0
  %2406 = vmatpush2.bf16.msra.mxu0 0
  %2407 = vmatprep.subr.bf16.mxu0 0
  %2408 = vmatpush2.bf16.msra.mxu0 0
  %2409 = vmatprep.subr.bf16.mxu0 0
  %2410 = vmatpush2.bf16.msra.mxu0 0
  %2411 = vmatprep.subr.bf16.mxu0 0
  %2412 = vmatpush2.bf16.msra.mxu0 0
  %2413 = vmatprep.subr.bf16.mxu0 0
  %2414 = vmatpush2.bf16.msra.mxu0 0
  %2415 = vmatprep.mubr.bf16.mxu0 0
  %2416 = vmatmul.mubr.bf16.gmra.mxu0 %v2381
  %v2417 = vpop.f32.mrf.mxu0
  %v2418 = vadd.f32 %v2372, %v2417
  %v2419 = vpop.f32.mrf.mxu0
  %v2420 = vpop.f32.mrf.mxu0
  %v2421 = vpop.f32.mrf.mxu0
  %2422 = vdwg.mxu0
  %v2423 = vxor.u32 %v2418, 2147483648
  %v2424 = vmul.f32 %v2423, 1.442695
  %v2425 = vpow.pop %v2424
  %v2426 = vadd.f32 %v2425, 1.0
  %v2427 = vrcp.pop %v2426
  %v2428 = vmul.f32 1.0, %v2427
  %vm2429 = vcmask 1024
  %2430 = vst.msk [vmem:[%s24] sm:$0x3] %vm2429, %v2428
  // Predicated region
  $region98: #{qnetwork_forward.7} parent=0 // pred_check
    _
  $region99: #{qnetwork_forward.7} parent=0 // pred_check_branch
    %2432 = sbr.rel (0) target = $region101
  $region100: #{qnetwork_forward.7} parent=0 // pred_region
    _
  $region101: #{qnetwork_forward.7} parent=0 // pred_fallthru
    _
  // Predicated region
  $region102: #{qnetwork_forward.7} parent=0 // pred_check
    _
  $region103: #{qnetwork_forward.7} parent=0 // pred_check_branch
    %2434 = sbr.rel (0) target = $region105
  $region104: #{qnetwork_forward.7} parent=0 // pred_region
    _
  $region105: #{qnetwork_forward.7} parent=0 // pred_fallthru
    _

</llo_original>
